<compile_context>
chip_gen: v7x
topology: tpu7x:2x2x1
jax: 0.10.0
libtpu: 0.0.40
codegen_flags: <defaults>
</compile_context>

<pallas_src>
import functools

import jax
import jax.numpy as jnp
from jax.experimental import pallas as pl
from jax.experimental.pallas import tpu as pltpu


_LANE = 128
_TM_TARGET = 512
_BN_EPS = 1e-5
_LRELU_SLOPE = 0.2
_FUSED_BN_VMEM_BYTES = 8 * 1024 * 1024    # gate for the single-call fused BN path
_VMEM_CAP_BYTES = 40 * 1024 * 1024        # headroom below v7x's 64 MiB physical VMEM


def _round_up(x, m):
    return (x + m - 1) // m * m


def _pad_to_multiple(a, axis, multiple):
    pad = (-a.shape[axis]) % multiple
    if pad == 0:
        return a
    widths = [(0, 0)] * a.ndim
    widths[axis] = (0, pad)
    return jnp.pad(a, widths)


def _choose_tm(m):
    if m >= _TM_TARGET:
        return _TM_TARGET
    return _round_up(m, 8)


def _vmem_limit(est_block_bytes):
    return int(min(max(2 * est_block_bytes + (4 << 20), 16 << 20), _VMEM_CAP_BYTES))


def _compiler_params(semantics, est_block_bytes):
    return pltpu.CompilerParams(dimension_semantics=semantics,
                                vmem_limit_bytes=_vmem_limit(est_block_bytes))


# ---------------------------------------------------------------------------
# Pallas kernels
# ---------------------------------------------------------------------------

def _leaky_relu(y):
    return jnp.where(y > 0, y, _LRELU_SLOPE * y)


def matmul_bias_act_kernel(x_ref, w_ref, b_ref, o_ref, *, act):
    """O = act(X @ W + b) for one M-tile (layers 1 and 5)."""
    y = jnp.dot(x_ref[...], w_ref[...], preferred_element_type=jnp.float32)
    y = y + b_ref[...]
    if act == "lrelu":
        y = _leaky_relu(y)
    else:  # "sigmoid"
        y = jax.nn.sigmoid(y)
    o_ref[...] = y.astype(o_ref.dtype)


def fused_conv_bn_lrelu_kernel(x_ref, w_ref, g_ref, b_ref, o_ref, *, m_true):
    """Whole-layer Conv(matmul) + BatchNorm2d(batch stats) + LeakyReLU in VMEM.

    Used when the full (M_pad, C_pad) activation fits in VMEM: the f32 conv
    result never round-trips HBM and the variance is the exact centered
    E[(y-mean)^2] over the true M rows (padded rows masked out).
    """
    y = jnp.dot(x_ref[...], w_ref[...], preferred_element_type=jnp.float32)
    inv_m = 1.0 / m_true
    mean = jnp.sum(y, axis=0, keepdims=True) * inv_m
    rows = jax.lax.broadcasted_iota(jnp.int32, y.shape, 0)
    diff = jnp.where(rows < m_true, y - mean, 0.0)
    var = jnp.sum(diff * diff, axis=0, keepdims=True) * inv_m
    scale = g_ref[...] * jax.lax.rsqrt(var + _BN_EPS)
    shift = b_ref[...] - mean * scale
    o_ref[...] = _leaky_relu(y * scale + shift).astype(o_ref.dtype)


def matmul_stats_kernel(x_ref, w_ref, y_ref, psum_ref, psq_ref):
    """Tiled BN pass 1: Y-tile = X @ W (stored bf16) + per-tile channel sums.

    Partial sums/sum-sqs are written to per-tile output blocks (row 0 of an
    8-row block, remaining rows zero), so the M grid axis can be marked
    "parallel" (megacore-shardable) with no cross-tile accumulator race.
    """
    y = jnp.dot(x_ref[...], w_ref[...], preferred_element_type=jnp.float32)
    y_ref[...] = y.astype(y_ref.dtype)
    s = jnp.sum(y, axis=0, keepdims=True)
    q = jnp.sum(y * y, axis=0, keepdims=True)
    rows = jax.lax.broadcasted_iota(jnp.int32, psum_ref.shape, 0)
    psum_ref[...] = jnp.where(rows == 0, jnp.broadcast_to(s, psum_ref.shape), 0.0)
    psq_ref[...] = jnp.where(rows == 0, jnp.broadcast_to(q, psq_ref.shape), 0.0)


def affine_lrelu_kernel(y_ref, scale_ref, shift_ref, o_ref):
    """Tiled BN pass 2: O = LeakyReLU(Y * scale + shift), Y read as bf16."""
    y = y_ref[...].astype(jnp.float32) * scale_ref[...] + shift_ref[...]
    o_ref[...] = _leaky_relu(y).astype(o_ref.dtype)


# ---------------------------------------------------------------------------
# Plain-JAX glue: channels-last im2col / operand prep
# ---------------------------------------------------------------------------

def im2col_nhwc(x, k, stride, padding):
    """x: (N, H, W, C) -> (N*Ho*Wo, k*k*C), Ho, Wo. Column order (kh, kw, C).

    TODO(synk): replace with 16 in-kernel (di,dj) tap matmuls over the NHWC
    activation kept in HBM, avoiding this 4x-inflated HBM materialization.
    """
    n, h, w, c = x.shape
    if padding:
        x = jnp.pad(x, ((0, 0), (padding, padding), (padding, padding), (0, 0)))
    hp, wp = h + 2 * padding, w + 2 * padding
    ho = (hp - k) // stride + 1
    wo = (wp - k) // stride + 1
    cols = []
    for di in range(k):
        for dj in range(k):
            cols.append(x[:, di:di + stride * ho:stride,
                          dj:dj + stride * wo:stride, :])
    patches = jnp.concatenate(cols, axis=-1)          # (N, Ho, Wo, k*k*C)
    return patches.reshape(n * ho * wo, k * k * c), ho, wo


def conv_weight_to_matrix(w):
    """PyTorch (C_out, C_in, kh, kw) -> (kh*kw*C_in, C_out), C_in innermost."""
    c_out = w.shape[0]
    return w.transpose(2, 3, 1, 0).reshape(-1, c_out)


def _prep_matmul_operands(x2d, wm):
    """Pad C_out to a lane multiple and M to the tile size; cast bf16.

    K is kept at its natural size: the X / W blocks cover the full K dim,
    which satisfies the (8,128) rule without padding (K = k*k*C_in is always
    a multiple of 8 here)."""
    m = x2d.shape[0]
    wm = _pad_to_multiple(wm, 1, _LANE)
    tm = _choose_tm(m)
    x2d = _pad_to_multiple(x2d, 0, tm)
    return x2d.astype(jnp.bfloat16), wm.astype(jnp.bfloat16), tm


# ---------------------------------------------------------------------------
# Layers
# ---------------------------------------------------------------------------

def conv_bias_act_layer(x, w, b, *, k, stride, padding, act,
                        out_dtype=jnp.bfloat16):
    """Conv2d(+bias) -> LeakyReLU(0.2) or Sigmoid, NHWC in / NHWC out."""
    n = x.shape[0]
    c_out = w.shape[0]
    x2d, ho, wo = im2col_nhwc(x, k, stride, padding)
    m = x2d.shape[0]
    x2d, wm, tm = _prep_matmul_operands(x2d, conv_weight_to_matrix(w))
    m_pad, kdim = x2d.shape
    c_pad = wm.shape[1]
    b2 = _pad_to_multiple(b.reshape(1, -1).astype(jnp.float32), 1, _LANE)
    itemsize_out = jnp.dtype(out_dtype).itemsize

    block_bytes = (2 * tm * kdim * 2 + kdim * c_pad * 2 + c_pad * 4
                   + 2 * tm * c_pad * itemsize_out + tm * c_pad * 4)
    cost = pl.CostEstimate(
        flops=2 * m_pad * kdim * c_pad,
        transcendentals=m_pad * c_pad if act == "sigmoid" else 0,
        bytes_accessed=(x2d.size * 2 + wm.size * 2 + b2.size * 4
                        + m_pad * c_pad * itemsize_out))

    y = pl.pallas_call(
        functools.partial(matmul_bias_act_kernel, act=act),
        out_shape=jax.ShapeDtypeStruct((m_pad, c_pad), out_dtype),
        grid=(m_pad // tm,),
        in_specs=[pl.BlockSpec((tm, kdim), lambda i: (i, 0)),
                  pl.BlockSpec((kdim, c_pad), lambda i: (0, 0)),
                  pl.BlockSpec((1, c_pad), lambda i: (0, 0))],
        out_specs=pl.BlockSpec((tm, c_pad), lambda i: (i, 0)),
        compiler_params=_compiler_params(("parallel",), block_bytes),
        cost_estimate=cost,
    )(x2d, wm, b2)

    return y[:m, :c_out].reshape(n, ho, wo, c_out)


def conv_bn_lrelu_layer(x, w, gamma, beta, *, k, stride, padding,
                        out_dtype=jnp.bfloat16):
    """Conv2d(bias=False) -> BatchNorm2d(batch stats, eps=1e-5) -> LeakyReLU(0.2)."""
    n = x.shape[0]
    c_out = w.shape[0]
    x2d, ho, wo = im2col_nhwc(x, k, stride, padding)
    m = x2d.shape[0]
    x2d, wm, tm = _prep_matmul_operands(x2d, conv_weight_to_matrix(w))
    m_pad, kdim = x2d.shape
    c_pad = wm.shape[1]
    itemsize_out = jnp.dtype(out_dtype).itemsize
    gamma_p = _pad_to_multiple(gamma.reshape(1, -1).astype(jnp.float32), 1, _LANE)
    beta_p = _pad_to_multiple(beta.reshape(1, -1).astype(jnp.float32), 1, _LANE)

    # ---- Fused single-call path: whole layer resident in VMEM --------------
    fused_vmem = (x2d.size * 2 + wm.size * 2 + 2 * c_pad * 4
                  + m_pad * c_pad * itemsize_out + 3 * m_pad * c_pad * 4)
    if fused_vmem <= _FUSED_BN_VMEM_BYTES:
        cost = pl.CostEstimate(
            flops=2 * m_pad * kdim * c_pad + 10 * m_pad * c_pad,
            transcendentals=0,
            bytes_accessed=(x2d.size * 2 + wm.size * 2 + 2 * c_pad * 4
                            + m_pad * c_pad * itemsize_out))
        out = pl.pallas_call(
            functools.partial(fused_conv_bn_lrelu_kernel, m_true=m),
            out_shape=jax.ShapeDtypeStruct((m_pad, c_pad), out_dtype),
            grid=(1,),
            in_specs=[pl.BlockSpec((m_pad, kdim), lambda i: (0, 0)),
                      pl.BlockSpec((kdim, c_pad), lambda i: (0, 0)),
                      pl.BlockSpec((1, c_pad), lambda i: (0, 0)),
                      pl.BlockSpec((1, c_pad), lambda i: (0, 0))],
            out_specs=pl.BlockSpec((m_pad, c_pad), lambda i: (0, 0)),
            compiler_params=_compiler_params(("arbitrary",), fused_vmem),
            cost_estimate=cost,
        )(x2d, wm, gamma_p, beta_p)
        return out[:m, :c_out].reshape(n, ho, wo, c_out)

    # ---- Fallback: tiled two-pass path --------------------------------------
    num_tiles = m_pad // tm

    # Pass 1: tiled matmul, bf16 Y writeback, per-tile partial sums ("parallel").
    block_bytes1 = (2 * tm * kdim * 2 + kdim * c_pad * 2
                    + 2 * tm * c_pad * 2 + 4 * 8 * c_pad * 4 + tm * c_pad * 4)
    cost1 = pl.CostEstimate(
        flops=2 * m_pad * kdim * c_pad + 4 * m_pad * c_pad,
        transcendentals=0,
        bytes_accessed=(x2d.size * 2 + wm.size * 2 + m_pad * c_pad * 2
                        + 2 * num_tiles * 8 * c_pad * 4))
    y, psum, psq = pl.pallas_call(
        matmul_stats_kernel,
        out_shape=(jax.ShapeDtypeStruct((m_pad, c_pad), jnp.bfloat16),
                   jax.ShapeDtypeStruct((num_tiles * 8, c_pad), jnp.float32),
                   jax.ShapeDtypeStruct((num_tiles * 8, c_pad), jnp.float32)),
        grid=(num_tiles,),
        in_specs=[pl.BlockSpec((tm, kdim), lambda i: (i, 0)),
                  pl.BlockSpec((kdim, c_pad), lambda i: (0, 0))],
        out_specs=(pl.BlockSpec((tm, c_pad), lambda i: (i, 0)),
                   pl.BlockSpec((8, c_pad), lambda i: (i, 0)),
                   pl.BlockSpec((8, c_pad), lambda i: (i, 0))),
        compiler_params=_compiler_params(("parallel",), block_bytes1),
        cost_estimate=cost1,
    )(x2d, wm)

    # Batch statistics over the true M rows (padded rows contribute zero).
    ysum = jnp.sum(psum, axis=0, keepdims=True)
    ysq = jnp.sum(psq, axis=0, keepdims=True)
    mean = ysum / m
    # TODO(synk): switch to centered/Welford cross-tile stats if tighter parity
    # with PyTorch f32 BN numerics is needed for very large activations.
    var = jnp.maximum(ysq / m - mean * mean, 0.0)   # biased variance (train mode)
    scale = gamma_p * jax.lax.rsqrt(var + _BN_EPS)
    shift = beta_p - mean * scale

    # Pass 2: tiled fused BatchNorm-apply + LeakyReLU ("parallel").
    block_bytes2 = (2 * tm * c_pad * 2 + 2 * c_pad * 4
                    + 2 * tm * c_pad * itemsize_out)
    cost2 = pl.CostEstimate(
        flops=3 * m_pad * c_pad, transcendentals=0,
        bytes_accessed=m_pad * c_pad * (2 + itemsize_out) + 2 * c_pad * 4)
    out = pl.pallas_call(
        affine_lrelu_kernel,
        out_shape=jax.ShapeDtypeStruct((m_pad, c_pad), out_dtype),
        grid=(num_tiles,),
        in_specs=[pl.BlockSpec((tm, c_pad), lambda i: (i, 0)),
                  pl.BlockSpec((1, c_pad), lambda i: (0, 0)),
                  pl.BlockSpec((1, c_pad), lambda i: (0, 0))],
        out_specs=pl.BlockSpec((tm, c_pad), lambda i: (i, 0)),
        compiler_params=_compiler_params(("parallel",), block_bytes2),
        cost_estimate=cost2,
    )(y, scale, shift)

    return out[:m, :c_out].reshape(n, ho, wo, c_out)


# ---------------------------------------------------------------------------
# Discriminator forward
# ---------------------------------------------------------------------------

def init_params(key, channels_img, features_d):
    fd = features_d
    ks = jax.random.split(key, 20)
    p = {}
    # layer 1: Conv(channels_img -> fd, 4, 2, 1) with bias
    p["w1"] = jax.random.normal(ks[0], (fd, channels_img, 4, 4), jnp.float32) * 0.05
    p["b1"] = jax.random.normal(ks[1], (fd,), jnp.float32) * 0.05
    # blocks 2-4: Conv (no bias) + BN(gamma, beta)
    for i, (cin, cout) in enumerate([(fd, 2 * fd), (2 * fd, 4 * fd),
                                     (4 * fd, 8 * fd)], start=2):
        p[f"w{i}"] = jax.random.normal(ks[3 * i], (cout, cin, 4, 4),
                                       jnp.float32) * 0.05
        p[f"g{i}"] = 1.0 + 0.05 * jax.random.normal(ks[3 * i + 1], (cout,),
                                                    jnp.float32)
        p[f"be{i}"] = 0.05 * jax.random.normal(ks[3 * i + 2], (cout,),
                                               jnp.float32)
    # layer 5: Conv(8fd -> 1, 4, 2, 0) with bias
    p["w5"] = jax.random.normal(ks[16], (1, 8 * fd, 4, 4), jnp.float32) * 0.05
    p["b5"] = jax.random.normal(ks[17], (1,), jnp.float32) * 0.05
    return p


@jax.jit
def discriminator_forward(params, x):
    """x: (N, channels_img, 64, 64) NCHW -> (N, 1, 1, 1)."""
    x = jnp.transpose(x, (0, 2, 3, 1))    # NCHW -> NHWC, boundary only

    # Layer 1: Conv(k=4,s=2,p=1) + bias + LeakyReLU(0.2)
    x = conv_bias_act_layer(x, params["w1"], params["b1"],
                            k=4, stride=2, padding=1, act="lrelu")
    # Blocks 2-4: Conv(no bias) + BatchNorm2d(batch stats) + LeakyReLU(0.2)
    for i in (2, 3, 4):
        x = conv_bn_lrelu_layer(x, params[f"w{i}"], params[f"g{i}"],
                                params[f"be{i}"], k=4, stride=2, padding=1)
    # Layer 5: Conv(k=4,s=2,p=0) + bias + Sigmoid
    x = conv_bias_act_layer(x, params["w5"], params["b5"],
                            k=4, stride=2, padding=0, act="sigmoid",
                            out_dtype=jnp.float32)
    return jnp.transpose(x, (0, 3, 1, 2))   # (N, 1, 1, 1), NCHW out


# ---------------------------------------------------------------------------

if __name__ == "__main__":
    channels_img = 3
    features_d = 4
    batch = 2
    spatial = 64   # architecture requires 64x64 input so final conv yields 1x1

    key = jax.random.PRNGKey(0)
    k_param, k_x = jax.random.split(key)
    params = init_params(k_param, channels_img, features_d)
    x = jax.random.normal(k_x, (batch, channels_img, spatial, spatial),
                          jnp.float32)

    out = discriminator_forward(params, x)
    out = jax.block_until_ready(out)

    assert out.shape == (batch, 1, 1, 1), out.shape
    assert bool(jnp.all(jnp.isfinite(out)))
    assert bool(jnp.all((out >= 0.0) & (out <= 1.0)))   # sigmoid range
    print("KERNEL_OK")
</pallas_src>

<mosaic_0001>
module attributes {stable_mosaic.version = 11 : i64} {
  func.func @matmul_bias_act_kernel(%arg0: i32, %arg1: memref<512x48xbf16, #tpu.memory_space<vmem>>, %arg2: memref<48x128xbf16, #tpu.memory_space<vmem>>, %arg3: memref<1x128xf32, #tpu.memory_space<vmem>>, %arg4: memref<512x128xbf16, #tpu.memory_space<vmem>>) attributes {dimension_semantics = [#tpu.dimension_semantics<parallel>], iteration_bounds = array<i64: 4>, scalar_prefetch = 0 : i64, scratch_operands = 0 : i64, tpu.core_type = #tpu.core_type<tc>, window_params = [{transform_indices = @transform_0, window_bounds = array<i64: 512, 48>}, {pipeline_mode = #tpu.pipeline_mode<synchronous>, transform_indices = @transform_1, window_bounds = array<i64: 48, 128>}, {pipeline_mode = #tpu.pipeline_mode<synchronous>, transform_indices = @transform_2, window_bounds = array<i64: 1, 128>}, {transform_indices = @transform_3, window_bounds = array<i64: 512, 128>}]} {
    %c0 = arith.constant 0 : index
    %c0_0 = arith.constant 0 : index
    %0 = vector.load %arg1[%c0, %c0_0] : memref<512x48xbf16, #tpu.memory_space<vmem>>, vector<512x48xbf16>
    %c0_1 = arith.constant 0 : index
    %c0_2 = arith.constant 0 : index
    %1 = vector.load %arg2[%c0_1, %c0_2] : memref<48x128xbf16, #tpu.memory_space<vmem>>, vector<48x128xbf16>
    %cst = arith.constant dense<0.000000e+00> : vector<512x128xf32>
    %2 = tpu.matmul %0, %1, %cst {dimension_numbers = #tpu.dot_dimension_numbers<[1], [0], [0], [1], [0, 0, 1, 1], [], []>} : vector<512x48xbf16>, vector<48x128xbf16>, vector<512x128xf32> -> vector<512x128xf32>
    %c0_3 = arith.constant 0 : index
    %c0_4 = arith.constant 0 : index
    %3 = vector.load %arg3[%c0_3, %c0_4] : memref<1x128xf32, #tpu.memory_space<vmem>>, vector<1x128xf32>
    %4 = vector.broadcast %3 : vector<1x128xf32> to vector<512x128xf32>
    %5 = arith.addf %2, %4 : vector<512x128xf32>
    %cst_5 = arith.constant 0.000000e+00 : f32
    %6 = vector.broadcast %cst_5 : f32 to vector<512x128xf32>
    %7 = arith.cmpf ogt, %5, %6 : vector<512x128xf32>
    %cst_6 = arith.constant 2.000000e-01 : f32
    %8 = vector.broadcast %cst_6 : f32 to vector<512x128xf32>
    %9 = arith.mulf %8, %5 : vector<512x128xf32>
    %10 = arith.select %7, %5, %9 : vector<512x128xi1>, vector<512x128xf32>
    %11 = arith.truncf %10 : vector<512x128xf32> to vector<512x128xbf16>
    %c0_7 = arith.constant 0 : index
    %c0_8 = arith.constant 0 : index
    %12 = vector.load %arg4[%c0_7, %c0_8] : memref<512x128xbf16, #tpu.memory_space<vmem>>, vector<512x128xbf16>
    tpu.vector_store %arg4[%c0_7, %c0_8], %11 {strides = array<i32>} : memref<512x128xbf16, #tpu.memory_space<vmem>>, vector<512x128xbf16>,
    return
  }
  func.func @transform_0(%arg0: i32) -> (i32, i32) {
    %c0_i32 = arith.constant 0 : i32
    %c0_i32_0 = arith.constant 0 : i32
    return %arg0, %c0_i32 : i32, i32
  }
  func.func @transform_1(%arg0: i32) -> (i32, i32) {
    %c0_i32 = arith.constant 0 : i32
    %c0_i32_0 = arith.constant 0 : i32
    %c0_i32_1 = arith.constant 0 : i32
    return %c0_i32, %c0_i32_0 : i32, i32
  }
  func.func @transform_2(%arg0: i32) -> (i32, i32) {
    %c0_i32 = arith.constant 0 : i32
    %c0_i32_0 = arith.constant 0 : i32
    %c0_i32_1 = arith.constant 0 : i32
    return %c0_i32, %c0_i32_0 : i32, i32
  }
  func.func @transform_3(%arg0: i32) -> (i32, i32) {
    %c0_i32 = arith.constant 0 : i32
    %c0_i32_0 = arith.constant 0 : i32
    return %arg0, %c0_i32 : i32, i32
  }
}

module attributes {stable_mosaic.version = 11 : i64} {
  func.func @fused_conv_bn_lrelu_kernel(%arg0: i32, %arg1: memref<512x64xbf16, #tpu.memory_space<vmem>>, %arg2: memref<64x128xbf16, #tpu.memory_space<vmem>>, %arg3: memref<1x128xf32, #tpu.memory_space<vmem>>, %arg4: memref<1x128xf32, #tpu.memory_space<vmem>>, %arg5: memref<512x128xbf16, #tpu.memory_space<vmem>>) attributes {dimension_semantics = [#tpu.dimension_semantics<arbitrary>], iteration_bounds = array<i64: 1>, scalar_prefetch = 0 : i64, scratch_operands = 0 : i64, tpu.core_type = #tpu.core_type<tc>, window_params = [{pipeline_mode = #tpu.pipeline_mode<synchronous>, transform_indices = @transform_0, window_bounds = array<i64: 512, 64>}, {pipeline_mode = #tpu.pipeline_mode<synchronous>, transform_indices = @transform_1, window_bounds = array<i64: 64, 128>}, {pipeline_mode = #tpu.pipeline_mode<synchronous>, transform_indices = @transform_2, window_bounds = array<i64: 1, 128>}, {pipeline_mode = #tpu.pipeline_mode<synchronous>, transform_indices = @transform_3, window_bounds = array<i64: 1, 128>}, {pipeline_mode = #tpu.pipeline_mode<synchronous>, transform_indices = @transform_4, window_bounds = array<i64: 512, 128>}]} {
    %c0 = arith.constant 0 : index
    %c0_0 = arith.constant 0 : index
    %0 = vector.load %arg1[%c0, %c0_0] : memref<512x64xbf16, #tpu.memory_space<vmem>>, vector<512x64xbf16>
    %c0_1 = arith.constant 0 : index
    %c0_2 = arith.constant 0 : index
    %1 = vector.load %arg2[%c0_1, %c0_2] : memref<64x128xbf16, #tpu.memory_space<vmem>>, vector<64x128xbf16>
    %cst = arith.constant dense<0.000000e+00> : vector<512x128xf32>
    %2 = tpu.matmul %0, %1, %cst {dimension_numbers = #tpu.dot_dimension_numbers<[1], [0], [0], [1], [0, 0, 1, 1], [], []>} : vector<512x64xbf16>, vector<64x128xbf16>, vector<512x128xf32> -> vector<512x128xf32>
    %cst_3 = arith.constant dense<0.000000e+00> : vector<128xf32>
    %3 = vector.multi_reduction <add>, %2, %cst_3 [0] : vector<512x128xf32> to vector<128xf32>
    %4 = vector.shape_cast %3 : vector<128xf32> to vector<1x128xf32>
    %cst_4 = arith.constant 0.001953125 : f32
    %5 = vector.broadcast %cst_4 : f32 to vector<1x128xf32>
    %6 = arith.mulf %4, %5 : vector<1x128xf32>
    %7 = tpu.iota {dimensions = array<i32: 0>} : vector<512x128xi32>
    %c512_i32 = arith.constant 512 : i32
    %8 = vector.broadcast %c512_i32 : i32 to vector<512x128xi32>
    %9 = arith.cmpi slt, %7, %8 : vector<512x128xi32>
    %10 = vector.broadcast %6 : vector<1x128xf32> to vector<512x128xf32>
    %11 = arith.subf %2, %10 : vector<512x128xf32>
    %cst_5 = arith.constant 0.000000e+00 : f32
    %12 = vector.broadcast %cst_5 : f32 to vector<512x128xf32>
    %13 = arith.select %9, %11, %12 : vector<512x128xi1>, vector<512x128xf32>
    %14 = arith.mulf %13, %13 : vector<512x128xf32>
    %cst_6 = arith.constant dense<0.000000e+00> : vector<128xf32>
    %15 = vector.multi_reduction <add>, %14, %cst_6 [0] : vector<512x128xf32> to vector<128xf32>
    %16 = vector.shape_cast %15 : vector<128xf32> to vector<1x128xf32>
    %cst_7 = arith.constant 0.001953125 : f32
    %17 = vector.broadcast %cst_7 : f32 to vector<1x128xf32>
    %18 = arith.mulf %16, %17 : vector<1x128xf32>
    %c0_8 = arith.constant 0 : index
    %c0_9 = arith.constant 0 : index
    %19 = vector.load %arg3[%c0_8, %c0_9] : memref<1x128xf32, #tpu.memory_space<vmem>>, vector<1x128xf32>
    %cst_10 = arith.constant 9.99999974E-6 : f32
    %20 = vector.broadcast %cst_10 : f32 to vector<1x128xf32>
    %21 = arith.addf %18, %20 : vector<1x128xf32>
    %22 = math.rsqrt %21 : vector<1x128xf32>
    %23 = arith.mulf %19, %22 : vector<1x128xf32>
    %c0_11 = arith.constant 0 : index
    %c0_12 = arith.constant 0 : index
    %24 = vector.load %arg4[%c0_11, %c0_12] : memref<1x128xf32, #tpu.memory_space<vmem>>, vector<1x128xf32>
    %25 = arith.mulf %6, %23 : vector<1x128xf32>
    %26 = arith.subf %24, %25 : vector<1x128xf32>
    %27 = vector.broadcast %23 : vector<1x128xf32> to vector<512x128xf32>
    %28 = arith.mulf %2, %27 : vector<512x128xf32>
    %29 = vector.broadcast %26 : vector<1x128xf32> to vector<512x128xf32>
    %30 = arith.addf %28, %29 : vector<512x128xf32>
    %cst_13 = arith.constant 0.000000e+00 : f32
    %31 = vector.broadcast %cst_13 : f32 to vector<512x128xf32>
    %32 = arith.cmpf ogt, %30, %31 : vector<512x128xf32>
    %cst_14 = arith.constant 2.000000e-01 : f32
    %33 = vector.broadcast %cst_14 : f32 to vector<512x128xf32>
    %34 = arith.mulf %33, %30 : vector<512x128xf32>
    %35 = arith.select %32, %30, %34 : vector<512x128xi1>, vector<512x128xf32>
    %36 = arith.truncf %35 : vector<512x128xf32> to vector<512x128xbf16>
    %c0_15 = arith.constant 0 : index
    %c0_16 = arith.constant 0 : index
    %37 = vector.load %arg5[%c0_15, %c0_16] : memref<512x128xbf16, #tpu.memory_space<vmem>>, vector<512x128xbf16>
    tpu.vector_store %arg5[%c0_15, %c0_16], %36 {strides = array<i32>} : memref<512x128xbf16, #tpu.memory_space<vmem>>, vector<512x128xbf16>,
    return
  }
  func.func @transform_0(%arg0: i32) -> (i32, i32) {
    %c0_i32 = arith.constant 0 : i32
    %c0_i32_0 = arith.constant 0 : i32
    %c0_i32_1 = arith.constant 0 : i32
    return %c0_i32, %c0_i32_0 : i32, i32
  }
  func.func @transform_1(%arg0: i32) -> (i32, i32) {
    %c0_i32 = arith.constant 0 : i32
    %c0_i32_0 = arith.constant 0 : i32
    %c0_i32_1 = arith.constant 0 : i32
    return %c0_i32, %c0_i32_0 : i32, i32
  }
  func.func @transform_2(%arg0: i32) -> (i32, i32) {
    %c0_i32 = arith.constant 0 : i32
    %c0_i32_0 = arith.constant 0 : i32
    %c0_i32_1 = arith.constant 0 : i32
    return %c0_i32, %c0_i32_0 : i32, i32
  }
  func.func @transform_3(%arg0: i32) -> (i32, i32) {
    %c0_i32 = arith.constant 0 : i32
    %c0_i32_0 = arith.constant 0 : i32
    %c0_i32_1 = arith.constant 0 : i32
    return %c0_i32, %c0_i32_0 : i32, i32
  }
  func.func @transform_4(%arg0: i32) -> (i32, i32) {
    %c0_i32 = arith.constant 0 : i32
    %c0_i32_0 = arith.constant 0 : i32
    %c0_i32_1 = arith.constant 0 : i32
    return %c0_i32, %c0_i32_0 : i32, i32
  }
}

module attributes {stable_mosaic.version = 11 : i64} {
  func.func @fused_conv_bn_lrelu_kernel(%arg0: i32, %arg1: memref<128x128xbf16, #tpu.memory_space<vmem>>, %arg2: memref<128x128xbf16, #tpu.memory_space<vmem>>, %arg3: memref<1x128xf32, #tpu.memory_space<vmem>>, %arg4: memref<1x128xf32, #tpu.memory_space<vmem>>, %arg5: memref<128x128xbf16, #tpu.memory_space<vmem>>) attributes {dimension_semantics = [#tpu.dimension_semantics<arbitrary>], iteration_bounds = array<i64: 1>, scalar_prefetch = 0 : i64, scratch_operands = 0 : i64, tpu.core_type = #tpu.core_type<tc>, window_params = [{pipeline_mode = #tpu.pipeline_mode<synchronous>, transform_indices = @transform_0, window_bounds = array<i64: 128, 128>}, {pipeline_mode = #tpu.pipeline_mode<synchronous>, transform_indices = @transform_1, window_bounds = array<i64: 128, 128>}, {pipeline_mode = #tpu.pipeline_mode<synchronous>, transform_indices = @transform_2, window_bounds = array<i64: 1, 128>}, {pipeline_mode = #tpu.pipeline_mode<synchronous>, transform_indices = @transform_3, window_bounds = array<i64: 1, 128>}, {pipeline_mode = #tpu.pipeline_mode<synchronous>, transform_indices = @transform_4, window_bounds = array<i64: 128, 128>}]} {
    %c0 = arith.constant 0 : index
    %c0_0 = arith.constant 0 : index
    %0 = vector.load %arg1[%c0, %c0_0] : memref<128x128xbf16, #tpu.memory_space<vmem>>, vector<128x128xbf16>
    %c0_1 = arith.constant 0 : index
    %c0_2 = arith.constant 0 : index
    %1 = vector.load %arg2[%c0_1, %c0_2] : memref<128x128xbf16, #tpu.memory_space<vmem>>, vector<128x128xbf16>
    %cst = arith.constant dense<0.000000e+00> : vector<128x128xf32>
    %2 = tpu.matmul %0, %1, %cst {dimension_numbers = #tpu.dot_dimension_numbers<[1], [0], [0], [1], [0, 0, 1, 1], [], []>} : vector<128x128xbf16>, vector<128x128xbf16>, vector<128x128xf32> -> vector<128x128xf32>
    %cst_3 = arith.constant dense<0.000000e+00> : vector<128xf32>
    %3 = vector.multi_reduction <add>, %2, %cst_3 [0] : vector<128x128xf32> to vector<128xf32>
    %4 = vector.shape_cast %3 : vector<128xf32> to vector<1x128xf32>
    %cst_4 = arith.constant 7.812500e-03 : f32
    %5 = vector.broadcast %cst_4 : f32 to vector<1x128xf32>
    %6 = arith.mulf %4, %5 : vector<1x128xf32>
    %7 = tpu.iota {dimensions = array<i32: 0>} : vector<128x128xi32>
    %c128_i32 = arith.constant 128 : i32
    %8 = vector.broadcast %c128_i32 : i32 to vector<128x128xi32>
    %9 = arith.cmpi slt, %7, %8 : vector<128x128xi32>
    %10 = vector.broadcast %6 : vector<1x128xf32> to vector<128x128xf32>
    %11 = arith.subf %2, %10 : vector<128x128xf32>
    %cst_5 = arith.constant 0.000000e+00 : f32
    %12 = vector.broadcast %cst_5 : f32 to vector<128x128xf32>
    %13 = arith.select %9, %11, %12 : vector<128x128xi1>, vector<128x128xf32>
    %14 = arith.mulf %13, %13 : vector<128x128xf32>
    %cst_6 = arith.constant dense<0.000000e+00> : vector<128xf32>
    %15 = vector.multi_reduction <add>, %14, %cst_6 [0] : vector<128x128xf32> to vector<128xf32>
    %16 = vector.shape_cast %15 : vector<128xf32> to vector<1x128xf32>
    %cst_7 = arith.constant 7.812500e-03 : f32
    %17 = vector.broadcast %cst_7 : f32 to vector<1x128xf32>
    %18 = arith.mulf %16, %17 : vector<1x128xf32>
    %c0_8 = arith.constant 0 : index
    %c0_9 = arith.constant 0 : index
    %19 = vector.load %arg3[%c0_8, %c0_9] : memref<1x128xf32, #tpu.memory_space<vmem>>, vector<1x128xf32>
    %cst_10 = arith.constant 9.99999974E-6 : f32
    %20 = vector.broadcast %cst_10 : f32 to vector<1x128xf32>
    %21 = arith.addf %18, %20 : vector<1x128xf32>
    %22 = math.rsqrt %21 : vector<1x128xf32>
    %23 = arith.mulf %19, %22 : vector<1x128xf32>
    %c0_11 = arith.constant 0 : index
    %c0_12 = arith.constant 0 : index
    %24 = vector.load %arg4[%c0_11, %c0_12] : memref<1x128xf32, #tpu.memory_space<vmem>>, vector<1x128xf32>
    %25 = arith.mulf %6, %23 : vector<1x128xf32>
    %26 = arith.subf %24, %25 : vector<1x128xf32>
    %27 = vector.broadcast %23 : vector<1x128xf32> to vector<128x128xf32>
    %28 = arith.mulf %2, %27 : vector<128x128xf32>
    %29 = vector.broadcast %26 : vector<1x128xf32> to vector<128x128xf32>
    %30 = arith.addf %28, %29 : vector<128x128xf32>
    %cst_13 = arith.constant 0.000000e+00 : f32
    %31 = vector.broadcast %cst_13 : f32 to vector<128x128xf32>
    %32 = arith.cmpf ogt, %30, %31 : vector<128x128xf32>
    %cst_14 = arith.constant 2.000000e-01 : f32
    %33 = vector.broadcast %cst_14 : f32 to vector<128x128xf32>
    %34 = arith.mulf %33, %30 : vector<128x128xf32>
    %35 = arith.select %32, %30, %34 : vector<128x128xi1>, vector<128x128xf32>
    %36 = arith.truncf %35 : vector<128x128xf32> to vector<128x128xbf16>
    %c0_15 = arith.constant 0 : index
    %c0_16 = arith.constant 0 : index
    %37 = vector.load %arg5[%c0_15, %c0_16] : memref<128x128xbf16, #tpu.memory_space<vmem>>, vector<128x128xbf16>
    tpu.vector_store %arg5[%c0_15, %c0_16], %36 {strides = array<i32>} : memref<128x128xbf16, #tpu.memory_space<vmem>>, vector<128x128xbf16>,
    return
  }
  func.func @transform_0(%arg0: i32) -> (i32, i32) {
    %c0_i32 = arith.constant 0 : i32
    %c0_i32_0 = arith.constant 0 : i32
    %c0_i32_1 = arith.constant 0 : i32
    return %c0_i32, %c0_i32_0 : i32, i32
  }
  func.func @transform_1(%arg0: i32) -> (i32, i32) {
    %c0_i32 = arith.constant 0 : i32
    %c0_i32_0 = arith.constant 0 : i32
    %c0_i32_1 = arith.constant 0 : i32
    return %c0_i32, %c0_i32_0 : i32, i32
  }
  func.func @transform_2(%arg0: i32) -> (i32, i32) {
    %c0_i32 = arith.constant 0 : i32
    %c0_i32_0 = arith.constant 0 : i32
    %c0_i32_1 = arith.constant 0 : i32
    return %c0_i32, %c0_i32_0 : i32, i32
  }
  func.func @transform_3(%arg0: i32) -> (i32, i32) {
    %c0_i32 = arith.constant 0 : i32
    %c0_i32_0 = arith.constant 0 : i32
    %c0_i32_1 = arith.constant 0 : i32
    return %c0_i32, %c0_i32_0 : i32, i32
  }
  func.func @transform_4(%arg0: i32) -> (i32, i32) {
    %c0_i32 = arith.constant 0 : i32
    %c0_i32_0 = arith.constant 0 : i32
    %c0_i32_1 = arith.constant 0 : i32
    return %c0_i32, %c0_i32_0 : i32, i32
  }
}

module attributes {stable_mosaic.version = 11 : i64} {
  func.func @fused_conv_bn_lrelu_kernel(%arg0: i32, %arg1: memref<32x256xbf16, #tpu.memory_space<vmem>>, %arg2: memref<256x128xbf16, #tpu.memory_space<vmem>>, %arg3: memref<1x128xf32, #tpu.memory_space<vmem>>, %arg4: memref<1x128xf32, #tpu.memory_space<vmem>>, %arg5: memref<32x128xbf16, #tpu.memory_space<vmem>>) attributes {dimension_semantics = [#tpu.dimension_semantics<arbitrary>], iteration_bounds = array<i64: 1>, scalar_prefetch = 0 : i64, scratch_operands = 0 : i64, tpu.core_type = #tpu.core_type<tc>, window_params = [{pipeline_mode = #tpu.pipeline_mode<synchronous>, transform_indices = @transform_0, window_bounds = array<i64: 32, 256>}, {pipeline_mode = #tpu.pipeline_mode<synchronous>, transform_indices = @transform_1, window_bounds = array<i64: 256, 128>}, {pipeline_mode = #tpu.pipeline_mode<synchronous>, transform_indices = @transform_2, window_bounds = array<i64: 1, 128>}, {pipeline_mode = #tpu.pipeline_mode<synchronous>, transform_indices = @transform_3, window_bounds = array<i64: 1, 128>}, {pipeline_mode = #tpu.pipeline_mode<synchronous>, transform_indices = @transform_4, window_bounds = array<i64: 32, 128>}]} {
    %c0 = arith.constant 0 : index
    %c0_0 = arith.constant 0 : index
    %0 = vector.load %arg1[%c0, %c0_0] : memref<32x256xbf16, #tpu.memory_space<vmem>>, vector<32x256xbf16>
    %c0_1 = arith.constant 0 : index
    %c0_2 = arith.constant 0 : index
    %1 = vector.load %arg2[%c0_1, %c0_2] : memref<256x128xbf16, #tpu.memory_space<vmem>>, vector<256x128xbf16>
    %cst = arith.constant dense<0.000000e+00> : vector<32x128xf32>
    %2 = tpu.matmul %0, %1, %cst {dimension_numbers = #tpu.dot_dimension_numbers<[1], [0], [0], [1], [0, 0, 1, 1], [], []>} : vector<32x256xbf16>, vector<256x128xbf16>, vector<32x128xf32> -> vector<32x128xf32>
    %cst_3 = arith.constant dense<0.000000e+00> : vector<128xf32>
    %3 = vector.multi_reduction <add>, %2, %cst_3 [0] : vector<32x128xf32> to vector<128xf32>
    %4 = vector.shape_cast %3 : vector<128xf32> to vector<1x128xf32>
    %cst_4 = arith.constant 3.125000e-02 : f32
    %5 = vector.broadcast %cst_4 : f32 to vector<1x128xf32>
    %6 = arith.mulf %4, %5 : vector<1x128xf32>
    %7 = tpu.iota {dimensions = array<i32: 0>} : vector<32x128xi32>
    %c32_i32 = arith.constant 32 : i32
    %8 = vector.broadcast %c32_i32 : i32 to vector<32x128xi32>
    %9 = arith.cmpi slt, %7, %8 : vector<32x128xi32>
    %10 = vector.broadcast %6 : vector<1x128xf32> to vector<32x128xf32>
    %11 = arith.subf %2, %10 : vector<32x128xf32>
    %cst_5 = arith.constant 0.000000e+00 : f32
    %12 = vector.broadcast %cst_5 : f32 to vector<32x128xf32>
    %13 = arith.select %9, %11, %12 : vector<32x128xi1>, vector<32x128xf32>
    %14 = arith.mulf %13, %13 : vector<32x128xf32>
    %cst_6 = arith.constant dense<0.000000e+00> : vector<128xf32>
    %15 = vector.multi_reduction <add>, %14, %cst_6 [0] : vector<32x128xf32> to vector<128xf32>
    %16 = vector.shape_cast %15 : vector<128xf32> to vector<1x128xf32>
    %cst_7 = arith.constant 3.125000e-02 : f32
    %17 = vector.broadcast %cst_7 : f32 to vector<1x128xf32>
    %18 = arith.mulf %16, %17 : vector<1x128xf32>
    %c0_8 = arith.constant 0 : index
    %c0_9 = arith.constant 0 : index
    %19 = vector.load %arg3[%c0_8, %c0_9] : memref<1x128xf32, #tpu.memory_space<vmem>>, vector<1x128xf32>
    %cst_10 = arith.constant 9.99999974E-6 : f32
    %20 = vector.broadcast %cst_10 : f32 to vector<1x128xf32>
    %21 = arith.addf %18, %20 : vector<1x128xf32>
    %22 = math.rsqrt %21 : vector<1x128xf32>
    %23 = arith.mulf %19, %22 : vector<1x128xf32>
    %c0_11 = arith.constant 0 : index
    %c0_12 = arith.constant 0 : index
    %24 = vector.load %arg4[%c0_11, %c0_12] : memref<1x128xf32, #tpu.memory_space<vmem>>, vector<1x128xf32>
    %25 = arith.mulf %6, %23 : vector<1x128xf32>
    %26 = arith.subf %24, %25 : vector<1x128xf32>
    %27 = vector.broadcast %23 : vector<1x128xf32> to vector<32x128xf32>
    %28 = arith.mulf %2, %27 : vector<32x128xf32>
    %29 = vector.broadcast %26 : vector<1x128xf32> to vector<32x128xf32>
    %30 = arith.addf %28, %29 : vector<32x128xf32>
    %cst_13 = arith.constant 0.000000e+00 : f32
    %31 = vector.broadcast %cst_13 : f32 to vector<32x128xf32>
    %32 = arith.cmpf ogt, %30, %31 : vector<32x128xf32>
    %cst_14 = arith.constant 2.000000e-01 : f32
    %33 = vector.broadcast %cst_14 : f32 to vector<32x128xf32>
    %34 = arith.mulf %33, %30 : vector<32x128xf32>
    %35 = arith.select %32, %30, %34 : vector<32x128xi1>, vector<32x128xf32>
    %36 = arith.truncf %35 : vector<32x128xf32> to vector<32x128xbf16>
    %c0_15 = arith.constant 0 : index
    %c0_16 = arith.constant 0 : index
    %37 = vector.load %arg5[%c0_15, %c0_16] : memref<32x128xbf16, #tpu.memory_space<vmem>>, vector<32x128xbf16>
    tpu.vector_store %arg5[%c0_15, %c0_16], %36 {strides = array<i32>} : memref<32x128xbf16, #tpu.memory_space<vmem>>, vector<32x128xbf16>,
    return
  }
  func.func @transform_0(%arg0: i32) -> (i32, i32) {
    %c0_i32 = arith.constant 0 : i32
    %c0_i32_0 = arith.constant 0 : i32
    %c0_i32_1 = arith.constant 0 : i32
    return %c0_i32, %c0_i32_0 : i32, i32
  }
  func.func @transform_1(%arg0: i32) -> (i32, i32) {
    %c0_i32 = arith.constant 0 : i32
    %c0_i32_0 = arith.constant 0 : i32
    %c0_i32_1 = arith.constant 0 : i32
    return %c0_i32, %c0_i32_0 : i32, i32
  }
  func.func @transform_2(%arg0: i32) -> (i32, i32) {
    %c0_i32 = arith.constant 0 : i32
    %c0_i32_0 = arith.constant 0 : i32
    %c0_i32_1 = arith.constant 0 : i32
    return %c0_i32, %c0_i32_0 : i32, i32
  }
  func.func @transform_3(%arg0: i32) -> (i32, i32) {
    %c0_i32 = arith.constant 0 : i32
    %c0_i32_0 = arith.constant 0 : i32
    %c0_i32_1 = arith.constant 0 : i32
    return %c0_i32, %c0_i32_0 : i32, i32
  }
  func.func @transform_4(%arg0: i32) -> (i32, i32) {
    %c0_i32 = arith.constant 0 : i32
    %c0_i32_0 = arith.constant 0 : i32
    %c0_i32_1 = arith.constant 0 : i32
    return %c0_i32, %c0_i32_0 : i32, i32
  }
}

module attributes {stable_mosaic.version = 11 : i64} {
  func.func @matmul_bias_act_kernel(%arg0: i32, %arg1: memref<8x512xbf16, #tpu.memory_space<vmem>>, %arg2: memref<512x128xbf16, #tpu.memory_space<vmem>>, %arg3: memref<1x128xf32, #tpu.memory_space<vmem>>, %arg4: memref<8x128xf32, #tpu.memory_space<vmem>>) attributes {dimension_semantics = [#tpu.dimension_semantics<parallel>], iteration_bounds = array<i64: 1>, scalar_prefetch = 0 : i64, scratch_operands = 0 : i64, tpu.core_type = #tpu.core_type<tc>, window_params = [{transform_indices = @transform_0, window_bounds = array<i64: 8, 512>}, {pipeline_mode = #tpu.pipeline_mode<synchronous>, transform_indices = @transform_1, window_bounds = array<i64: 512, 128>}, {pipeline_mode = #tpu.pipeline_mode<synchronous>, transform_indices = @transform_2, window_bounds = array<i64: 1, 128>}, {transform_indices = @transform_3, window_bounds = array<i64: 8, 128>}]} {
    %c0 = arith.constant 0 : index
    %c0_0 = arith.constant 0 : index
    %0 = vector.load %arg1[%c0, %c0_0] : memref<8x512xbf16, #tpu.memory_space<vmem>>, vector<8x512xbf16>
    %c0_1 = arith.constant 0 : index
    %c0_2 = arith.constant 0 : index
    %1 = vector.load %arg2[%c0_1, %c0_2] : memref<512x128xbf16, #tpu.memory_space<vmem>>, vector<512x128xbf16>
    %cst = arith.constant dense<0.000000e+00> : vector<8x128xf32>
    %2 = tpu.matmul %0, %1, %cst {dimension_numbers = #tpu.dot_dimension_numbers<[1], [0], [0], [1], [0, 0, 1, 1], [], []>} : vector<8x512xbf16>, vector<512x128xbf16>, vector<8x128xf32> -> vector<8x128xf32>
    %c0_3 = arith.constant 0 : index
    %c0_4 = arith.constant 0 : index
    %3 = vector.load %arg3[%c0_3, %c0_4] : memref<1x128xf32, #tpu.memory_space<vmem>>, vector<1x128xf32>
    %4 = vector.broadcast %3 : vector<1x128xf32> to vector<8x128xf32>
    %5 = arith.addf %2, %4 : vector<8x128xf32>
    %6 = arith.negf %5 : vector<8x128xf32>
    %7 = math.exp %6 : vector<8x128xf32>
    %cst_5 = arith.constant 1.000000e+00 : f32
    %8 = vector.broadcast %cst_5 : f32 to vector<8x128xf32>
    %9 = arith.addf %8, %7 : vector<8x128xf32>
    %10 = arith.divf %8, %9 : vector<8x128xf32>
    %c0_6 = arith.constant 0 : index
    %c0_7 = arith.constant 0 : index
    %11 = vector.load %arg4[%c0_6, %c0_7] : memref<8x128xf32, #tpu.memory_space<vmem>>, vector<8x128xf32>
    tpu.vector_store %arg4[%c0_6, %c0_7], %10 {strides = array<i32>} : memref<8x128xf32, #tpu.memory_space<vmem>>, vector<8x128xf32>,
    return
  }
  func.func @transform_0(%arg0: i32) -> (i32, i32) {
    %c0_i32 = arith.constant 0 : i32
    %c0_i32_0 = arith.constant 0 : i32
    return %arg0, %c0_i32 : i32, i32
  }
  func.func @transform_1(%arg0: i32) -> (i32, i32) {
    %c0_i32 = arith.constant 0 : i32
    %c0_i32_0 = arith.constant 0 : i32
    %c0_i32_1 = arith.constant 0 : i32
    return %c0_i32, %c0_i32_0 : i32, i32
  }
  func.func @transform_2(%arg0: i32) -> (i32, i32) {
    %c0_i32 = arith.constant 0 : i32
    %c0_i32_0 = arith.constant 0 : i32
    %c0_i32_1 = arith.constant 0 : i32
    return %c0_i32, %c0_i32_0 : i32, i32
  }
  func.func @transform_3(%arg0: i32) -> (i32, i32) {
    %c0_i32 = arith.constant 0 : i32
    %c0_i32_0 = arith.constant 0 : i32
    return %arg0, %c0_i32 : i32, i32
  }
}

</mosaic_0001>

<llo_original>
// kernel: discriminator_forward.5
$region0: #{discriminator_forward.5}
  #allocation0 [shape = 'u32[]', space=smem, size = 0x4, offset = 0x4, fixed_abs, tag = 'smem constant byte address 0x4 - core index']
  #allocation1 [shape = 'u32[144,128]{1,0:T(1,128)}', space=vmem, size = 0x12000, scoped, tag = 'internal scratch']
  %s0 = inlined_call_operand.vmem [shape: bf16[2048,48], index: 0, kind: input, shape index: {}]
  %s1 = inlined_call_operand.vmem [shape: bf16[48,128], index: 1, kind: input, shape index: {}]
  %s2 = inlined_call_operand.vmem [shape: f32[1,128], index: 2, kind: input, shape index: {}]
  %s3 = inlined_call_operand.vmem [shape: bf16[2048,128], index: 3, kind: output, shape index: {}]
  %s4 = sld [smem:[#allocation0]]
  $region45: #{discriminator_forward.5} parent=0
    _
  %s6 = ssub.s32 1, %s4
  %s7 = scalar_select 0, %s6, %s4
  loop: start=0, step=1, limit=6
  $region2: #{discriminator_forward.5} parent=0 // loop_pre_header
    _
  $region3: #{discriminator_forward.5} parent=0 // loop_header
    %s9 = sphi 0, %s13
    %p10 = scmp.ge.s32.totalorder %s9, 6
    %s19 = sphi 0, %s21
    %s22 = sphi 0, %s19
    %s23 = sphi 0, %s22
    %s39 = sphi 0, %s23
    %s43 = sphi 0, %s43
    %s45 = sphi 0, %s43
    %s46 = sphi 0, %s45
    %s60 = sphi 0, %s46
    %s64 = sphi 0, %s64
    %s66 = sphi 0, %s64
    %s67 = sphi 0, %s66
    %s81 = sphi 0, %s67
    %s87 = sphi 0, %s89
    %s90 = sphi 0, %s87
    %s91 = sphi 0, %s90
    %s107 = sphi 0, %s91
  $region4: #{discriminator_forward.5} parent=0 // loop_header_branch
    %12 = sbr.rel (%p10) target = $region8
  $region5: #{discriminator_forward.5} parent=0 // loop_body
    %s14 = ssub.s32 %s9, 1
    %s15 = ssub.s32 %s9, 2
    %s16 = sadd.s32 %s9, 1
    %s17 = ssub.s32 %s9, %s16
    %p18 = scmp.eq.s32.totalorder %s17, 0
    %s20 = sadd.s32 %s19, 1
    %s21 = scalar_select %p18, %s19, %s20
    %p24 = pneg %p18
    %p25 = scmp.eq.s32.totalorder %s9, 3
    %p26 = por %p24, %p25
    %p27 = scmp.ne.s32.totalorder %s19, %s22
    %p28 = scmp.eq.s32.totalorder %s9, 0
    %p29 = por %p27, %p28
    %p30 = scmp.ne.s32.totalorder %s19, %s22
    %p31 = scmp.eq.s32.totalorder %s14, 3
    %p32 = por %p30, %p31
    %p33 = scmp.ne.s32.totalorder %s22, %s23
    %p34 = scmp.eq.s32.totalorder %s14, 0
    %p35 = por %p33, %p34
    %p36 = scmp.ne.s32.totalorder %s22, %s23
    %p37 = scmp.eq.s32.totalorder %s15, 3
    %p38 = por %p36, %p37
    %p40 = scmp.ne.s32.totalorder %s23, %s39
    %p41 = scmp.eq.s32.totalorder %s15, 0
    %p42 = por %p40, %p41
    %s44 = sadd.s32 %s43, 1
    %p47 = scmp.eq.s32.totalorder %s9, 3
    %p48 = scmp.ne.s32.totalorder %s43, %s45
    %p49 = scmp.eq.s32.totalorder %s9, 0
    %p50 = por %p48, %p49
    %p51 = scmp.ne.s32.totalorder %s43, %s45
    %p52 = scmp.eq.s32.totalorder %s14, 3
    %p53 = por %p51, %p52
    %p54 = scmp.ne.s32.totalorder %s45, %s46
    %p55 = scmp.eq.s32.totalorder %s14, 0
    %p56 = por %p54, %p55
    %p57 = scmp.ne.s32.totalorder %s45, %s46
    %p58 = scmp.eq.s32.totalorder %s15, 3
    %p59 = por %p57, %p58
    %p61 = scmp.ne.s32.totalorder %s46, %s60
    %p62 = scmp.eq.s32.totalorder %s15, 0
    %p63 = por %p61, %p62
    %s65 = sadd.s32 %s64, 1
    %p68 = scmp.eq.s32.totalorder %s9, 3
    %p69 = scmp.ne.s32.totalorder %s64, %s66
    %p70 = scmp.eq.s32.totalorder %s9, 0
    %p71 = por %p69, %p70
    %p72 = scmp.ne.s32.totalorder %s64, %s66
    %p73 = scmp.eq.s32.totalorder %s14, 3
    %p74 = por %p72, %p73
    %p75 = scmp.ne.s32.totalorder %s66, %s67
    %p76 = scmp.eq.s32.totalorder %s14, 0
    %p77 = por %p75, %p76
    %p78 = scmp.ne.s32.totalorder %s66, %s67
    %p79 = scmp.eq.s32.totalorder %s15, 3
    %p80 = por %p78, %p79
    %p82 = scmp.ne.s32.totalorder %s67, %s81
    %p83 = scmp.eq.s32.totalorder %s15, 0
    %p84 = por %p82, %p83
    %s85 = ssub.s32 %s9, %s16
    %p86 = scmp.eq.s32.totalorder %s85, 0
    %s88 = sadd.s32 %s87, 1
    %s89 = scalar_select %p86, %s87, %s88
    %p92 = pneg %p86
    %p93 = scmp.eq.s32.totalorder %s9, 3
    %p94 = por %p92, %p93
    %p95 = scmp.ne.s32.totalorder %s87, %s90
    %p96 = scmp.eq.s32.totalorder %s9, 0
    %p97 = por %p95, %p96
    %p98 = scmp.ne.s32.totalorder %s87, %s90
    %p99 = scmp.eq.s32.totalorder %s14, 3
    %p100 = por %p98, %p99
    %p101 = scmp.ne.s32.totalorder %s90, %s91
    %p102 = scmp.eq.s32.totalorder %s14, 0
    %p103 = por %p101, %p102
    %p104 = scmp.ne.s32.totalorder %s90, %s91
    %p105 = scmp.eq.s32.totalorder %s15, 3
    %p106 = por %p104, %p105
    %p108 = scmp.ne.s32.totalorder %s91, %s107
    %p109 = scmp.eq.s32.totalorder %s15, 0
    %p110 = por %p108, %p109
    %p111 = scmp.le.s32.totalorder 1, %s9
    %p112 = scmp.lt.s32.totalorder %s9, 5
    %p113 = pnand %p111, %p112
    %p114 = pneg %p113
    // Predicated region
    $region9: #{discriminator_forward.5} parent=5 // pred_check
      _
    $region10: #{discriminator_forward.5} parent=5 // pred_check_branch
      %116 = sbr.rel (%p113) target = $region12
    $region11: #{discriminator_forward.5} parent=5 // pred_region
      %s117 = ssub.s32 %s9, 1
      // Predicated region
      $region13: #{discriminator_forward.5} parent=11 // pred_check
        %p118 = pneg %p56
      $region14: #{discriminator_forward.5} parent=11 // pred_check_branch
        %120 = sbr.rel (%p118) target = $region16
      $region15: #{discriminator_forward.5} parent=11 // pred_region
        _
      $region16: #{discriminator_forward.5} parent=11 // pred_fallthru
        _
      // Predicated region
      $region17: #{discriminator_forward.5} parent=11 // pred_check
        %p121 = pneg %p77
      $region18: #{discriminator_forward.5} parent=11 // pred_check_branch
        %123 = sbr.rel (%p121) target = $region20
      $region19: #{discriminator_forward.5} parent=11 // pred_region
        _
      $region20: #{discriminator_forward.5} parent=11 // pred_fallthru
        _
    $region12: #{discriminator_forward.5} parent=5 // pred_fallthru
      _
    %p124 = scmp.lt.s32.totalorder %s9, 4
    // Predicated region
    $region21: #{discriminator_forward.5} parent=5 // pred_check
      %p125 = pneg %p124
    $region22: #{discriminator_forward.5} parent=5 // pred_check_branch
      %127 = sbr.rel (%p125) target = $region24
    $region23: #{discriminator_forward.5} parent=5 // pred_region
      // Predicated region
      $region25: #{discriminator_forward.5} parent=23 // pred_check
        %p128 = pneg %p29
      $region26: #{discriminator_forward.5} parent=23 // pred_check_branch
        %130 = sbr.rel (%p128) target = $region28
      $region27: #{discriminator_forward.5} parent=23 // pred_region
        %s131 = smul.u32 64, %s9
        %p132 = scmp.lt.s32.totalorder %s131, 255
        %s133 = scalar_select %p132, %s131, 255
        %s134 = smul.addr %s133, 4
        %s135 = scalar_lea.vmem %s0, %s134
        %s136 = smul.u32 64, %s9
      $region28: #{discriminator_forward.5} parent=23 // pred_fallthru
        _
    $region24: #{discriminator_forward.5} parent=5 // pred_fallthru
      _
    %p137 = scmp.le.s32.totalorder 1, %s9
    %p138 = scmp.lt.s32.totalorder %s9, 5
    %p139 = pnand %p137, %p138
    %p140 = pneg %p139
    // Predicated region
    $region29: #{discriminator_forward.5} parent=5 // pred_check
      _
    $region30: #{discriminator_forward.5} parent=5 // pred_check_branch
      %142 = sbr.rel (%p139) target = $region32
    $region31: #{discriminator_forward.5} parent=5 // pred_region
      %s143 = ssub.s32 %s9, 1
      %s144 = smul.u32 64, %s14
      %p145 = scmp.lt.s32.totalorder %s144, 255
      %s146 = scalar_select %p145, %s144, 255
      %s147 = smul.addr %s146, 4
      %s148 = scalar_lea.vmem %s0, %s147
      %p149 = pneg %p35
      %p150 = pneg %p32
      %p151 = pneg %p56
      %p152 = pneg %p53
      %p153 = pneg %p77
      %p154 = pneg %p74
      %p155 = pneg %p103
      %p156 = pneg %p100
      %s157 = smul.u32 64, %s14
      %p158 = scmp.lt.s32.totalorder %s157, 255
      %s159 = scalar_select %p158, %s157, 255
      %s160 = smul.addr %s159, 4
      %s161 = scalar_lea.vmem %s3, %s160
      %s162 = smul.u32 64, %s14
      %p163 = scmp.lt.s32.totalorder %s162, 255
      %s164 = scalar_select %p163, %s162, 255
      %s165 = smul.addr %s164, 4
      %s166 = scalar_lea.vmem %s0, %s165
      %s167 = smul.u32 64, %s14
      %s168 = smul.u32 64, %s14
      %p169 = scmp.lt.s32.totalorder %s168, 255
      %s170 = scalar_select %p169, %s168, 255
      %s171 = smul.addr %s170, 4
      %s172 = scalar_lea.vmem %s3, %s171
      %s173 = smul.u32 64, %s14
      %v175 = vld [vmem:[%s166] sm:$0xf]
      %v176 = vld [vmem:[%s166 + $0x4] sm:$0xf]
      %v177 = vld [vmem:[%s166 + $0x8] sm:$0xf]
      %v178 = vld [vmem:[%s166 + $0xc] sm:$0xf]
      %v179 = vld [vmem:[%s166 + $0x10] sm:$0xf]
      %v180 = vld [vmem:[%s166 + $0x14] sm:$0xf]
      %v181 = vld [vmem:[%s166 + $0x18] sm:$0xf]
      %v182 = vld [vmem:[%s166 + $0x1c] sm:$0xf]
      %v183 = vld [vmem:[%s166 + $0x20] sm:$0xf]
      %v184 = vld [vmem:[%s166 + $0x24] sm:$0xf]
      %v185 = vld [vmem:[%s166 + $0x28] sm:$0xf]
      %v186 = vld [vmem:[%s166 + $0x2c] sm:$0xf]
      %v187 = vld [vmem:[%s166 + $0x30] sm:$0xf]
      %v188 = vld [vmem:[%s166 + $0x34] sm:$0xf]
      %v189 = vld [vmem:[%s166 + $0x38] sm:$0xf]
      %v190 = vld [vmem:[%s166 + $0x3c] sm:$0xf]
      %v191 = vld [vmem:[%s166 + $0x40] sm:$0xf]
      %v192 = vld [vmem:[%s166 + $0x44] sm:$0xf]
      %v193 = vld [vmem:[%s166 + $0x48] sm:$0xf]
      %v194 = vld [vmem:[%s166 + $0x4c] sm:$0xf]
      %v195 = vld [vmem:[%s166 + $0x50] sm:$0xf]
      %v196 = vld [vmem:[%s166 + $0x54] sm:$0xf]
      %v197 = vld [vmem:[%s166 + $0x58] sm:$0xf]
      %v198 = vld [vmem:[%s166 + $0x5c] sm:$0xf]
      %v199 = vld [vmem:[%s166 + $0x60] sm:$0xf]
      %v200 = vld [vmem:[%s166 + $0x64] sm:$0xf]
      %v201 = vld [vmem:[%s166 + $0x68] sm:$0xf]
      %v202 = vld [vmem:[%s166 + $0x6c] sm:$0xf]
      %v203 = vld [vmem:[%s166 + $0x70] sm:$0xf]
      %v204 = vld [vmem:[%s166 + $0x74] sm:$0xf]
      %v205 = vld [vmem:[%s166 + $0x78] sm:$0xf]
      %v206 = vld [vmem:[%s166 + $0x7c] sm:$0xf]
      %v207 = vld [vmem:[%s166 + $0x80] sm:$0xf]
      %v208 = vld [vmem:[%s166 + $0x84] sm:$0xf]
      %v209 = vld [vmem:[%s166 + $0x88] sm:$0xf]
      %v210 = vld [vmem:[%s166 + $0x8c] sm:$0xf]
      %v211 = vld [vmem:[%s166 + $0x90] sm:$0xf]
      %v212 = vld [vmem:[%s166 + $0x94] sm:$0xf]
      %v213 = vld [vmem:[%s166 + $0x98] sm:$0xf]
      %v214 = vld [vmem:[%s166 + $0x9c] sm:$0xf]
      %v215 = vld [vmem:[%s166 + $0xa0] sm:$0xf]
      %v216 = vld [vmem:[%s166 + $0xa4] sm:$0xf]
      %v217 = vld [vmem:[%s166 + $0xa8] sm:$0xf]
      %v218 = vld [vmem:[%s166 + $0xac] sm:$0xf]
      %v219 = vld [vmem:[%s166 + $0xb0] sm:$0xf]
      %v220 = vld [vmem:[%s166 + $0xb4] sm:$0xf]
      %v221 = vld [vmem:[%s166 + $0xb8] sm:$0xf]
      %v222 = vld [vmem:[%s166 + $0xbc] sm:$0xf]
      %v223 = vld [vmem:[%s166 + $0xc0] sm:$0xf]
      %v224 = vld [vmem:[%s166 + $0xc4] sm:$0xf]
      %v225 = vld [vmem:[%s166 + $0xc8] sm:$0xf]
      %v226 = vld [vmem:[%s166 + $0xcc] sm:$0xf]
      %v227 = vld [vmem:[%s166 + $0xd0] sm:$0xf]
      %v228 = vld [vmem:[%s166 + $0xd4] sm:$0xf]
      %v229 = vld [vmem:[%s166 + $0xd8] sm:$0xf]
      %v230 = vld [vmem:[%s166 + $0xdc] sm:$0xf]
      %v231 = vld [vmem:[%s166 + $0xe0] sm:$0xf]
      %v232 = vld [vmem:[%s166 + $0xe4] sm:$0xf]
      %v233 = vld [vmem:[%s166 + $0xe8] sm:$0xf]
      %v234 = vld [vmem:[%s166 + $0xec] sm:$0xf]
      %v235 = vld [vmem:[%s166 + $0xf0] sm:$0xf]
      %v236 = vld [vmem:[%s166 + $0xf4] sm:$0xf]
      %v237 = vld [vmem:[%s166 + $0xf8] sm:$0xf]
      %v238 = vld [vmem:[%s166 + $0xfc] sm:$0xf]
      %v239 = vld [vmem:[%s1] sm:$0xf]
      %v240 = vld [vmem:[%s1 + $0x4] sm:$0xf]
      %v241 = vld [vmem:[%s1 + $0x8] sm:$0xf]
      %v242 = vld [vmem:[%s1 + $0xc] sm:$0xf]
      %v243 = vld [vmem:[%s1 + $0x10] sm:$0xf]
      %v244 = vld [vmem:[%s1 + $0x14] sm:$0xf]
      %v245 = vld [vmem:[%s2] sm:$0x1]
      %v247 = vlaneseq
      %v248 = vshrl.u32 %v247, 7
      %v249 = vsub.s32 0, %v248
      %v250 = vrot.slane %v245, %v249
      %v316 = vunpack.c.l.b16 %v175
      %v317 = vunpack.c.l.b16 %v176
      %v318 = vunpack.c.l.b16 %v177
      %v319 = vunpack.c.l.b16 %v178
      %v320 = vunpack.c.l.b16 %v179
      %v321 = vunpack.c.l.b16 %v180
      %v322 = vunpack.c.l.b16 %v181
      %v323 = vunpack.c.l.b16 %v182
      %v324 = vunpack.c.l.b16 %v183
      %v325 = vunpack.c.l.b16 %v184
      %v326 = vunpack.c.l.b16 %v185
      %v327 = vunpack.c.l.b16 %v186
      %v328 = vunpack.c.l.b16 %v187
      %v329 = vunpack.c.l.b16 %v188
      %v330 = vunpack.c.l.b16 %v189
      %v331 = vunpack.c.l.b16 %v190
      %v332 = vunpack.c.l.b16 %v191
      %v333 = vunpack.c.l.b16 %v192
      %v334 = vunpack.c.l.b16 %v193
      %v335 = vunpack.c.l.b16 %v194
      %v336 = vunpack.c.l.b16 %v195
      %v337 = vunpack.c.l.b16 %v196
      %v338 = vunpack.c.l.b16 %v197
      %v339 = vunpack.c.l.b16 %v198
      %v340 = vunpack.c.l.b16 %v199
      %v341 = vunpack.c.l.b16 %v200
      %v342 = vunpack.c.l.b16 %v201
      %v343 = vunpack.c.l.b16 %v202
      %v344 = vunpack.c.l.b16 %v203
      %v345 = vunpack.c.l.b16 %v204
      %v346 = vunpack.c.l.b16 %v205
      %v347 = vunpack.c.l.b16 %v206
      %v348 = vunpack.c.l.b16 %v207
      %v349 = vunpack.c.l.b16 %v208
      %v350 = vunpack.c.l.b16 %v209
      %v351 = vunpack.c.l.b16 %v210
      %v352 = vunpack.c.l.b16 %v211
      %v353 = vunpack.c.l.b16 %v212
      %v354 = vunpack.c.l.b16 %v213
      %v355 = vunpack.c.l.b16 %v214
      %v356 = vunpack.c.l.b16 %v215
      %v357 = vunpack.c.l.b16 %v216
      %v358 = vunpack.c.l.b16 %v217
      %v359 = vunpack.c.l.b16 %v218
      %v360 = vunpack.c.l.b16 %v219
      %v361 = vunpack.c.l.b16 %v220
      %v362 = vunpack.c.l.b16 %v221
      %v363 = vunpack.c.l.b16 %v222
      %v364 = vunpack.c.l.b16 %v223
      %v365 = vunpack.c.l.b16 %v224
      %v366 = vunpack.c.l.b16 %v225
      %v367 = vunpack.c.l.b16 %v226
      %v368 = vunpack.c.l.b16 %v227
      %v369 = vunpack.c.l.b16 %v228
      %v370 = vunpack.c.l.b16 %v229
      %v371 = vunpack.c.l.b16 %v230
      %v372 = vunpack.c.l.b16 %v231
      %v373 = vunpack.c.l.b16 %v232
      %v374 = vunpack.c.l.b16 %v233
      %v375 = vunpack.c.l.b16 %v234
      %v376 = vunpack.c.l.b16 %v235
      %v377 = vunpack.c.l.b16 %v236
      %v378 = vunpack.c.l.b16 %v237
      %v379 = vunpack.c.l.b16 %v238
      %v380 = vpack.c.b16 %v317, %v316
      %v381 = vpack.c.b16 %v319, %v318
      %v382 = vpack.c.b16 %v321, %v320
      %v383 = vpack.c.b16 %v323, %v322
      %v384 = vpack.c.b16 %v325, %v324
      %v385 = vpack.c.b16 %v327, %v326
      %v386 = vpack.c.b16 %v329, %v328
      %v387 = vpack.c.b16 %v331, %v330
      %v388 = vpack.c.b16 %v333, %v332
      %v389 = vpack.c.b16 %v335, %v334
      %v390 = vpack.c.b16 %v337, %v336
      %v391 = vpack.c.b16 %v339, %v338
      %v392 = vpack.c.b16 %v341, %v340
      %v393 = vpack.c.b16 %v343, %v342
      %v394 = vpack.c.b16 %v345, %v344
      %v395 = vpack.c.b16 %v347, %v346
      %v396 = vpack.c.b16 %v349, %v348
      %v397 = vpack.c.b16 %v351, %v350
      %v398 = vpack.c.b16 %v353, %v352
      %v399 = vpack.c.b16 %v355, %v354
      %v400 = vpack.c.b16 %v357, %v356
      %v401 = vpack.c.b16 %v359, %v358
      %v402 = vpack.c.b16 %v361, %v360
      %v403 = vpack.c.b16 %v363, %v362
      %v404 = vpack.c.b16 %v365, %v364
      %v405 = vpack.c.b16 %v367, %v366
      %v406 = vpack.c.b16 %v369, %v368
      %v407 = vpack.c.b16 %v371, %v370
      %v408 = vpack.c.b16 %v373, %v372
      %v409 = vpack.c.b16 %v375, %v374
      %v410 = vpack.c.b16 %v377, %v376
      %v411 = vpack.c.b16 %v379, %v378
      %v418 = vunpack.c.l.b16 %v239
      %v419 = vunpack.c.l.b16 %v240
      %v420 = vunpack.c.l.b16 %v241
      %v421 = vunpack.c.l.b16 %v242
      %v422 = vunpack.c.l.b16 %v243
      %v423 = vunpack.c.l.b16 %v244
      %v424 = vpack.c.b16 %v419, %v418
      %v425 = vpack.c.b16 %v421, %v420
      %v426 = vpack.c.b16 %v423, %v422
      %vm430 = vcmask 392192
      %v432 = vsel %vm430, %v380, 0
      %v435 = vsel %vm430, %v381, 0
      %v438 = vsel %vm430, %v382, 0
      %v441 = vsel %vm430, %v383, 0
      %v444 = vsel %vm430, %v384, 0
      %v447 = vsel %vm430, %v385, 0
      %v450 = vsel %vm430, %v386, 0
      %v453 = vsel %vm430, %v387, 0
      %v456 = vsel %vm430, %v388, 0
      %v459 = vsel %vm430, %v389, 0
      %v462 = vsel %vm430, %v390, 0
      %v465 = vsel %vm430, %v391, 0
      %v468 = vsel %vm430, %v392, 0
      %v471 = vsel %vm430, %v393, 0
      %v474 = vsel %vm430, %v394, 0
      %v477 = vsel %vm430, %v395, 0
      %v480 = vsel %vm430, %v396, 0
      %v483 = vsel %vm430, %v397, 0
      %v486 = vsel %vm430, %v398, 0
      %v489 = vsel %vm430, %v399, 0
      %v492 = vsel %vm430, %v400, 0
      %v495 = vsel %vm430, %v401, 0
      %v498 = vsel %vm430, %v402, 0
      %v501 = vsel %vm430, %v403, 0
      %v504 = vsel %vm430, %v404, 0
      %v507 = vsel %vm430, %v405, 0
      %v510 = vsel %vm430, %v406, 0
      %v513 = vsel %vm430, %v407, 0
      %v516 = vsel %vm430, %v408, 0
      %v519 = vsel %vm430, %v409, 0
      %v522 = vsel %vm430, %v410, 0
      %v525 = vsel %vm430, %v411, 0
      %527 = vmatprep.subr.bf16.mxu0 0
      %528 = vmatpush1.bf16.msra.mxu0 %v424
      %529 = vmatprep.subr.bf16.mxu0 0
      %530 = vmatpush1.bf16.msra.mxu0 %v425
      %531 = vmatprep.subr.bf16.mxu0 0
      %532 = vmatpush1.bf16.msra.mxu0 %v426
      %533 = vmatprep.subr.bf16.mxu0 0
      %534 = vmatpush1.bf16.msra.mxu0 0
      %535 = vmatprep.subr.bf16.mxu0 0
      %536 = vmatpush1.bf16.msra.mxu0 0
      %537 = vmatprep.subr.bf16.mxu0 0
      %538 = vmatpush1.bf16.msra.mxu0 0
      %539 = vmatprep.subr.bf16.mxu0 0
      %540 = vmatpush1.bf16.msra.mxu0 0
      %541 = vmatprep.subr.bf16.mxu0 0
      %542 = vmatpush1.bf16.msra.mxu0 0
      %543 = vmatprep.subr.bf16.mxu0 0
      %544 = vmatpush1.bf16.msra.mxu0 0
      %545 = vmatprep.subr.bf16.mxu0 0
      %546 = vmatpush1.bf16.msra.mxu0 0
      %547 = vmatprep.subr.bf16.mxu0 0
      %548 = vmatpush1.bf16.msra.mxu0 0
      %549 = vmatprep.subr.bf16.mxu0 0
      %550 = vmatpush1.bf16.msra.mxu0 0
      %551 = vmatprep.subr.bf16.mxu0 0
      %552 = vmatpush1.bf16.msra.mxu0 0
      %553 = vmatprep.subr.bf16.mxu0 0
      %554 = vmatpush1.bf16.msra.mxu0 0
      %555 = vmatprep.subr.bf16.mxu0 0
      %556 = vmatpush1.bf16.msra.mxu0 0
      %557 = vmatprep.subr.bf16.mxu0 0
      %558 = vmatpush1.bf16.msra.mxu0 0
      %559 = vmatprep.mubr.bf16.mxu0 0
      %560 = vmatmul.mubr.bf16.gmra.mrb[0].mxu0 %v432
      %v561 = vpop.f32.mrb[0].mxu0
      %v562 = vadd.f32 %v250, %v561
      %v563 = vpop.f32.mrb[0].mxu0
      %v564 = vpop.f32.mrb[0].mxu0
      %v565 = vadd.f32 %v250, %v564
      %v566 = vpop.f32.mrb[0].mxu0
      %567 = vmatprep.mubr.bf16.mxu0 0
      %568 = vmatmul.mubr.bf16.gmra.mrb[0].mxu0 %v435
      %v569 = vpop.f32.mrb[0].mxu0
      %v570 = vadd.f32 %v250, %v569
      %v571 = vpop.f32.mrb[0].mxu0
      %v572 = vpop.f32.mrb[0].mxu0
      %v573 = vadd.f32 %v250, %v572
      %v574 = vpop.f32.mrb[0].mxu0
      %575 = vmatprep.mubr.bf16.mxu0 0
      %576 = vmatmul.mubr.bf16.gmra.mrb[0].mxu0 %v438
      %v577 = vpop.f32.mrb[0].mxu0
      %v578 = vadd.f32 %v250, %v577
      %v579 = vpop.f32.mrb[0].mxu0
      %v580 = vpop.f32.mrb[0].mxu0
      %v581 = vadd.f32 %v250, %v580
      %v582 = vpop.f32.mrb[0].mxu0
      %583 = vmatprep.mubr.bf16.mxu0 0
      %584 = vmatmul.mubr.bf16.gmra.mrb[0].mxu0 %v441
      %v585 = vpop.f32.mrb[0].mxu0
      %v586 = vadd.f32 %v250, %v585
      %v587 = vpop.f32.mrb[0].mxu0
      %v588 = vpop.f32.mrb[0].mxu0
      %v589 = vadd.f32 %v250, %v588
      %v590 = vpop.f32.mrb[0].mxu0
      %591 = vmatprep.mubr.bf16.mxu0 0
      %592 = vmatmul.mubr.bf16.gmra.mrb[0].mxu0 %v444
      %v593 = vpop.f32.mrb[0].mxu0
      %v594 = vadd.f32 %v250, %v593
      %v595 = vpop.f32.mrb[0].mxu0
      %v596 = vpop.f32.mrb[0].mxu0
      %v597 = vadd.f32 %v250, %v596
      %v598 = vpop.f32.mrb[0].mxu0
      %599 = vmatprep.mubr.bf16.mxu0 0
      %600 = vmatmul.mubr.bf16.gmra.mrb[0].mxu0 %v447
      %v601 = vpop.f32.mrb[0].mxu0
      %v602 = vadd.f32 %v250, %v601
      %v603 = vpop.f32.mrb[0].mxu0
      %v604 = vpop.f32.mrb[0].mxu0
      %v605 = vadd.f32 %v250, %v604
      %v606 = vpop.f32.mrb[0].mxu0
      %607 = vmatprep.mubr.bf16.mxu0 0
      %608 = vmatmul.mubr.bf16.gmra.mrb[0].mxu0 %v450
      %v609 = vpop.f32.mrb[0].mxu0
      %v610 = vadd.f32 %v250, %v609
      %v611 = vpop.f32.mrb[0].mxu0
      %v612 = vpop.f32.mrb[0].mxu0
      %v613 = vadd.f32 %v250, %v612
      %v614 = vpop.f32.mrb[0].mxu0
      %615 = vmatprep.mubr.bf16.mxu0 0
      %616 = vmatmul.mubr.bf16.gmra.mrb[0].mxu0 %v453
      %v617 = vpop.f32.mrb[0].mxu0
      %v618 = vadd.f32 %v250, %v617
      %v619 = vpop.f32.mrb[0].mxu0
      %v620 = vpop.f32.mrb[0].mxu0
      %v621 = vadd.f32 %v250, %v620
      %v622 = vpop.f32.mrb[0].mxu0
      %623 = vmatprep.mubr.bf16.mxu0 0
      %624 = vmatmul.mubr.bf16.gmra.mrb[0].mxu0 %v456
      %v625 = vpop.f32.mrb[0].mxu0
      %v626 = vadd.f32 %v250, %v625
      %v627 = vpop.f32.mrb[0].mxu0
      %v628 = vpop.f32.mrb[0].mxu0
      %v629 = vadd.f32 %v250, %v628
      %v630 = vpop.f32.mrb[0].mxu0
      %631 = vmatprep.mubr.bf16.mxu0 0
      %632 = vmatmul.mubr.bf16.gmra.mrb[0].mxu0 %v459
      %v633 = vpop.f32.mrb[0].mxu0
      %v634 = vadd.f32 %v250, %v633
      %v635 = vpop.f32.mrb[0].mxu0
      %v636 = vpop.f32.mrb[0].mxu0
      %v637 = vadd.f32 %v250, %v636
      %v638 = vpop.f32.mrb[0].mxu0
      %639 = vmatprep.mubr.bf16.mxu0 0
      %640 = vmatmul.mubr.bf16.gmra.mrb[0].mxu0 %v462
      %v641 = vpop.f32.mrb[0].mxu0
      %v642 = vadd.f32 %v250, %v641
      %v643 = vpop.f32.mrb[0].mxu0
      %v644 = vpop.f32.mrb[0].mxu0
      %v645 = vadd.f32 %v250, %v644
      %v646 = vpop.f32.mrb[0].mxu0
      %647 = vmatprep.mubr.bf16.mxu0 0
      %648 = vmatmul.mubr.bf16.gmra.mrb[0].mxu0 %v465
      %v649 = vpop.f32.mrb[0].mxu0
      %v650 = vadd.f32 %v250, %v649
      %v651 = vpop.f32.mrb[0].mxu0
      %v652 = vpop.f32.mrb[0].mxu0
      %v653 = vadd.f32 %v250, %v652
      %v654 = vpop.f32.mrb[0].mxu0
      %655 = vmatprep.mubr.bf16.mxu0 0
      %656 = vmatmul.mubr.bf16.gmra.mrb[0].mxu0 %v468
      %v657 = vpop.f32.mrb[0].mxu0
      %v658 = vadd.f32 %v250, %v657
      %v659 = vpop.f32.mrb[0].mxu0
      %v660 = vpop.f32.mrb[0].mxu0
      %v661 = vadd.f32 %v250, %v660
      %v662 = vpop.f32.mrb[0].mxu0
      %663 = vmatprep.mubr.bf16.mxu0 0
      %664 = vmatmul.mubr.bf16.gmra.mrb[0].mxu0 %v471
      %v665 = vpop.f32.mrb[0].mxu0
      %v666 = vadd.f32 %v250, %v665
      %v667 = vpop.f32.mrb[0].mxu0
      %v668 = vpop.f32.mrb[0].mxu0
      %v669 = vadd.f32 %v250, %v668
      %v670 = vpop.f32.mrb[0].mxu0
      %671 = vmatprep.mubr.bf16.mxu0 0
      %672 = vmatmul.mubr.bf16.gmra.mrb[0].mxu0 %v474
      %v673 = vpop.f32.mrb[0].mxu0
      %v674 = vadd.f32 %v250, %v673
      %v675 = vpop.f32.mrb[0].mxu0
      %v676 = vpop.f32.mrb[0].mxu0
      %v677 = vadd.f32 %v250, %v676
      %v678 = vpop.f32.mrb[0].mxu0
      %679 = vmatprep.mubr.bf16.mxu0 0
      %680 = vmatmul.mubr.bf16.gmra.mrb[0].mxu0 %v477
      %v681 = vpop.f32.mrb[0].mxu0
      %v682 = vadd.f32 %v250, %v681
      %v683 = vpop.f32.mrb[0].mxu0
      %v684 = vpop.f32.mrb[0].mxu0
      %v685 = vadd.f32 %v250, %v684
      %v686 = vpop.f32.mrb[0].mxu0
      %687 = vmatprep.mubr.bf16.mxu0 0
      %688 = vmatmul.mubr.bf16.gmra.mrb[0].mxu0 %v480
      %v689 = vpop.f32.mrb[0].mxu0
      %v690 = vadd.f32 %v250, %v689
      %v691 = vpop.f32.mrb[0].mxu0
      %v692 = vpop.f32.mrb[0].mxu0
      %v693 = vadd.f32 %v250, %v692
      %v694 = vpop.f32.mrb[0].mxu0
      %695 = vmatprep.mubr.bf16.mxu0 0
      %696 = vmatmul.mubr.bf16.gmra.mrb[0].mxu0 %v483
      %v697 = vpop.f32.mrb[0].mxu0
      %v698 = vadd.f32 %v250, %v697
      %v699 = vpop.f32.mrb[0].mxu0
      %v700 = vpop.f32.mrb[0].mxu0
      %v701 = vadd.f32 %v250, %v700
      %v702 = vpop.f32.mrb[0].mxu0
      %703 = vmatprep.mubr.bf16.mxu0 0
      %704 = vmatmul.mubr.bf16.gmra.mrb[0].mxu0 %v486
      %v705 = vpop.f32.mrb[0].mxu0
      %v706 = vadd.f32 %v250, %v705
      %v707 = vpop.f32.mrb[0].mxu0
      %v708 = vpop.f32.mrb[0].mxu0
      %v709 = vadd.f32 %v250, %v708
      %v710 = vpop.f32.mrb[0].mxu0
      %711 = vmatprep.mubr.bf16.mxu0 0
      %712 = vmatmul.mubr.bf16.gmra.mrb[0].mxu0 %v489
      %v713 = vpop.f32.mrb[0].mxu0
      %v714 = vadd.f32 %v250, %v713
      %v715 = vpop.f32.mrb[0].mxu0
      %v716 = vpop.f32.mrb[0].mxu0
      %v717 = vadd.f32 %v250, %v716
      %v718 = vpop.f32.mrb[0].mxu0
      %719 = vmatprep.mubr.bf16.mxu0 0
      %720 = vmatmul.mubr.bf16.gmra.mrb[0].mxu0 %v492
      %v721 = vpop.f32.mrb[0].mxu0
      %v722 = vadd.f32 %v250, %v721
      %v723 = vpop.f32.mrb[0].mxu0
      %v724 = vpop.f32.mrb[0].mxu0
      %v725 = vadd.f32 %v250, %v724
      %v726 = vpop.f32.mrb[0].mxu0
      %727 = vmatprep.mubr.bf16.mxu0 0
      %728 = vmatmul.mubr.bf16.gmra.mrb[0].mxu0 %v495
      %v729 = vpop.f32.mrb[0].mxu0
      %v730 = vadd.f32 %v250, %v729
      %v731 = vpop.f32.mrb[0].mxu0
      %v732 = vpop.f32.mrb[0].mxu0
      %v733 = vadd.f32 %v250, %v732
      %v734 = vpop.f32.mrb[0].mxu0
      %735 = vmatprep.mubr.bf16.mxu0 0
      %736 = vmatmul.mubr.bf16.gmra.mrb[0].mxu0 %v498
      %v737 = vpop.f32.mrb[0].mxu0
      %v738 = vadd.f32 %v250, %v737
      %v739 = vpop.f32.mrb[0].mxu0
      %v740 = vpop.f32.mrb[0].mxu0
      %v741 = vadd.f32 %v250, %v740
      %v742 = vpop.f32.mrb[0].mxu0
      %743 = vmatprep.mubr.bf16.mxu0 0
      %744 = vmatmul.mubr.bf16.gmra.mrb[0].mxu0 %v501
      %v745 = vpop.f32.mrb[0].mxu0
      %v746 = vadd.f32 %v250, %v745
      %v747 = vpop.f32.mrb[0].mxu0
      %v748 = vpop.f32.mrb[0].mxu0
      %v749 = vadd.f32 %v250, %v748
      %v750 = vpop.f32.mrb[0].mxu0
      %751 = vmatprep.mubr.bf16.mxu0 0
      %752 = vmatmul.mubr.bf16.gmra.mrb[0].mxu0 %v504
      %v753 = vpop.f32.mrb[0].mxu0
      %v754 = vadd.f32 %v250, %v753
      %v755 = vpop.f32.mrb[0].mxu0
      %v756 = vpop.f32.mrb[0].mxu0
      %v757 = vadd.f32 %v250, %v756
      %v758 = vpop.f32.mrb[0].mxu0
      %759 = vmatprep.mubr.bf16.mxu0 0
      %760 = vmatmul.mubr.bf16.gmra.mrb[0].mxu0 %v507
      %v761 = vpop.f32.mrb[0].mxu0
      %v762 = vadd.f32 %v250, %v761
      %v763 = vpop.f32.mrb[0].mxu0
      %v764 = vpop.f32.mrb[0].mxu0
      %v765 = vadd.f32 %v250, %v764
      %v766 = vpop.f32.mrb[0].mxu0
      %767 = vmatprep.mubr.bf16.mxu0 0
      %768 = vmatmul.mubr.bf16.gmra.mrb[0].mxu0 %v510
      %v769 = vpop.f32.mrb[0].mxu0
      %v770 = vadd.f32 %v250, %v769
      %v771 = vpop.f32.mrb[0].mxu0
      %v772 = vpop.f32.mrb[0].mxu0
      %v773 = vadd.f32 %v250, %v772
      %v774 = vpop.f32.mrb[0].mxu0
      %775 = vmatprep.mubr.bf16.mxu0 0
      %776 = vmatmul.mubr.bf16.gmra.mrb[0].mxu0 %v513
      %v777 = vpop.f32.mrb[0].mxu0
      %v778 = vadd.f32 %v250, %v777
      %v779 = vpop.f32.mrb[0].mxu0
      %v780 = vpop.f32.mrb[0].mxu0
      %v781 = vadd.f32 %v250, %v780
      %v782 = vpop.f32.mrb[0].mxu0
      %783 = vmatprep.mubr.bf16.mxu0 0
      %784 = vmatmul.mubr.bf16.gmra.mrb[0].mxu0 %v516
      %v785 = vpop.f32.mrb[0].mxu0
      %v786 = vadd.f32 %v250, %v785
      %v787 = vpop.f32.mrb[0].mxu0
      %v788 = vpop.f32.mrb[0].mxu0
      %v789 = vadd.f32 %v250, %v788
      %v790 = vpop.f32.mrb[0].mxu0
      %791 = vmatprep.mubr.bf16.mxu0 0
      %792 = vmatmul.mubr.bf16.gmra.mrb[0].mxu0 %v519
      %v793 = vpop.f32.mrb[0].mxu0
      %v794 = vadd.f32 %v250, %v793
      %v795 = vpop.f32.mrb[0].mxu0
      %v796 = vpop.f32.mrb[0].mxu0
      %v797 = vadd.f32 %v250, %v796
      %v798 = vpop.f32.mrb[0].mxu0
      %799 = vmatprep.mubr.bf16.mxu0 0
      %800 = vmatmul.mubr.bf16.gmra.mrb[0].mxu0 %v522
      %v801 = vpop.f32.mrb[0].mxu0
      %v802 = vadd.f32 %v250, %v801
      %v803 = vpop.f32.mrb[0].mxu0
      %v804 = vpop.f32.mrb[0].mxu0
      %v805 = vadd.f32 %v250, %v804
      %v806 = vpop.f32.mrb[0].mxu0
      %807 = vmatprep.mubr.bf16.mxu0 0
      %808 = vmatmul.mubr.bf16.gmra.mrb[0].mxu0 %v525
      %v809 = vpop.f32.mrb[0].mxu0
      %v810 = vadd.f32 %v250, %v809
      %v811 = vpop.f32.mrb[0].mxu0
      %v812 = vpop.f32.mrb[0].mxu0
      %v813 = vadd.f32 %v250, %v812
      %v814 = vpop.f32.mrb[0].mxu0
      %815 = vdwg.mxu0
      %vm816 = vcmp.gt.f32.partialorder %v562, 0.0
      %vm817 = vcmp.gt.f32.partialorder %v565, 0.0
      %vm818 = vcmp.gt.f32.partialorder %v570, 0.0
      %vm819 = vcmp.gt.f32.partialorder %v573, 0.0
      %vm820 = vcmp.gt.f32.partialorder %v578, 0.0
      %vm821 = vcmp.gt.f32.partialorder %v581, 0.0
      %vm822 = vcmp.gt.f32.partialorder %v586, 0.0
      %vm823 = vcmp.gt.f32.partialorder %v589, 0.0
      %vm824 = vcmp.gt.f32.partialorder %v594, 0.0
      %vm825 = vcmp.gt.f32.partialorder %v597, 0.0
      %vm826 = vcmp.gt.f32.partialorder %v602, 0.0
      %vm827 = vcmp.gt.f32.partialorder %v605, 0.0
      %vm828 = vcmp.gt.f32.partialorder %v610, 0.0
      %vm829 = vcmp.gt.f32.partialorder %v613, 0.0
      %vm830 = vcmp.gt.f32.partialorder %v618, 0.0
      %vm831 = vcmp.gt.f32.partialorder %v621, 0.0
      %vm832 = vcmp.gt.f32.partialorder %v626, 0.0
      %vm833 = vcmp.gt.f32.partialorder %v629, 0.0
      %vm834 = vcmp.gt.f32.partialorder %v634, 0.0
      %vm835 = vcmp.gt.f32.partialorder %v637, 0.0
      %vm836 = vcmp.gt.f32.partialorder %v642, 0.0
      %vm837 = vcmp.gt.f32.partialorder %v645, 0.0
      %vm838 = vcmp.gt.f32.partialorder %v650, 0.0
      %vm839 = vcmp.gt.f32.partialorder %v653, 0.0
      %vm840 = vcmp.gt.f32.partialorder %v658, 0.0
      %vm841 = vcmp.gt.f32.partialorder %v661, 0.0
      %vm842 = vcmp.gt.f32.partialorder %v666, 0.0
      %vm843 = vcmp.gt.f32.partialorder %v669, 0.0
      %vm844 = vcmp.gt.f32.partialorder %v674, 0.0
      %vm845 = vcmp.gt.f32.partialorder %v677, 0.0
      %vm846 = vcmp.gt.f32.partialorder %v682, 0.0
      %vm847 = vcmp.gt.f32.partialorder %v685, 0.0
      %vm848 = vcmp.gt.f32.partialorder %v690, 0.0
      %vm849 = vcmp.gt.f32.partialorder %v693, 0.0
      %vm850 = vcmp.gt.f32.partialorder %v698, 0.0
      %vm851 = vcmp.gt.f32.partialorder %v701, 0.0
      %vm852 = vcmp.gt.f32.partialorder %v706, 0.0
      %vm853 = vcmp.gt.f32.partialorder %v709, 0.0
      %vm854 = vcmp.gt.f32.partialorder %v714, 0.0
      %vm855 = vcmp.gt.f32.partialorder %v717, 0.0
      %vm856 = vcmp.gt.f32.partialorder %v722, 0.0
      %vm857 = vcmp.gt.f32.partialorder %v725, 0.0
      %vm858 = vcmp.gt.f32.partialorder %v730, 0.0
      %vm859 = vcmp.gt.f32.partialorder %v733, 0.0
      %vm860 = vcmp.gt.f32.partialorder %v738, 0.0
      %vm861 = vcmp.gt.f32.partialorder %v741, 0.0
      %vm862 = vcmp.gt.f32.partialorder %v746, 0.0
      %vm863 = vcmp.gt.f32.partialorder %v749, 0.0
      %vm864 = vcmp.gt.f32.partialorder %v754, 0.0
      %vm865 = vcmp.gt.f32.partialorder %v757, 0.0
      %vm866 = vcmp.gt.f32.partialorder %v762, 0.0
      %vm867 = vcmp.gt.f32.partialorder %v765, 0.0
      %vm868 = vcmp.gt.f32.partialorder %v770, 0.0
      %vm869 = vcmp.gt.f32.partialorder %v773, 0.0
      %vm870 = vcmp.gt.f32.partialorder %v778, 0.0
      %vm871 = vcmp.gt.f32.partialorder %v781, 0.0
      %vm872 = vcmp.gt.f32.partialorder %v786, 0.0
      %vm873 = vcmp.gt.f32.partialorder %v789, 0.0
      %vm874 = vcmp.gt.f32.partialorder %v794, 0.0
      %vm875 = vcmp.gt.f32.partialorder %v797, 0.0
      %vm876 = vcmp.gt.f32.partialorder %v802, 0.0
      %vm877 = vcmp.gt.f32.partialorder %v805, 0.0
      %vm878 = vcmp.gt.f32.partialorder %v810, 0.0
      %vm879 = vcmp.gt.f32.partialorder %v813, 0.0
      %v880 = vmul.f32 %v562, 0.2
      %v881 = vmul.f32 %v565, 0.2
      %v882 = vmul.f32 %v570, 0.2
      %v883 = vmul.f32 %v573, 0.2
      %v884 = vmul.f32 %v578, 0.2
      %v885 = vmul.f32 %v581, 0.2
      %v886 = vmul.f32 %v586, 0.2
      %v887 = vmul.f32 %v589, 0.2
      %v888 = vmul.f32 %v594, 0.2
      %v889 = vmul.f32 %v597, 0.2
      %v890 = vmul.f32 %v602, 0.2
      %v891 = vmul.f32 %v605, 0.2
      %v892 = vmul.f32 %v610, 0.2
      %v893 = vmul.f32 %v613, 0.2
      %v894 = vmul.f32 %v618, 0.2
      %v895 = vmul.f32 %v621, 0.2
      %v896 = vmul.f32 %v626, 0.2
      %v897 = vmul.f32 %v629, 0.2
      %v898 = vmul.f32 %v634, 0.2
      %v899 = vmul.f32 %v637, 0.2
      %v900 = vmul.f32 %v642, 0.2
      %v901 = vmul.f32 %v645, 0.2
      %v902 = vmul.f32 %v650, 0.2
      %v903 = vmul.f32 %v653, 0.2
      %v904 = vmul.f32 %v658, 0.2
      %v905 = vmul.f32 %v661, 0.2
      %v906 = vmul.f32 %v666, 0.2
      %v907 = vmul.f32 %v669, 0.2
      %v908 = vmul.f32 %v674, 0.2
      %v909 = vmul.f32 %v677, 0.2
      %v910 = vmul.f32 %v682, 0.2
      %v911 = vmul.f32 %v685, 0.2
      %v912 = vmul.f32 %v690, 0.2
      %v913 = vmul.f32 %v693, 0.2
      %v914 = vmul.f32 %v698, 0.2
      %v915 = vmul.f32 %v701, 0.2
      %v916 = vmul.f32 %v706, 0.2
      %v917 = vmul.f32 %v709, 0.2
      %v918 = vmul.f32 %v714, 0.2
      %v919 = vmul.f32 %v717, 0.2
      %v920 = vmul.f32 %v722, 0.2
      %v921 = vmul.f32 %v725, 0.2
      %v922 = vmul.f32 %v730, 0.2
      %v923 = vmul.f32 %v733, 0.2
      %v924 = vmul.f32 %v738, 0.2
      %v925 = vmul.f32 %v741, 0.2
      %v926 = vmul.f32 %v746, 0.2
      %v927 = vmul.f32 %v749, 0.2
      %v928 = vmul.f32 %v754, 0.2
      %v929 = vmul.f32 %v757, 0.2
      %v930 = vmul.f32 %v762, 0.2
      %v931 = vmul.f32 %v765, 0.2
      %v932 = vmul.f32 %v770, 0.2
      %v933 = vmul.f32 %v773, 0.2
      %v934 = vmul.f32 %v778, 0.2
      %v935 = vmul.f32 %v781, 0.2
      %v936 = vmul.f32 %v786, 0.2
      %v937 = vmul.f32 %v789, 0.2
      %v938 = vmul.f32 %v794, 0.2
      %v939 = vmul.f32 %v797, 0.2
      %v940 = vmul.f32 %v802, 0.2
      %v941 = vmul.f32 %v805, 0.2
      %v942 = vmul.f32 %v810, 0.2
      %v943 = vmul.f32 %v813, 0.2
      %v944 = vsel %vm816, %v562, %v880
      %v945 = vsel %vm817, %v565, %v881
      %v946 = vsel %vm818, %v570, %v882
      %v947 = vsel %vm819, %v573, %v883
      %v948 = vsel %vm820, %v578, %v884
      %v949 = vsel %vm821, %v581, %v885
      %v950 = vsel %vm822, %v586, %v886
      %v951 = vsel %vm823, %v589, %v887
      %v952 = vsel %vm824, %v594, %v888
      %v953 = vsel %vm825, %v597, %v889
      %v954 = vsel %vm826, %v602, %v890
      %v955 = vsel %vm827, %v605, %v891
      %v956 = vsel %vm828, %v610, %v892
      %v957 = vsel %vm829, %v613, %v893
      %v958 = vsel %vm830, %v618, %v894
      %v959 = vsel %vm831, %v621, %v895
      %v960 = vsel %vm832, %v626, %v896
      %v961 = vsel %vm833, %v629, %v897
      %v962 = vsel %vm834, %v634, %v898
      %v963 = vsel %vm835, %v637, %v899
      %v964 = vsel %vm836, %v642, %v900
      %v965 = vsel %vm837, %v645, %v901
      %v966 = vsel %vm838, %v650, %v902
      %v967 = vsel %vm839, %v653, %v903
      %v968 = vsel %vm840, %v658, %v904
      %v969 = vsel %vm841, %v661, %v905
      %v970 = vsel %vm842, %v666, %v906
      %v971 = vsel %vm843, %v669, %v907
      %v972 = vsel %vm844, %v674, %v908
      %v973 = vsel %vm845, %v677, %v909
      %v974 = vsel %vm846, %v682, %v910
      %v975 = vsel %vm847, %v685, %v911
      %v976 = vsel %vm848, %v690, %v912
      %v977 = vsel %vm849, %v693, %v913
      %v978 = vsel %vm850, %v698, %v914
      %v979 = vsel %vm851, %v701, %v915
      %v980 = vsel %vm852, %v706, %v916
      %v981 = vsel %vm853, %v709, %v917
      %v982 = vsel %vm854, %v714, %v918
      %v983 = vsel %vm855, %v717, %v919
      %v984 = vsel %vm856, %v722, %v920
      %v985 = vsel %vm857, %v725, %v921
      %v986 = vsel %vm858, %v730, %v922
      %v987 = vsel %vm859, %v733, %v923
      %v988 = vsel %vm860, %v738, %v924
      %v989 = vsel %vm861, %v741, %v925
      %v990 = vsel %vm862, %v746, %v926
      %v991 = vsel %vm863, %v749, %v927
      %v992 = vsel %vm864, %v754, %v928
      %v993 = vsel %vm865, %v757, %v929
      %v994 = vsel %vm866, %v762, %v930
      %v995 = vsel %vm867, %v765, %v931
      %v996 = vsel %vm868, %v770, %v932
      %v997 = vsel %vm869, %v773, %v933
      %v998 = vsel %vm870, %v778, %v934
      %v999 = vsel %vm871, %v781, %v935
      %v1000 = vsel %vm872, %v786, %v936
      %v1001 = vsel %vm873, %v789, %v937
      %v1002 = vsel %vm874, %v794, %v938
      %v1003 = vsel %vm875, %v797, %v939
      %v1004 = vsel %vm876, %v802, %v940
      %v1005 = vsel %vm877, %v805, %v941
      %v1006 = vsel %vm878, %v810, %v942
      %v1007 = vsel %vm879, %v813, %v943
      %v1008 = vpack.c.bf16 %v945, %v944
      %v1009 = vpack.c.bf16 %v947, %v946
      %v1010 = vpack.c.bf16 %v949, %v948
      %v1011 = vpack.c.bf16 %v951, %v950
      %v1012 = vpack.c.bf16 %v953, %v952
      %v1013 = vpack.c.bf16 %v955, %v954
      %v1014 = vpack.c.bf16 %v957, %v956
      %v1015 = vpack.c.bf16 %v959, %v958
      %v1016 = vpack.c.bf16 %v961, %v960
      %v1017 = vpack.c.bf16 %v963, %v962
      %v1018 = vpack.c.bf16 %v965, %v964
      %v1019 = vpack.c.bf16 %v967, %v966
      %v1020 = vpack.c.bf16 %v969, %v968
      %v1021 = vpack.c.bf16 %v971, %v970
      %v1022 = vpack.c.bf16 %v973, %v972
      %v1023 = vpack.c.bf16 %v975, %v974
      %v1024 = vpack.c.bf16 %v977, %v976
      %v1025 = vpack.c.bf16 %v979, %v978
      %v1026 = vpack.c.bf16 %v981, %v980
      %v1027 = vpack.c.bf16 %v983, %v982
      %v1028 = vpack.c.bf16 %v985, %v984
      %v1029 = vpack.c.bf16 %v987, %v986
      %v1030 = vpack.c.bf16 %v989, %v988
      %v1031 = vpack.c.bf16 %v991, %v990
      %v1032 = vpack.c.bf16 %v993, %v992
      %v1033 = vpack.c.bf16 %v995, %v994
      %v1034 = vpack.c.bf16 %v997, %v996
      %v1035 = vpack.c.bf16 %v999, %v998
      %v1036 = vpack.c.bf16 %v1001, %v1000
      %v1037 = vpack.c.bf16 %v1003, %v1002
      %v1038 = vpack.c.bf16 %v1005, %v1004
      %v1039 = vpack.c.bf16 %v1007, %v1006
      %v1072 = vunpack.c.l.b16 %v1008
      %v1073 = vunpack.c.h.b16 %v1008
      %v1074 = vunpack.c.l.b16 %v1009
      %v1075 = vunpack.c.h.b16 %v1009
      %v1076 = vunpack.c.l.b16 %v1010
      %v1077 = vunpack.c.h.b16 %v1010
      %v1078 = vunpack.c.l.b16 %v1011
      %v1079 = vunpack.c.h.b16 %v1011
      %v1080 = vunpack.c.l.b16 %v1012
      %v1081 = vunpack.c.h.b16 %v1012
      %v1082 = vunpack.c.l.b16 %v1013
      %v1083 = vunpack.c.h.b16 %v1013
      %v1084 = vunpack.c.l.b16 %v1014
      %v1085 = vunpack.c.h.b16 %v1014
      %v1086 = vunpack.c.l.b16 %v1015
      %v1087 = vunpack.c.h.b16 %v1015
      %v1088 = vunpack.c.l.b16 %v1016
      %v1089 = vunpack.c.h.b16 %v1016
      %v1090 = vunpack.c.l.b16 %v1017
      %v1091 = vunpack.c.h.b16 %v1017
      %v1092 = vunpack.c.l.b16 %v1018
      %v1093 = vunpack.c.h.b16 %v1018
      %v1094 = vunpack.c.l.b16 %v1019
      %v1095 = vunpack.c.h.b16 %v1019
      %v1096 = vunpack.c.l.b16 %v1020
      %v1097 = vunpack.c.h.b16 %v1020
      %v1098 = vunpack.c.l.b16 %v1021
      %v1099 = vunpack.c.h.b16 %v1021
      %v1100 = vunpack.c.l.b16 %v1022
      %v1101 = vunpack.c.h.b16 %v1022
      %v1102 = vunpack.c.l.b16 %v1023
      %v1103 = vunpack.c.h.b16 %v1023
      %v1104 = vunpack.c.l.b16 %v1024
      %v1105 = vunpack.c.h.b16 %v1024
      %v1106 = vunpack.c.l.b16 %v1025
      %v1107 = vunpack.c.h.b16 %v1025
      %v1108 = vunpack.c.l.b16 %v1026
      %v1109 = vunpack.c.h.b16 %v1026
      %v1110 = vunpack.c.l.b16 %v1027
      %v1111 = vunpack.c.h.b16 %v1027
      %v1112 = vunpack.c.l.b16 %v1028
      %v1113 = vunpack.c.h.b16 %v1028
      %v1114 = vunpack.c.l.b16 %v1029
      %v1115 = vunpack.c.h.b16 %v1029
      %v1116 = vunpack.c.l.b16 %v1030
      %v1117 = vunpack.c.h.b16 %v1030
      %v1118 = vunpack.c.l.b16 %v1031
      %v1119 = vunpack.c.h.b16 %v1031
      %v1120 = vunpack.c.l.b16 %v1032
      %v1121 = vunpack.c.h.b16 %v1032
      %v1122 = vunpack.c.l.b16 %v1033
      %v1123 = vunpack.c.h.b16 %v1033
      %v1124 = vunpack.c.l.b16 %v1034
      %v1125 = vunpack.c.h.b16 %v1034
      %v1126 = vunpack.c.l.b16 %v1035
      %v1127 = vunpack.c.h.b16 %v1035
      %v1128 = vunpack.c.l.b16 %v1036
      %v1129 = vunpack.c.h.b16 %v1036
      %v1130 = vunpack.c.l.b16 %v1037
      %v1131 = vunpack.c.h.b16 %v1037
      %v1132 = vunpack.c.l.b16 %v1038
      %v1133 = vunpack.c.h.b16 %v1038
      %v1134 = vunpack.c.l.b16 %v1039
      %v1135 = vunpack.c.h.b16 %v1039
      %v1136 = vpack.c.b16 %v1072, %v1072
      %v1137 = vpack.c.b16 %v1073, %v1073
      %v1138 = vpack.c.b16 %v1074, %v1074
      %v1139 = vpack.c.b16 %v1075, %v1075
      %v1140 = vpack.c.b16 %v1076, %v1076
      %v1141 = vpack.c.b16 %v1077, %v1077
      %v1142 = vpack.c.b16 %v1078, %v1078
      %v1143 = vpack.c.b16 %v1079, %v1079
      %v1144 = vpack.c.b16 %v1080, %v1080
      %v1145 = vpack.c.b16 %v1081, %v1081
      %v1146 = vpack.c.b16 %v1082, %v1082
      %v1147 = vpack.c.b16 %v1083, %v1083
      %v1148 = vpack.c.b16 %v1084, %v1084
      %v1149 = vpack.c.b16 %v1085, %v1085
      %v1150 = vpack.c.b16 %v1086, %v1086
      %v1151 = vpack.c.b16 %v1087, %v1087
      %v1152 = vpack.c.b16 %v1088, %v1088
      %v1153 = vpack.c.b16 %v1089, %v1089
      %v1154 = vpack.c.b16 %v1090, %v1090
      %v1155 = vpack.c.b16 %v1091, %v1091
      %v1156 = vpack.c.b16 %v1092, %v1092
      %v1157 = vpack.c.b16 %v1093, %v1093
      %v1158 = vpack.c.b16 %v1094, %v1094
      %v1159 = vpack.c.b16 %v1095, %v1095
      %v1160 = vpack.c.b16 %v1096, %v1096
      %v1161 = vpack.c.b16 %v1097, %v1097
      %v1162 = vpack.c.b16 %v1098, %v1098
      %v1163 = vpack.c.b16 %v1099, %v1099
      %v1164 = vpack.c.b16 %v1100, %v1100
      %v1165 = vpack.c.b16 %v1101, %v1101
      %v1166 = vpack.c.b16 %v1102, %v1102
      %v1167 = vpack.c.b16 %v1103, %v1103
      %v1168 = vpack.c.b16 %v1104, %v1104
      %v1169 = vpack.c.b16 %v1105, %v1105
      %v1170 = vpack.c.b16 %v1106, %v1106
      %v1171 = vpack.c.b16 %v1107, %v1107
      %v1172 = vpack.c.b16 %v1108, %v1108
      %v1173 = vpack.c.b16 %v1109, %v1109
      %v1174 = vpack.c.b16 %v1110, %v1110
      %v1175 = vpack.c.b16 %v1111, %v1111
      %v1176 = vpack.c.b16 %v1112, %v1112
      %v1177 = vpack.c.b16 %v1113, %v1113
      %v1178 = vpack.c.b16 %v1114, %v1114
      %v1179 = vpack.c.b16 %v1115, %v1115
      %v1180 = vpack.c.b16 %v1116, %v1116
      %v1181 = vpack.c.b16 %v1117, %v1117
      %v1182 = vpack.c.b16 %v1118, %v1118
      %v1183 = vpack.c.b16 %v1119, %v1119
      %v1184 = vpack.c.b16 %v1120, %v1120
      %v1185 = vpack.c.b16 %v1121, %v1121
      %v1186 = vpack.c.b16 %v1122, %v1122
      %v1187 = vpack.c.b16 %v1123, %v1123
      %v1188 = vpack.c.b16 %v1124, %v1124
      %v1189 = vpack.c.b16 %v1125, %v1125
      %v1190 = vpack.c.b16 %v1126, %v1126
      %v1191 = vpack.c.b16 %v1127, %v1127
      %v1192 = vpack.c.b16 %v1128, %v1128
      %v1193 = vpack.c.b16 %v1129, %v1129
      %v1194 = vpack.c.b16 %v1130, %v1130
      %v1195 = vpack.c.b16 %v1131, %v1131
      %v1196 = vpack.c.b16 %v1132, %v1132
      %v1197 = vpack.c.b16 %v1133, %v1133
      %v1198 = vpack.c.b16 %v1134, %v1134
      %v1199 = vpack.c.b16 %v1135, %v1135
      %1264 = vst [vmem:[%s172] sm:$0xf] %v1136
      %1265 = vst [vmem:[%s172 + $0x4] sm:$0xf] %v1137
      %1266 = vst [vmem:[%s172 + $0x8] sm:$0xf] %v1138
      %1267 = vst [vmem:[%s172 + $0xc] sm:$0xf] %v1139
      %1268 = vst [vmem:[%s172 + $0x10] sm:$0xf] %v1140
      %1269 = vst [vmem:[%s172 + $0x14] sm:$0xf] %v1141
      %1270 = vst [vmem:[%s172 + $0x18] sm:$0xf] %v1142
      %1271 = vst [vmem:[%s172 + $0x1c] sm:$0xf] %v1143
      %1272 = vst [vmem:[%s172 + $0x20] sm:$0xf] %v1144
      %1273 = vst [vmem:[%s172 + $0x24] sm:$0xf] %v1145
      %1274 = vst [vmem:[%s172 + $0x28] sm:$0xf] %v1146
      %1275 = vst [vmem:[%s172 + $0x2c] sm:$0xf] %v1147
      %1276 = vst [vmem:[%s172 + $0x30] sm:$0xf] %v1148
      %1277 = vst [vmem:[%s172 + $0x34] sm:$0xf] %v1149
      %1278 = vst [vmem:[%s172 + $0x38] sm:$0xf] %v1150
      %1279 = vst [vmem:[%s172 + $0x3c] sm:$0xf] %v1151
      %1280 = vst [vmem:[%s172 + $0x40] sm:$0xf] %v1152
      %1281 = vst [vmem:[%s172 + $0x44] sm:$0xf] %v1153
      %1282 = vst [vmem:[%s172 + $0x48] sm:$0xf] %v1154
      %1283 = vst [vmem:[%s172 + $0x4c] sm:$0xf] %v1155
      %1284 = vst [vmem:[%s172 + $0x50] sm:$0xf] %v1156
      %1285 = vst [vmem:[%s172 + $0x54] sm:$0xf] %v1157
      %1286 = vst [vmem:[%s172 + $0x58] sm:$0xf] %v1158
      %1287 = vst [vmem:[%s172 + $0x5c] sm:$0xf] %v1159
      %1288 = vst [vmem:[%s172 + $0x60] sm:$0xf] %v1160
      %1289 = vst [vmem:[%s172 + $0x64] sm:$0xf] %v1161
      %1290 = vst [vmem:[%s172 + $0x68] sm:$0xf] %v1162
      %1291 = vst [vmem:[%s172 + $0x6c] sm:$0xf] %v1163
      %1292 = vst [vmem:[%s172 + $0x70] sm:$0xf] %v1164
      %1293 = vst [vmem:[%s172 + $0x74] sm:$0xf] %v1165
      %1294 = vst [vmem:[%s172 + $0x78] sm:$0xf] %v1166
      %1295 = vst [vmem:[%s172 + $0x7c] sm:$0xf] %v1167
      %1296 = vst [vmem:[%s172 + $0x80] sm:$0xf] %v1168
      %1297 = vst [vmem:[%s172 + $0x84] sm:$0xf] %v1169
      %1298 = vst [vmem:[%s172 + $0x88] sm:$0xf] %v1170
      %1299 = vst [vmem:[%s172 + $0x8c] sm:$0xf] %v1171
      %1300 = vst [vmem:[%s172 + $0x90] sm:$0xf] %v1172
      %1301 = vst [vmem:[%s172 + $0x94] sm:$0xf] %v1173
      %1302 = vst [vmem:[%s172 + $0x98] sm:$0xf] %v1174
      %1303 = vst [vmem:[%s172 + $0x9c] sm:$0xf] %v1175
      %1304 = vst [vmem:[%s172 + $0xa0] sm:$0xf] %v1176
      %1305 = vst [vmem:[%s172 + $0xa4] sm:$0xf] %v1177
      %1306 = vst [vmem:[%s172 + $0xa8] sm:$0xf] %v1178
      %1307 = vst [vmem:[%s172 + $0xac] sm:$0xf] %v1179
      %1308 = vst [vmem:[%s172 + $0xb0] sm:$0xf] %v1180
      %1309 = vst [vmem:[%s172 + $0xb4] sm:$0xf] %v1181
      %1310 = vst [vmem:[%s172 + $0xb8] sm:$0xf] %v1182
      %1311 = vst [vmem:[%s172 + $0xbc] sm:$0xf] %v1183
      %1312 = vst [vmem:[%s172 + $0xc0] sm:$0xf] %v1184
      %1313 = vst [vmem:[%s172 + $0xc4] sm:$0xf] %v1185
      %1314 = vst [vmem:[%s172 + $0xc8] sm:$0xf] %v1186
      %1315 = vst [vmem:[%s172 + $0xcc] sm:$0xf] %v1187
      %1316 = vst [vmem:[%s172 + $0xd0] sm:$0xf] %v1188
      %1317 = vst [vmem:[%s172 + $0xd4] sm:$0xf] %v1189
      %1318 = vst [vmem:[%s172 + $0xd8] sm:$0xf] %v1190
      %1319 = vst [vmem:[%s172 + $0xdc] sm:$0xf] %v1191
      %1320 = vst [vmem:[%s172 + $0xe0] sm:$0xf] %v1192
      %1321 = vst [vmem:[%s172 + $0xe4] sm:$0xf] %v1193
      %1322 = vst [vmem:[%s172 + $0xe8] sm:$0xf] %v1194
      %1323 = vst [vmem:[%s172 + $0xec] sm:$0xf] %v1195
      %1324 = vst [vmem:[%s172 + $0xf0] sm:$0xf] %v1196
      %1325 = vst [vmem:[%s172 + $0xf4] sm:$0xf] %v1197
      %1326 = vst [vmem:[%s172 + $0xf8] sm:$0xf] %v1198
      %1327 = vst [vmem:[%s172 + $0xfc] sm:$0xf] %v1199
      %s1328 = smul.u32 64, %s14
      %p1329 = scmp.lt.s32.totalorder %s1328, 255
      %s1330 = scalar_select %p1329, %s1328, 255
      %s1331 = smul.addr %s1330, 4
      %s1332 = scalar_lea.vmem %s3, %s1331
      // Predicated region
      $region33: #{discriminator_forward.5} parent=31 // pred_check
        %p1333 = pneg %p100
      $region34: #{discriminator_forward.5} parent=31 // pred_check_branch
        %1335 = sbr.rel (%p1333) target = $region36
      $region35: #{discriminator_forward.5} parent=31 // pred_region
        %s1336 = smul.u32 64, %s14
      $region36: #{discriminator_forward.5} parent=31 // pred_fallthru
        _
    $region32: #{discriminator_forward.5} parent=5 // pred_fallthru
      _
    %p1337 = scmp.le.s32.totalorder 2, %s9
    // Predicated region
    $region37: #{discriminator_forward.5} parent=5 // pred_check
      %p1338 = pneg %p1337
    $region38: #{discriminator_forward.5} parent=5 // pred_check_branch
      %1340 = sbr.rel (%p1338) target = $region40
    $region39: #{discriminator_forward.5} parent=5 // pred_region
      %s1341 = ssub.s32 %s9, 2
      // Predicated region
      $region41: #{discriminator_forward.5} parent=39 // pred_check
        %p1342 = pneg %p106
      $region42: #{discriminator_forward.5} parent=39 // pred_check_branch
        %1344 = sbr.rel (%p1342) target = $region44
      $region43: #{discriminator_forward.5} parent=39 // pred_region
        %s1345 = smul.u32 64, %s15
        %p1346 = scmp.lt.s32.totalorder %s1345, 255
        %s1347 = scalar_select %p1346, %s1345, 255
        %s1348 = smul.addr %s1347, 4
        %s1349 = scalar_lea.vmem %s3, %s1348
      $region44: #{discriminator_forward.5} parent=39 // pred_fallthru
        _
    $region40: #{discriminator_forward.5} parent=5 // pred_fallthru
      _
  $region6: #{discriminator_forward.5} parent=0 // loop_footer
    %s13 = sadd.s32 1, %s9
  $region7: #{discriminator_forward.5} parent=0 // loop_footer_branch
    %8 = sbr.rel target = $region3
  $region8: #{discriminator_forward.5} parent=0 // loop_exit
    _

// kernel: discriminator_forward.6
$region0: #{discriminator_forward.6}
  #allocation0 [shape = 'u32[]', space=smem, size = 0x4, offset = 0x4, fixed_abs, tag = 'smem constant byte address 0x4 - core index']
  #allocation1 [shape = 'u32[144,128]{1,0:T(1,128)}', space=vmem, size = 0x12000, scoped, tag = 'internal scratch']
  %s0 = inlined_call_operand.vmem [shape: bf16[512,64], index: 0, kind: input, shape index: {}]
  %s1 = inlined_call_operand.vmem [shape: bf16[64,128], index: 1, kind: input, shape index: {}]
  %s2 = inlined_call_operand.vmem [shape: f32[1,128], index: 2, kind: input, shape index: {}]
  %s3 = inlined_call_operand.vmem [shape: f32[1,128], index: 3, kind: input, shape index: {}]
  %s4 = inlined_call_operand.vmem [shape: bf16[512,128], index: 4, kind: output, shape index: {}]
  %s5 = sld [smem:[#allocation0]]
  $region26: #{discriminator_forward.6} parent=0
    _
  %s7 = ssub.s32 1, %s5
  %s8 = scalar_select 0, %s7, %s5
  // Predicated region
  $region2: #{discriminator_forward.6} parent=0 // pred_check
    _
  $region3: #{discriminator_forward.6} parent=0 // pred_check_branch
    %10 = sbr.rel (0) target = $region5
  $region4: #{discriminator_forward.6} parent=0 // pred_region
    _
  $region5: #{discriminator_forward.6} parent=0 // pred_fallthru
    _
  // Predicated region
  $region6: #{discriminator_forward.6} parent=0 // pred_check
    _
  $region7: #{discriminator_forward.6} parent=0 // pred_check_branch
    %12 = sbr.rel (0) target = $region9
  $region8: #{discriminator_forward.6} parent=0 // pred_region
    _
  $region9: #{discriminator_forward.6} parent=0 // pred_fallthru
    _
  // Predicated region
  $region10: #{discriminator_forward.6} parent=0 // pred_check
    _
  $region11: #{discriminator_forward.6} parent=0 // pred_check_branch
    %14 = sbr.rel (0) target = $region13
  $region12: #{discriminator_forward.6} parent=0 // pred_region
    _
  $region13: #{discriminator_forward.6} parent=0 // pred_fallthru
    _
  // Predicated region
  $region14: #{discriminator_forward.6} parent=0 // pred_check
    _
  $region15: #{discriminator_forward.6} parent=0 // pred_check_branch
    %16 = sbr.rel (0) target = $region17
  $region16: #{discriminator_forward.6} parent=0 // pred_region
    _
  $region17: #{discriminator_forward.6} parent=0 // pred_fallthru
    _
  %v18 = vld [vmem:[%s0] sm:$0xf]
  %v19 = vld [vmem:[%s0 + $0x4] sm:$0xf]
  %v20 = vld [vmem:[%s0 + $0x8] sm:$0xf]
  %v21 = vld [vmem:[%s0 + $0xc] sm:$0xf]
  %v22 = vld [vmem:[%s0 + $0x10] sm:$0xf]
  %v23 = vld [vmem:[%s0 + $0x14] sm:$0xf]
  %v24 = vld [vmem:[%s0 + $0x18] sm:$0xf]
  %v25 = vld [vmem:[%s0 + $0x1c] sm:$0xf]
  %v26 = vld [vmem:[%s0 + $0x20] sm:$0xf]
  %v27 = vld [vmem:[%s0 + $0x24] sm:$0xf]
  %v28 = vld [vmem:[%s0 + $0x28] sm:$0xf]
  %v29 = vld [vmem:[%s0 + $0x2c] sm:$0xf]
  %v30 = vld [vmem:[%s0 + $0x30] sm:$0xf]
  %v31 = vld [vmem:[%s0 + $0x34] sm:$0xf]
  %v32 = vld [vmem:[%s0 + $0x38] sm:$0xf]
  %v33 = vld [vmem:[%s0 + $0x3c] sm:$0xf]
  %v34 = vld [vmem:[%s0 + $0x40] sm:$0xf]
  %v35 = vld [vmem:[%s0 + $0x44] sm:$0xf]
  %v36 = vld [vmem:[%s0 + $0x48] sm:$0xf]
  %v37 = vld [vmem:[%s0 + $0x4c] sm:$0xf]
  %v38 = vld [vmem:[%s0 + $0x50] sm:$0xf]
  %v39 = vld [vmem:[%s0 + $0x54] sm:$0xf]
  %v40 = vld [vmem:[%s0 + $0x58] sm:$0xf]
  %v41 = vld [vmem:[%s0 + $0x5c] sm:$0xf]
  %v42 = vld [vmem:[%s0 + $0x60] sm:$0xf]
  %v43 = vld [vmem:[%s0 + $0x64] sm:$0xf]
  %v44 = vld [vmem:[%s0 + $0x68] sm:$0xf]
  %v45 = vld [vmem:[%s0 + $0x6c] sm:$0xf]
  %v46 = vld [vmem:[%s0 + $0x70] sm:$0xf]
  %v47 = vld [vmem:[%s0 + $0x74] sm:$0xf]
  %v48 = vld [vmem:[%s0 + $0x78] sm:$0xf]
  %v49 = vld [vmem:[%s0 + $0x7c] sm:$0xf]
  %v50 = vld [vmem:[%s0 + $0x80] sm:$0xf]
  %v51 = vld [vmem:[%s0 + $0x84] sm:$0xf]
  %v52 = vld [vmem:[%s0 + $0x88] sm:$0xf]
  %v53 = vld [vmem:[%s0 + $0x8c] sm:$0xf]
  %v54 = vld [vmem:[%s0 + $0x90] sm:$0xf]
  %v55 = vld [vmem:[%s0 + $0x94] sm:$0xf]
  %v56 = vld [vmem:[%s0 + $0x98] sm:$0xf]
  %v57 = vld [vmem:[%s0 + $0x9c] sm:$0xf]
  %v58 = vld [vmem:[%s0 + $0xa0] sm:$0xf]
  %v59 = vld [vmem:[%s0 + $0xa4] sm:$0xf]
  %v60 = vld [vmem:[%s0 + $0xa8] sm:$0xf]
  %v61 = vld [vmem:[%s0 + $0xac] sm:$0xf]
  %v62 = vld [vmem:[%s0 + $0xb0] sm:$0xf]
  %v63 = vld [vmem:[%s0 + $0xb4] sm:$0xf]
  %v64 = vld [vmem:[%s0 + $0xb8] sm:$0xf]
  %v65 = vld [vmem:[%s0 + $0xbc] sm:$0xf]
  %v66 = vld [vmem:[%s0 + $0xc0] sm:$0xf]
  %v67 = vld [vmem:[%s0 + $0xc4] sm:$0xf]
  %v68 = vld [vmem:[%s0 + $0xc8] sm:$0xf]
  %v69 = vld [vmem:[%s0 + $0xcc] sm:$0xf]
  %v70 = vld [vmem:[%s0 + $0xd0] sm:$0xf]
  %v71 = vld [vmem:[%s0 + $0xd4] sm:$0xf]
  %v72 = vld [vmem:[%s0 + $0xd8] sm:$0xf]
  %v73 = vld [vmem:[%s0 + $0xdc] sm:$0xf]
  %v74 = vld [vmem:[%s0 + $0xe0] sm:$0xf]
  %v75 = vld [vmem:[%s0 + $0xe4] sm:$0xf]
  %v76 = vld [vmem:[%s0 + $0xe8] sm:$0xf]
  %v77 = vld [vmem:[%s0 + $0xec] sm:$0xf]
  %v78 = vld [vmem:[%s0 + $0xf0] sm:$0xf]
  %v79 = vld [vmem:[%s0 + $0xf4] sm:$0xf]
  %v80 = vld [vmem:[%s0 + $0xf8] sm:$0xf]
  %v81 = vld [vmem:[%s0 + $0xfc] sm:$0xf]
  %v82 = vld [vmem:[%s1] sm:$0xf]
  %v83 = vld [vmem:[%s1 + $0x4] sm:$0xf]
  %v84 = vld [vmem:[%s1 + $0x8] sm:$0xf]
  %v85 = vld [vmem:[%s1 + $0xc] sm:$0xf]
  %v86 = vld [vmem:[%s1 + $0x10] sm:$0xf]
  %v87 = vld [vmem:[%s1 + $0x14] sm:$0xf]
  %v88 = vld [vmem:[%s1 + $0x18] sm:$0xf]
  %v89 = vld [vmem:[%s1 + $0x1c] sm:$0xf]
  %v154 = vunpack.c.l.b16 %v18
  %v155 = vunpack.c.l.b16 %v19
  %v156 = vunpack.c.l.b16 %v20
  %v157 = vunpack.c.l.b16 %v21
  %v158 = vunpack.c.l.b16 %v22
  %v159 = vunpack.c.l.b16 %v23
  %v160 = vunpack.c.l.b16 %v24
  %v161 = vunpack.c.l.b16 %v25
  %v162 = vunpack.c.l.b16 %v26
  %v163 = vunpack.c.l.b16 %v27
  %v164 = vunpack.c.l.b16 %v28
  %v165 = vunpack.c.l.b16 %v29
  %v166 = vunpack.c.l.b16 %v30
  %v167 = vunpack.c.l.b16 %v31
  %v168 = vunpack.c.l.b16 %v32
  %v169 = vunpack.c.l.b16 %v33
  %v170 = vunpack.c.l.b16 %v34
  %v171 = vunpack.c.l.b16 %v35
  %v172 = vunpack.c.l.b16 %v36
  %v173 = vunpack.c.l.b16 %v37
  %v174 = vunpack.c.l.b16 %v38
  %v175 = vunpack.c.l.b16 %v39
  %v176 = vunpack.c.l.b16 %v40
  %v177 = vunpack.c.l.b16 %v41
  %v178 = vunpack.c.l.b16 %v42
  %v179 = vunpack.c.l.b16 %v43
  %v180 = vunpack.c.l.b16 %v44
  %v181 = vunpack.c.l.b16 %v45
  %v182 = vunpack.c.l.b16 %v46
  %v183 = vunpack.c.l.b16 %v47
  %v184 = vunpack.c.l.b16 %v48
  %v185 = vunpack.c.l.b16 %v49
  %v186 = vunpack.c.l.b16 %v50
  %v187 = vunpack.c.l.b16 %v51
  %v188 = vunpack.c.l.b16 %v52
  %v189 = vunpack.c.l.b16 %v53
  %v190 = vunpack.c.l.b16 %v54
  %v191 = vunpack.c.l.b16 %v55
  %v192 = vunpack.c.l.b16 %v56
  %v193 = vunpack.c.l.b16 %v57
  %v194 = vunpack.c.l.b16 %v58
  %v195 = vunpack.c.l.b16 %v59
  %v196 = vunpack.c.l.b16 %v60
  %v197 = vunpack.c.l.b16 %v61
  %v198 = vunpack.c.l.b16 %v62
  %v199 = vunpack.c.l.b16 %v63
  %v200 = vunpack.c.l.b16 %v64
  %v201 = vunpack.c.l.b16 %v65
  %v202 = vunpack.c.l.b16 %v66
  %v203 = vunpack.c.l.b16 %v67
  %v204 = vunpack.c.l.b16 %v68
  %v205 = vunpack.c.l.b16 %v69
  %v206 = vunpack.c.l.b16 %v70
  %v207 = vunpack.c.l.b16 %v71
  %v208 = vunpack.c.l.b16 %v72
  %v209 = vunpack.c.l.b16 %v73
  %v210 = vunpack.c.l.b16 %v74
  %v211 = vunpack.c.l.b16 %v75
  %v212 = vunpack.c.l.b16 %v76
  %v213 = vunpack.c.l.b16 %v77
  %v214 = vunpack.c.l.b16 %v78
  %v215 = vunpack.c.l.b16 %v79
  %v216 = vunpack.c.l.b16 %v80
  %v217 = vunpack.c.l.b16 %v81
  %v218 = vpack.c.b16 %v155, %v154
  %v219 = vpack.c.b16 %v157, %v156
  %v220 = vpack.c.b16 %v159, %v158
  %v221 = vpack.c.b16 %v161, %v160
  %v222 = vpack.c.b16 %v163, %v162
  %v223 = vpack.c.b16 %v165, %v164
  %v224 = vpack.c.b16 %v167, %v166
  %v225 = vpack.c.b16 %v169, %v168
  %v226 = vpack.c.b16 %v171, %v170
  %v227 = vpack.c.b16 %v173, %v172
  %v228 = vpack.c.b16 %v175, %v174
  %v229 = vpack.c.b16 %v177, %v176
  %v230 = vpack.c.b16 %v179, %v178
  %v231 = vpack.c.b16 %v181, %v180
  %v232 = vpack.c.b16 %v183, %v182
  %v233 = vpack.c.b16 %v185, %v184
  %v234 = vpack.c.b16 %v187, %v186
  %v235 = vpack.c.b16 %v189, %v188
  %v236 = vpack.c.b16 %v191, %v190
  %v237 = vpack.c.b16 %v193, %v192
  %v238 = vpack.c.b16 %v195, %v194
  %v239 = vpack.c.b16 %v197, %v196
  %v240 = vpack.c.b16 %v199, %v198
  %v241 = vpack.c.b16 %v201, %v200
  %v242 = vpack.c.b16 %v203, %v202
  %v243 = vpack.c.b16 %v205, %v204
  %v244 = vpack.c.b16 %v207, %v206
  %v245 = vpack.c.b16 %v209, %v208
  %v246 = vpack.c.b16 %v211, %v210
  %v247 = vpack.c.b16 %v213, %v212
  %v248 = vpack.c.b16 %v215, %v214
  %v249 = vpack.c.b16 %v217, %v216
  %v258 = vunpack.c.l.b16 %v82
  %v259 = vunpack.c.l.b16 %v83
  %v260 = vunpack.c.l.b16 %v84
  %v261 = vunpack.c.l.b16 %v85
  %v262 = vunpack.c.l.b16 %v86
  %v263 = vunpack.c.l.b16 %v87
  %v264 = vunpack.c.l.b16 %v88
  %v265 = vunpack.c.l.b16 %v89
  %v266 = vpack.c.b16 %v259, %v258
  %v267 = vpack.c.b16 %v261, %v260
  %v268 = vpack.c.b16 %v263, %v262
  %v269 = vpack.c.b16 %v265, %v264
  %vm274 = vcmask 523264
  %v276 = vsel %vm274, %v218, 0
  %v279 = vsel %vm274, %v219, 0
  %v282 = vsel %vm274, %v220, 0
  %v285 = vsel %vm274, %v221, 0
  %v288 = vsel %vm274, %v222, 0
  %v291 = vsel %vm274, %v223, 0
  %v294 = vsel %vm274, %v224, 0
  %v297 = vsel %vm274, %v225, 0
  %v300 = vsel %vm274, %v226, 0
  %v303 = vsel %vm274, %v227, 0
  %v306 = vsel %vm274, %v228, 0
  %v309 = vsel %vm274, %v229, 0
  %v312 = vsel %vm274, %v230, 0
  %v315 = vsel %vm274, %v231, 0
  %v318 = vsel %vm274, %v232, 0
  %v321 = vsel %vm274, %v233, 0
  %v324 = vsel %vm274, %v234, 0
  %v327 = vsel %vm274, %v235, 0
  %v330 = vsel %vm274, %v236, 0
  %v333 = vsel %vm274, %v237, 0
  %v336 = vsel %vm274, %v238, 0
  %v339 = vsel %vm274, %v239, 0
  %v342 = vsel %vm274, %v240, 0
  %v345 = vsel %vm274, %v241, 0
  %v348 = vsel %vm274, %v242, 0
  %v351 = vsel %vm274, %v243, 0
  %v354 = vsel %vm274, %v244, 0
  %v357 = vsel %vm274, %v245, 0
  %v360 = vsel %vm274, %v246, 0
  %v363 = vsel %vm274, %v247, 0
  %v366 = vsel %vm274, %v248, 0
  %v369 = vsel %vm274, %v249, 0
  %371 = vmatprep.subr.bf16.mxu0 0
  %372 = vmatpush1.bf16.msra.mxu0 %v266
  %373 = vmatprep.subr.bf16.mxu0 0
  %374 = vmatpush1.bf16.msra.mxu0 %v267
  %375 = vmatprep.subr.bf16.mxu0 0
  %376 = vmatpush1.bf16.msra.mxu0 %v268
  %377 = vmatprep.subr.bf16.mxu0 0
  %378 = vmatpush1.bf16.msra.mxu0 %v269
  %379 = vmatprep.subr.bf16.mxu0 0
  %380 = vmatpush1.bf16.msra.mxu0 0
  %381 = vmatprep.subr.bf16.mxu0 0
  %382 = vmatpush1.bf16.msra.mxu0 0
  %383 = vmatprep.subr.bf16.mxu0 0
  %384 = vmatpush1.bf16.msra.mxu0 0
  %385 = vmatprep.subr.bf16.mxu0 0
  %386 = vmatpush1.bf16.msra.mxu0 0
  %387 = vmatprep.subr.bf16.mxu0 0
  %388 = vmatpush1.bf16.msra.mxu0 0
  %389 = vmatprep.subr.bf16.mxu0 0
  %390 = vmatpush1.bf16.msra.mxu0 0
  %391 = vmatprep.subr.bf16.mxu0 0
  %392 = vmatpush1.bf16.msra.mxu0 0
  %393 = vmatprep.subr.bf16.mxu0 0
  %394 = vmatpush1.bf16.msra.mxu0 0
  %395 = vmatprep.subr.bf16.mxu0 0
  %396 = vmatpush1.bf16.msra.mxu0 0
  %397 = vmatprep.subr.bf16.mxu0 0
  %398 = vmatpush1.bf16.msra.mxu0 0
  %399 = vmatprep.subr.bf16.mxu0 0
  %400 = vmatpush1.bf16.msra.mxu0 0
  %401 = vmatprep.subr.bf16.mxu0 0
  %402 = vmatpush1.bf16.msra.mxu0 0
  %403 = vmatprep.mubr.bf16.mxu0 0
  %404 = vmatmul.mubr.bf16.gmra.mrb[0].mxu0 %v276
  %v405 = vpop.f32.mrb[0].mxu0
  %v406 = vadd.f32 0.0, %v405
  %v407 = vpop.f32.mrb[0].mxu0
  %v408 = vpop.f32.mrb[0].mxu0
  %v409 = vadd.f32 0.0, %v408
  %v410 = vpop.f32.mrb[0].mxu0
  %411 = vmatprep.mubr.bf16.mxu0 0
  %412 = vmatmul.mubr.bf16.gmra.mrb[0].mxu0 %v279
  %v413 = vpop.f32.mrb[0].mxu0
  %v414 = vadd.f32 0.0, %v413
  %v415 = vpop.f32.mrb[0].mxu0
  %v416 = vpop.f32.mrb[0].mxu0
  %v417 = vadd.f32 0.0, %v416
  %v418 = vpop.f32.mrb[0].mxu0
  %419 = vmatprep.mubr.bf16.mxu0 0
  %420 = vmatmul.mubr.bf16.gmra.mrb[0].mxu0 %v282
  %v421 = vpop.f32.mrb[0].mxu0
  %v422 = vadd.f32 0.0, %v421
  %v423 = vpop.f32.mrb[0].mxu0
  %v424 = vpop.f32.mrb[0].mxu0
  %v425 = vadd.f32 0.0, %v424
  %v426 = vpop.f32.mrb[0].mxu0
  %427 = vmatprep.mubr.bf16.mxu0 0
  %428 = vmatmul.mubr.bf16.gmra.mrb[0].mxu0 %v285
  %v429 = vpop.f32.mrb[0].mxu0
  %v430 = vadd.f32 0.0, %v429
  %v431 = vpop.f32.mrb[0].mxu0
  %v432 = vpop.f32.mrb[0].mxu0
  %v433 = vadd.f32 0.0, %v432
  %v434 = vpop.f32.mrb[0].mxu0
  %435 = vmatprep.mubr.bf16.mxu0 0
  %436 = vmatmul.mubr.bf16.gmra.mrb[0].mxu0 %v288
  %v437 = vpop.f32.mrb[0].mxu0
  %v438 = vadd.f32 0.0, %v437
  %v439 = vpop.f32.mrb[0].mxu0
  %v440 = vpop.f32.mrb[0].mxu0
  %v441 = vadd.f32 0.0, %v440
  %v442 = vpop.f32.mrb[0].mxu0
  %443 = vmatprep.mubr.bf16.mxu0 0
  %444 = vmatmul.mubr.bf16.gmra.mrb[0].mxu0 %v291
  %v445 = vpop.f32.mrb[0].mxu0
  %v446 = vadd.f32 0.0, %v445
  %v447 = vpop.f32.mrb[0].mxu0
  %v448 = vpop.f32.mrb[0].mxu0
  %v449 = vadd.f32 0.0, %v448
  %v450 = vpop.f32.mrb[0].mxu0
  %451 = vmatprep.mubr.bf16.mxu0 0
  %452 = vmatmul.mubr.bf16.gmra.mrb[0].mxu0 %v294
  %v453 = vpop.f32.mrb[0].mxu0
  %v454 = vadd.f32 0.0, %v453
  %v455 = vpop.f32.mrb[0].mxu0
  %v456 = vpop.f32.mrb[0].mxu0
  %v457 = vadd.f32 0.0, %v456
  %v458 = vpop.f32.mrb[0].mxu0
  %459 = vmatprep.mubr.bf16.mxu0 0
  %460 = vmatmul.mubr.bf16.gmra.mrb[0].mxu0 %v297
  %v461 = vpop.f32.mrb[0].mxu0
  %v462 = vadd.f32 0.0, %v461
  %v463 = vpop.f32.mrb[0].mxu0
  %v464 = vpop.f32.mrb[0].mxu0
  %v465 = vadd.f32 0.0, %v464
  %v466 = vpop.f32.mrb[0].mxu0
  %467 = vmatprep.mubr.bf16.mxu0 0
  %468 = vmatmul.mubr.bf16.gmra.mrb[0].mxu0 %v300
  %v469 = vpop.f32.mrb[0].mxu0
  %v470 = vadd.f32 0.0, %v469
  %v471 = vpop.f32.mrb[0].mxu0
  %v472 = vpop.f32.mrb[0].mxu0
  %v473 = vadd.f32 0.0, %v472
  %v474 = vpop.f32.mrb[0].mxu0
  %475 = vmatprep.mubr.bf16.mxu0 0
  %476 = vmatmul.mubr.bf16.gmra.mrb[0].mxu0 %v303
  %v477 = vpop.f32.mrb[0].mxu0
  %v478 = vadd.f32 0.0, %v477
  %v479 = vpop.f32.mrb[0].mxu0
  %v480 = vpop.f32.mrb[0].mxu0
  %v481 = vadd.f32 0.0, %v480
  %v482 = vpop.f32.mrb[0].mxu0
  %483 = vmatprep.mubr.bf16.mxu0 0
  %484 = vmatmul.mubr.bf16.gmra.mrb[0].mxu0 %v306
  %v485 = vpop.f32.mrb[0].mxu0
  %v486 = vadd.f32 0.0, %v485
  %v487 = vpop.f32.mrb[0].mxu0
  %v488 = vpop.f32.mrb[0].mxu0
  %v489 = vadd.f32 0.0, %v488
  %v490 = vpop.f32.mrb[0].mxu0
  %491 = vmatprep.mubr.bf16.mxu0 0
  %492 = vmatmul.mubr.bf16.gmra.mrb[0].mxu0 %v309
  %v493 = vpop.f32.mrb[0].mxu0
  %v494 = vadd.f32 0.0, %v493
  %v495 = vpop.f32.mrb[0].mxu0
  %v496 = vpop.f32.mrb[0].mxu0
  %v497 = vadd.f32 0.0, %v496
  %v498 = vpop.f32.mrb[0].mxu0
  %499 = vmatprep.mubr.bf16.mxu0 0
  %500 = vmatmul.mubr.bf16.gmra.mrb[0].mxu0 %v312
  %v501 = vpop.f32.mrb[0].mxu0
  %v502 = vadd.f32 0.0, %v501
  %v503 = vpop.f32.mrb[0].mxu0
  %v504 = vpop.f32.mrb[0].mxu0
  %v505 = vadd.f32 0.0, %v504
  %v506 = vpop.f32.mrb[0].mxu0
  %507 = vmatprep.mubr.bf16.mxu0 0
  %508 = vmatmul.mubr.bf16.gmra.mrb[0].mxu0 %v315
  %v509 = vpop.f32.mrb[0].mxu0
  %v510 = vadd.f32 0.0, %v509
  %v511 = vpop.f32.mrb[0].mxu0
  %v512 = vpop.f32.mrb[0].mxu0
  %v513 = vadd.f32 0.0, %v512
  %v514 = vpop.f32.mrb[0].mxu0
  %515 = vmatprep.mubr.bf16.mxu0 0
  %516 = vmatmul.mubr.bf16.gmra.mrb[0].mxu0 %v318
  %v517 = vpop.f32.mrb[0].mxu0
  %v518 = vadd.f32 0.0, %v517
  %v519 = vpop.f32.mrb[0].mxu0
  %v520 = vpop.f32.mrb[0].mxu0
  %v521 = vadd.f32 0.0, %v520
  %v522 = vpop.f32.mrb[0].mxu0
  %523 = vmatprep.mubr.bf16.mxu0 0
  %524 = vmatmul.mubr.bf16.gmra.mrb[0].mxu0 %v321
  %v525 = vpop.f32.mrb[0].mxu0
  %v526 = vadd.f32 0.0, %v525
  %v527 = vpop.f32.mrb[0].mxu0
  %v528 = vpop.f32.mrb[0].mxu0
  %v529 = vadd.f32 0.0, %v528
  %v530 = vpop.f32.mrb[0].mxu0
  %531 = vmatprep.mubr.bf16.mxu0 0
  %532 = vmatmul.mubr.bf16.gmra.mrb[0].mxu0 %v324
  %v533 = vpop.f32.mrb[0].mxu0
  %v534 = vadd.f32 0.0, %v533
  %v535 = vpop.f32.mrb[0].mxu0
  %v536 = vpop.f32.mrb[0].mxu0
  %v537 = vadd.f32 0.0, %v536
  %v538 = vpop.f32.mrb[0].mxu0
  %539 = vmatprep.mubr.bf16.mxu0 0
  %540 = vmatmul.mubr.bf16.gmra.mrb[0].mxu0 %v327
  %v541 = vpop.f32.mrb[0].mxu0
  %v542 = vadd.f32 0.0, %v541
  %v543 = vpop.f32.mrb[0].mxu0
  %v544 = vpop.f32.mrb[0].mxu0
  %v545 = vadd.f32 0.0, %v544
  %v546 = vpop.f32.mrb[0].mxu0
  %547 = vmatprep.mubr.bf16.mxu0 0
  %548 = vmatmul.mubr.bf16.gmra.mrb[0].mxu0 %v330
  %v549 = vpop.f32.mrb[0].mxu0
  %v550 = vadd.f32 0.0, %v549
  %v551 = vpop.f32.mrb[0].mxu0
  %v552 = vpop.f32.mrb[0].mxu0
  %v553 = vadd.f32 0.0, %v552
  %v554 = vpop.f32.mrb[0].mxu0
  %555 = vmatprep.mubr.bf16.mxu0 0
  %556 = vmatmul.mubr.bf16.gmra.mrb[0].mxu0 %v333
  %v557 = vpop.f32.mrb[0].mxu0
  %v558 = vadd.f32 0.0, %v557
  %v559 = vpop.f32.mrb[0].mxu0
  %v560 = vpop.f32.mrb[0].mxu0
  %v561 = vadd.f32 0.0, %v560
  %v562 = vpop.f32.mrb[0].mxu0
  %563 = vmatprep.mubr.bf16.mxu0 0
  %564 = vmatmul.mubr.bf16.gmra.mrb[0].mxu0 %v336
  %v565 = vpop.f32.mrb[0].mxu0
  %v566 = vadd.f32 0.0, %v565
  %v567 = vpop.f32.mrb[0].mxu0
  %v568 = vpop.f32.mrb[0].mxu0
  %v569 = vadd.f32 0.0, %v568
  %v570 = vpop.f32.mrb[0].mxu0
  %571 = vmatprep.mubr.bf16.mxu0 0
  %572 = vmatmul.mubr.bf16.gmra.mrb[0].mxu0 %v339
  %v573 = vpop.f32.mrb[0].mxu0
  %v574 = vadd.f32 0.0, %v573
  %v575 = vpop.f32.mrb[0].mxu0
  %v576 = vpop.f32.mrb[0].mxu0
  %v577 = vadd.f32 0.0, %v576
  %v578 = vpop.f32.mrb[0].mxu0
  %579 = vmatprep.mubr.bf16.mxu0 0
  %580 = vmatmul.mubr.bf16.gmra.mrb[0].mxu0 %v342
  %v581 = vpop.f32.mrb[0].mxu0
  %v582 = vadd.f32 0.0, %v581
  %v583 = vpop.f32.mrb[0].mxu0
  %v584 = vpop.f32.mrb[0].mxu0
  %v585 = vadd.f32 0.0, %v584
  %v586 = vpop.f32.mrb[0].mxu0
  %587 = vmatprep.mubr.bf16.mxu0 0
  %588 = vmatmul.mubr.bf16.gmra.mrb[0].mxu0 %v345
  %v589 = vpop.f32.mrb[0].mxu0
  %v590 = vadd.f32 0.0, %v589
  %v591 = vpop.f32.mrb[0].mxu0
  %v592 = vpop.f32.mrb[0].mxu0
  %v593 = vadd.f32 0.0, %v592
  %v594 = vpop.f32.mrb[0].mxu0
  %595 = vmatprep.mubr.bf16.mxu0 0
  %596 = vmatmul.mubr.bf16.gmra.mrb[0].mxu0 %v348
  %v597 = vpop.f32.mrb[0].mxu0
  %v598 = vadd.f32 0.0, %v597
  %v599 = vpop.f32.mrb[0].mxu0
  %v600 = vpop.f32.mrb[0].mxu0
  %v601 = vadd.f32 0.0, %v600
  %v602 = vpop.f32.mrb[0].mxu0
  %603 = vmatprep.mubr.bf16.mxu0 0
  %604 = vmatmul.mubr.bf16.gmra.mrb[0].mxu0 %v351
  %v605 = vpop.f32.mrb[0].mxu0
  %v606 = vadd.f32 0.0, %v605
  %v607 = vpop.f32.mrb[0].mxu0
  %v608 = vpop.f32.mrb[0].mxu0
  %v609 = vadd.f32 0.0, %v608
  %v610 = vpop.f32.mrb[0].mxu0
  %611 = vmatprep.mubr.bf16.mxu0 0
  %612 = vmatmul.mubr.bf16.gmra.mrb[0].mxu0 %v354
  %v613 = vpop.f32.mrb[0].mxu0
  %v614 = vadd.f32 0.0, %v613
  %v615 = vpop.f32.mrb[0].mxu0
  %v616 = vpop.f32.mrb[0].mxu0
  %v617 = vadd.f32 0.0, %v616
  %v618 = vpop.f32.mrb[0].mxu0
  %619 = vmatprep.mubr.bf16.mxu0 0
  %620 = vmatmul.mubr.bf16.gmra.mrb[0].mxu0 %v357
  %v621 = vpop.f32.mrb[0].mxu0
  %v622 = vadd.f32 0.0, %v621
  %v623 = vpop.f32.mrb[0].mxu0
  %v624 = vpop.f32.mrb[0].mxu0
  %v625 = vadd.f32 0.0, %v624
  %v626 = vpop.f32.mrb[0].mxu0
  %627 = vmatprep.mubr.bf16.mxu0 0
  %628 = vmatmul.mubr.bf16.gmra.mrb[0].mxu0 %v360
  %v629 = vpop.f32.mrb[0].mxu0
  %v630 = vadd.f32 0.0, %v629
  %v631 = vpop.f32.mrb[0].mxu0
  %v632 = vpop.f32.mrb[0].mxu0
  %v633 = vadd.f32 0.0, %v632
  %v634 = vpop.f32.mrb[0].mxu0
  %635 = vmatprep.mubr.bf16.mxu0 0
  %636 = vmatmul.mubr.bf16.gmra.mrb[0].mxu0 %v363
  %v637 = vpop.f32.mrb[0].mxu0
  %v638 = vadd.f32 0.0, %v637
  %v639 = vpop.f32.mrb[0].mxu0
  %v640 = vpop.f32.mrb[0].mxu0
  %v641 = vadd.f32 0.0, %v640
  %v642 = vpop.f32.mrb[0].mxu0
  %643 = vmatprep.mubr.bf16.mxu0 0
  %644 = vmatmul.mubr.bf16.gmra.mrb[0].mxu0 %v366
  %v645 = vpop.f32.mrb[0].mxu0
  %v646 = vadd.f32 0.0, %v645
  %v647 = vpop.f32.mrb[0].mxu0
  %v648 = vpop.f32.mrb[0].mxu0
  %v649 = vadd.f32 0.0, %v648
  %v650 = vpop.f32.mrb[0].mxu0
  %651 = vmatprep.mubr.bf16.mxu0 0
  %652 = vmatmul.mubr.bf16.gmra.mrb[0].mxu0 %v369
  %v653 = vpop.f32.mrb[0].mxu0
  %v654 = vadd.f32 0.0, %v653
  %v655 = vpop.f32.mrb[0].mxu0
  %v656 = vpop.f32.mrb[0].mxu0
  %v657 = vadd.f32 0.0, %v656
  %v658 = vpop.f32.mrb[0].mxu0
  %659 = vdwg.mxu0
  %v660 = vadd.f32 %v406, %v409
  %v661 = vadd.f32 %v660, %v414
  %v662 = vadd.f32 %v661, %v417
  %v663 = vadd.f32 %v662, %v422
  %v664 = vadd.f32 %v663, %v425
  %v665 = vadd.f32 %v664, %v430
  %v666 = vadd.f32 %v665, %v433
  %v667 = vadd.f32 %v666, %v438
  %v668 = vadd.f32 %v667, %v441
  %v669 = vadd.f32 %v668, %v446
  %v670 = vadd.f32 %v669, %v449
  %v671 = vadd.f32 %v670, %v454
  %v672 = vadd.f32 %v671, %v457
  %v673 = vadd.f32 %v672, %v462
  %v674 = vadd.f32 %v673, %v465
  %v675 = vadd.f32 %v674, %v470
  %v676 = vadd.f32 %v675, %v473
  %v677 = vadd.f32 %v676, %v478
  %v678 = vadd.f32 %v677, %v481
  %v679 = vadd.f32 %v678, %v486
  %v680 = vadd.f32 %v679, %v489
  %v681 = vadd.f32 %v680, %v494
  %v682 = vadd.f32 %v681, %v497
  %v683 = vadd.f32 %v682, %v502
  %v684 = vadd.f32 %v683, %v505
  %v685 = vadd.f32 %v684, %v510
  %v686 = vadd.f32 %v685, %v513
  %v687 = vadd.f32 %v686, %v518
  %v688 = vadd.f32 %v687, %v521
  %v689 = vadd.f32 %v688, %v526
  %v690 = vadd.f32 %v689, %v529
  %v691 = vadd.f32 %v690, %v534
  %v692 = vadd.f32 %v691, %v537
  %v693 = vadd.f32 %v692, %v542
  %v694 = vadd.f32 %v693, %v545
  %v695 = vadd.f32 %v694, %v550
  %v696 = vadd.f32 %v695, %v553
  %v697 = vadd.f32 %v696, %v558
  %v698 = vadd.f32 %v697, %v561
  %v699 = vadd.f32 %v698, %v566
  %v700 = vadd.f32 %v699, %v569
  %v701 = vadd.f32 %v700, %v574
  %v702 = vadd.f32 %v701, %v577
  %v703 = vadd.f32 %v702, %v582
  %v704 = vadd.f32 %v703, %v585
  %v705 = vadd.f32 %v704, %v590
  %v706 = vadd.f32 %v705, %v593
  %v707 = vadd.f32 %v706, %v598
  %v708 = vadd.f32 %v707, %v601
  %v709 = vadd.f32 %v708, %v606
  %v710 = vadd.f32 %v709, %v609
  %v711 = vadd.f32 %v710, %v614
  %v712 = vadd.f32 %v711, %v617
  %v713 = vadd.f32 %v712, %v622
  %v714 = vadd.f32 %v713, %v625
  %v715 = vadd.f32 %v714, %v630
  %v716 = vadd.f32 %v715, %v633
  %v717 = vadd.f32 %v716, %v638
  %v718 = vadd.f32 %v717, %v641
  %v719 = vadd.f32 %v718, %v646
  %v720 = vadd.f32 %v719, %v649
  %v721 = vadd.f32 %v720, %v654
  %v722 = vadd.f32 %v721, %v657
  %v723 = vrot.slane %v722, 4
  %v724 = vadd.f32 %v722, %v723
  %v725 = vrot.slane %v724, 2
  %v726 = vadd.f32 %v724, %v725
  %v727 = vrot.slane %v726, 1
  %v728 = vadd.f32 %v726, %v727
  %v729 = vmul.f32 %v728, 0.001953125
  %v730 = vlaneseq
  %v731 = vshrl.u32 %v730, 7
  %v732 = vadd.s32 %v731, 8
  %v733 = vadd.s32 %v731, 16
  %v734 = vadd.s32 %v731, 24
  %v735 = vadd.s32 %v731, 32
  %v736 = vadd.s32 %v731, 40
  %v737 = vadd.s32 %v731, 48
  %v738 = vadd.s32 %v731, 56
  %v739 = vadd.s32 %v731, 64
  %v740 = vadd.s32 %v731, 72
  %v741 = vadd.s32 %v731, 80
  %v742 = vadd.s32 %v731, 88
  %v743 = vadd.s32 %v731, 96
  %v744 = vadd.s32 %v731, 104
  %v745 = vadd.s32 %v731, 112
  %v746 = vadd.s32 %v731, 120
  %v747 = vadd.s32 %v731, 128
  %v748 = vadd.s32 %v731, 136
  %v749 = vadd.s32 %v731, 144
  %v750 = vadd.s32 %v731, 152
  %v751 = vadd.s32 %v731, 160
  %v752 = vadd.s32 %v731, 168
  %v753 = vadd.s32 %v731, 176
  %v754 = vadd.s32 %v731, 184
  %v755 = vadd.s32 %v731, 192
  %v756 = vadd.s32 %v731, 200
  %v757 = vadd.s32 %v731, 208
  %v758 = vadd.s32 %v731, 216
  %v759 = vadd.s32 %v731, 224
  %v760 = vadd.s32 %v731, 232
  %v761 = vadd.s32 %v731, 240
  %v762 = vadd.s32 %v731, 248
  %v763 = vadd.s32 %v731, 256
  %v764 = vadd.s32 %v731, 264
  %v765 = vadd.s32 %v731, 272
  %v766 = vadd.s32 %v731, 280
  %v767 = vadd.s32 %v731, 288
  %v768 = vadd.s32 %v731, 296
  %v769 = vadd.s32 %v731, 304
  %v770 = vadd.s32 %v731, 312
  %v771 = vadd.s32 %v731, 320
  %v772 = vadd.s32 %v731, 328
  %v773 = vadd.s32 %v731, 336
  %v774 = vadd.s32 %v731, 344
  %v775 = vadd.s32 %v731, 352
  %v776 = vadd.s32 %v731, 360
  %v777 = vadd.s32 %v731, 368
  %v778 = vadd.s32 %v731, 376
  %v779 = vadd.s32 %v731, 384
  %v780 = vadd.s32 %v731, 392
  %v781 = vadd.s32 %v731, 400
  %v782 = vadd.s32 %v731, 408
  %v783 = vadd.s32 %v731, 416
  %v784 = vadd.s32 %v731, 424
  %v785 = vadd.s32 %v731, 432
  %v786 = vadd.s32 %v731, 440
  %v787 = vadd.s32 %v731, 448
  %v788 = vadd.s32 %v731, 456
  %v789 = vadd.s32 %v731, 464
  %v790 = vadd.s32 %v731, 472
  %v791 = vadd.s32 %v731, 480
  %v792 = vadd.s32 %v731, 488
  %v793 = vadd.s32 %v731, 496
  %v794 = vadd.s32 %v731, 504
  %vm795 = vcmp.lt.s32.totalorder %v731, 512
  %vm796 = vcmp.lt.s32.totalorder %v732, 512
  %vm797 = vcmp.lt.s32.totalorder %v733, 512
  %vm798 = vcmp.lt.s32.totalorder %v734, 512
  %vm799 = vcmp.lt.s32.totalorder %v735, 512
  %vm800 = vcmp.lt.s32.totalorder %v736, 512
  %vm801 = vcmp.lt.s32.totalorder %v737, 512
  %vm802 = vcmp.lt.s32.totalorder %v738, 512
  %vm803 = vcmp.lt.s32.totalorder %v739, 512
  %vm804 = vcmp.lt.s32.totalorder %v740, 512
  %vm805 = vcmp.lt.s32.totalorder %v741, 512
  %vm806 = vcmp.lt.s32.totalorder %v742, 512
  %vm807 = vcmp.lt.s32.totalorder %v743, 512
  %vm808 = vcmp.lt.s32.totalorder %v744, 512
  %vm809 = vcmp.lt.s32.totalorder %v745, 512
  %vm810 = vcmp.lt.s32.totalorder %v746, 512
  %vm811 = vcmp.lt.s32.totalorder %v747, 512
  %vm812 = vcmp.lt.s32.totalorder %v748, 512
  %vm813 = vcmp.lt.s32.totalorder %v749, 512
  %vm814 = vcmp.lt.s32.totalorder %v750, 512
  %vm815 = vcmp.lt.s32.totalorder %v751, 512
  %vm816 = vcmp.lt.s32.totalorder %v752, 512
  %vm817 = vcmp.lt.s32.totalorder %v753, 512
  %vm818 = vcmp.lt.s32.totalorder %v754, 512
  %vm819 = vcmp.lt.s32.totalorder %v755, 512
  %vm820 = vcmp.lt.s32.totalorder %v756, 512
  %vm821 = vcmp.lt.s32.totalorder %v757, 512
  %vm822 = vcmp.lt.s32.totalorder %v758, 512
  %vm823 = vcmp.lt.s32.totalorder %v759, 512
  %vm824 = vcmp.lt.s32.totalorder %v760, 512
  %vm825 = vcmp.lt.s32.totalorder %v761, 512
  %vm826 = vcmp.lt.s32.totalorder %v762, 512
  %vm827 = vcmp.lt.s32.totalorder %v763, 512
  %vm828 = vcmp.lt.s32.totalorder %v764, 512
  %vm829 = vcmp.lt.s32.totalorder %v765, 512
  %vm830 = vcmp.lt.s32.totalorder %v766, 512
  %vm831 = vcmp.lt.s32.totalorder %v767, 512
  %vm832 = vcmp.lt.s32.totalorder %v768, 512
  %vm833 = vcmp.lt.s32.totalorder %v769, 512
  %vm834 = vcmp.lt.s32.totalorder %v770, 512
  %vm835 = vcmp.lt.s32.totalorder %v771, 512
  %vm836 = vcmp.lt.s32.totalorder %v772, 512
  %vm837 = vcmp.lt.s32.totalorder %v773, 512
  %vm838 = vcmp.lt.s32.totalorder %v774, 512
  %vm839 = vcmp.lt.s32.totalorder %v775, 512
  %vm840 = vcmp.lt.s32.totalorder %v776, 512
  %vm841 = vcmp.lt.s32.totalorder %v777, 512
  %vm842 = vcmp.lt.s32.totalorder %v778, 512
  %vm843 = vcmp.lt.s32.totalorder %v779, 512
  %vm844 = vcmp.lt.s32.totalorder %v780, 512
  %vm845 = vcmp.lt.s32.totalorder %v781, 512
  %vm846 = vcmp.lt.s32.totalorder %v782, 512
  %vm847 = vcmp.lt.s32.totalorder %v783, 512
  %vm848 = vcmp.lt.s32.totalorder %v784, 512
  %vm849 = vcmp.lt.s32.totalorder %v785, 512
  %vm850 = vcmp.lt.s32.totalorder %v786, 512
  %vm851 = vcmp.lt.s32.totalorder %v787, 512
  %vm852 = vcmp.lt.s32.totalorder %v788, 512
  %vm853 = vcmp.lt.s32.totalorder %v789, 512
  %vm854 = vcmp.lt.s32.totalorder %v790, 512
  %vm855 = vcmp.lt.s32.totalorder %v791, 512
  %vm856 = vcmp.lt.s32.totalorder %v792, 512
  %vm857 = vcmp.lt.s32.totalorder %v793, 512
  %vm858 = vcmp.lt.s32.totalorder %v794, 512
  %v859 = vsub.f32 %v406, %v729
  %v860 = vsub.f32 %v409, %v729
  %v861 = vsub.f32 %v414, %v729
  %v862 = vsub.f32 %v417, %v729
  %v863 = vsub.f32 %v422, %v729
  %v864 = vsub.f32 %v425, %v729
  %v865 = vsub.f32 %v430, %v729
  %v866 = vsub.f32 %v433, %v729
  %v867 = vsub.f32 %v438, %v729
  %v868 = vsub.f32 %v441, %v729
  %v869 = vsub.f32 %v446, %v729
  %v870 = vsub.f32 %v449, %v729
  %v871 = vsub.f32 %v454, %v729
  %v872 = vsub.f32 %v457, %v729
  %v873 = vsub.f32 %v462, %v729
  %v874 = vsub.f32 %v465, %v729
  %v875 = vsub.f32 %v470, %v729
  %v876 = vsub.f32 %v473, %v729
  %v877 = vsub.f32 %v478, %v729
  %v878 = vsub.f32 %v481, %v729
  %v879 = vsub.f32 %v486, %v729
  %v880 = vsub.f32 %v489, %v729
  %v881 = vsub.f32 %v494, %v729
  %v882 = vsub.f32 %v497, %v729
  %v883 = vsub.f32 %v502, %v729
  %v884 = vsub.f32 %v505, %v729
  %v885 = vsub.f32 %v510, %v729
  %v886 = vsub.f32 %v513, %v729
  %v887 = vsub.f32 %v518, %v729
  %v888 = vsub.f32 %v521, %v729
  %v889 = vsub.f32 %v526, %v729
  %v890 = vsub.f32 %v529, %v729
  %v891 = vsub.f32 %v534, %v729
  %v892 = vsub.f32 %v537, %v729
  %v893 = vsub.f32 %v542, %v729
  %v894 = vsub.f32 %v545, %v729
  %v895 = vsub.f32 %v550, %v729
  %v896 = vsub.f32 %v553, %v729
  %v897 = vsub.f32 %v558, %v729
  %v898 = vsub.f32 %v561, %v729
  %v899 = vsub.f32 %v566, %v729
  %v900 = vsub.f32 %v569, %v729
  %v901 = vsub.f32 %v574, %v729
  %v902 = vsub.f32 %v577, %v729
  %v903 = vsub.f32 %v582, %v729
  %v904 = vsub.f32 %v585, %v729
  %v905 = vsub.f32 %v590, %v729
  %v906 = vsub.f32 %v593, %v729
  %v907 = vsub.f32 %v598, %v729
  %v908 = vsub.f32 %v601, %v729
  %v909 = vsub.f32 %v606, %v729
  %v910 = vsub.f32 %v609, %v729
  %v911 = vsub.f32 %v614, %v729
  %v912 = vsub.f32 %v617, %v729
  %v913 = vsub.f32 %v622, %v729
  %v914 = vsub.f32 %v625, %v729
  %v915 = vsub.f32 %v630, %v729
  %v916 = vsub.f32 %v633, %v729
  %v917 = vsub.f32 %v638, %v729
  %v918 = vsub.f32 %v641, %v729
  %v919 = vsub.f32 %v646, %v729
  %v920 = vsub.f32 %v649, %v729
  %v921 = vsub.f32 %v654, %v729
  %v922 = vsub.f32 %v657, %v729
  %v923 = vsel %vm795, %v859, 0.0
  %v924 = vsel %vm796, %v860, 0.0
  %v925 = vsel %vm797, %v861, 0.0
  %v926 = vsel %vm798, %v862, 0.0
  %v927 = vsel %vm799, %v863, 0.0
  %v928 = vsel %vm800, %v864, 0.0
  %v929 = vsel %vm801, %v865, 0.0
  %v930 = vsel %vm802, %v866, 0.0
  %v931 = vsel %vm803, %v867, 0.0
  %v932 = vsel %vm804, %v868, 0.0
  %v933 = vsel %vm805, %v869, 0.0
  %v934 = vsel %vm806, %v870, 0.0
  %v935 = vsel %vm807, %v871, 0.0
  %v936 = vsel %vm808, %v872, 0.0
  %v937 = vsel %vm809, %v873, 0.0
  %v938 = vsel %vm810, %v874, 0.0
  %v939 = vsel %vm811, %v875, 0.0
  %v940 = vsel %vm812, %v876, 0.0
  %v941 = vsel %vm813, %v877, 0.0
  %v942 = vsel %vm814, %v878, 0.0
  %v943 = vsel %vm815, %v879, 0.0
  %v944 = vsel %vm816, %v880, 0.0
  %v945 = vsel %vm817, %v881, 0.0
  %v946 = vsel %vm818, %v882, 0.0
  %v947 = vsel %vm819, %v883, 0.0
  %v948 = vsel %vm820, %v884, 0.0
  %v949 = vsel %vm821, %v885, 0.0
  %v950 = vsel %vm822, %v886, 0.0
  %v951 = vsel %vm823, %v887, 0.0
  %v952 = vsel %vm824, %v888, 0.0
  %v953 = vsel %vm825, %v889, 0.0
  %v954 = vsel %vm826, %v890, 0.0
  %v955 = vsel %vm827, %v891, 0.0
  %v956 = vsel %vm828, %v892, 0.0
  %v957 = vsel %vm829, %v893, 0.0
  %v958 = vsel %vm830, %v894, 0.0
  %v959 = vsel %vm831, %v895, 0.0
  %v960 = vsel %vm832, %v896, 0.0
  %v961 = vsel %vm833, %v897, 0.0
  %v962 = vsel %vm834, %v898, 0.0
  %v963 = vsel %vm835, %v899, 0.0
  %v964 = vsel %vm836, %v900, 0.0
  %v965 = vsel %vm837, %v901, 0.0
  %v966 = vsel %vm838, %v902, 0.0
  %v967 = vsel %vm839, %v903, 0.0
  %v968 = vsel %vm840, %v904, 0.0
  %v969 = vsel %vm841, %v905, 0.0
  %v970 = vsel %vm842, %v906, 0.0
  %v971 = vsel %vm843, %v907, 0.0
  %v972 = vsel %vm844, %v908, 0.0
  %v973 = vsel %vm845, %v909, 0.0
  %v974 = vsel %vm846, %v910, 0.0
  %v975 = vsel %vm847, %v911, 0.0
  %v976 = vsel %vm848, %v912, 0.0
  %v977 = vsel %vm849, %v913, 0.0
  %v978 = vsel %vm850, %v914, 0.0
  %v979 = vsel %vm851, %v915, 0.0
  %v980 = vsel %vm852, %v916, 0.0
  %v981 = vsel %vm853, %v917, 0.0
  %v982 = vsel %vm854, %v918, 0.0
  %v983 = vsel %vm855, %v919, 0.0
  %v984 = vsel %vm856, %v920, 0.0
  %v985 = vsel %vm857, %v921, 0.0
  %v986 = vsel %vm858, %v922, 0.0
  %v987 = vmul.f32 %v923, %v923
  %v988 = vmul.f32 %v924, %v924
  %v989 = vmul.f32 %v925, %v925
  %v990 = vmul.f32 %v926, %v926
  %v991 = vmul.f32 %v927, %v927
  %v992 = vmul.f32 %v928, %v928
  %v993 = vmul.f32 %v929, %v929
  %v994 = vmul.f32 %v930, %v930
  %v995 = vmul.f32 %v931, %v931
  %v996 = vmul.f32 %v932, %v932
  %v997 = vmul.f32 %v933, %v933
  %v998 = vmul.f32 %v934, %v934
  %v999 = vmul.f32 %v935, %v935
  %v1000 = vmul.f32 %v936, %v936
  %v1001 = vmul.f32 %v937, %v937
  %v1002 = vmul.f32 %v938, %v938
  %v1003 = vmul.f32 %v939, %v939
  %v1004 = vmul.f32 %v940, %v940
  %v1005 = vmul.f32 %v941, %v941
  %v1006 = vmul.f32 %v942, %v942
  %v1007 = vmul.f32 %v943, %v943
  %v1008 = vmul.f32 %v944, %v944
  %v1009 = vmul.f32 %v945, %v945
  %v1010 = vmul.f32 %v946, %v946
  %v1011 = vmul.f32 %v947, %v947
  %v1012 = vmul.f32 %v948, %v948
  %v1013 = vmul.f32 %v949, %v949
  %v1014 = vmul.f32 %v950, %v950
  %v1015 = vmul.f32 %v951, %v951
  %v1016 = vmul.f32 %v952, %v952
  %v1017 = vmul.f32 %v953, %v953
  %v1018 = vmul.f32 %v954, %v954
  %v1019 = vmul.f32 %v955, %v955
  %v1020 = vmul.f32 %v956, %v956
  %v1021 = vmul.f32 %v957, %v957
  %v1022 = vmul.f32 %v958, %v958
  %v1023 = vmul.f32 %v959, %v959
  %v1024 = vmul.f32 %v960, %v960
  %v1025 = vmul.f32 %v961, %v961
  %v1026 = vmul.f32 %v962, %v962
  %v1027 = vmul.f32 %v963, %v963
  %v1028 = vmul.f32 %v964, %v964
  %v1029 = vmul.f32 %v965, %v965
  %v1030 = vmul.f32 %v966, %v966
  %v1031 = vmul.f32 %v967, %v967
  %v1032 = vmul.f32 %v968, %v968
  %v1033 = vmul.f32 %v969, %v969
  %v1034 = vmul.f32 %v970, %v970
  %v1035 = vmul.f32 %v971, %v971
  %v1036 = vmul.f32 %v972, %v972
  %v1037 = vmul.f32 %v973, %v973
  %v1038 = vmul.f32 %v974, %v974
  %v1039 = vmul.f32 %v975, %v975
  %v1040 = vmul.f32 %v976, %v976
  %v1041 = vmul.f32 %v977, %v977
  %v1042 = vmul.f32 %v978, %v978
  %v1043 = vmul.f32 %v979, %v979
  %v1044 = vmul.f32 %v980, %v980
  %v1045 = vmul.f32 %v981, %v981
  %v1046 = vmul.f32 %v982, %v982
  %v1047 = vmul.f32 %v983, %v983
  %v1048 = vmul.f32 %v984, %v984
  %v1049 = vmul.f32 %v985, %v985
  %v1050 = vmul.f32 %v986, %v986
  %v1051 = vadd.f32 %v987, %v988
  %v1052 = vadd.f32 %v1051, %v989
  %v1053 = vadd.f32 %v1052, %v990
  %v1054 = vadd.f32 %v1053, %v991
  %v1055 = vadd.f32 %v1054, %v992
  %v1056 = vadd.f32 %v1055, %v993
  %v1057 = vadd.f32 %v1056, %v994
  %v1058 = vadd.f32 %v1057, %v995
  %v1059 = vadd.f32 %v1058, %v996
  %v1060 = vadd.f32 %v1059, %v997
  %v1061 = vadd.f32 %v1060, %v998
  %v1062 = vadd.f32 %v1061, %v999
  %v1063 = vadd.f32 %v1062, %v1000
  %v1064 = vadd.f32 %v1063, %v1001
  %v1065 = vadd.f32 %v1064, %v1002
  %v1066 = vadd.f32 %v1065, %v1003
  %v1067 = vadd.f32 %v1066, %v1004
  %v1068 = vadd.f32 %v1067, %v1005
  %v1069 = vadd.f32 %v1068, %v1006
  %v1070 = vadd.f32 %v1069, %v1007
  %v1071 = vadd.f32 %v1070, %v1008
  %v1072 = vadd.f32 %v1071, %v1009
  %v1073 = vadd.f32 %v1072, %v1010
  %v1074 = vadd.f32 %v1073, %v1011
  %v1075 = vadd.f32 %v1074, %v1012
  %v1076 = vadd.f32 %v1075, %v1013
  %v1077 = vadd.f32 %v1076, %v1014
  %v1078 = vadd.f32 %v1077, %v1015
  %v1079 = vadd.f32 %v1078, %v1016
  %v1080 = vadd.f32 %v1079, %v1017
  %v1081 = vadd.f32 %v1080, %v1018
  %v1082 = vadd.f32 %v1081, %v1019
  %v1083 = vadd.f32 %v1082, %v1020
  %v1084 = vadd.f32 %v1083, %v1021
  %v1085 = vadd.f32 %v1084, %v1022
  %v1086 = vadd.f32 %v1085, %v1023
  %v1087 = vadd.f32 %v1086, %v1024
  %v1088 = vadd.f32 %v1087, %v1025
  %v1089 = vadd.f32 %v1088, %v1026
  %v1090 = vadd.f32 %v1089, %v1027
  %v1091 = vadd.f32 %v1090, %v1028
  %v1092 = vadd.f32 %v1091, %v1029
  %v1093 = vadd.f32 %v1092, %v1030
  %v1094 = vadd.f32 %v1093, %v1031
  %v1095 = vadd.f32 %v1094, %v1032
  %v1096 = vadd.f32 %v1095, %v1033
  %v1097 = vadd.f32 %v1096, %v1034
  %v1098 = vadd.f32 %v1097, %v1035
  %v1099 = vadd.f32 %v1098, %v1036
  %v1100 = vadd.f32 %v1099, %v1037
  %v1101 = vadd.f32 %v1100, %v1038
  %v1102 = vadd.f32 %v1101, %v1039
  %v1103 = vadd.f32 %v1102, %v1040
  %v1104 = vadd.f32 %v1103, %v1041
  %v1105 = vadd.f32 %v1104, %v1042
  %v1106 = vadd.f32 %v1105, %v1043
  %v1107 = vadd.f32 %v1106, %v1044
  %v1108 = vadd.f32 %v1107, %v1045
  %v1109 = vadd.f32 %v1108, %v1046
  %v1110 = vadd.f32 %v1109, %v1047
  %v1111 = vadd.f32 %v1110, %v1048
  %v1112 = vadd.f32 %v1111, %v1049
  %v1113 = vadd.f32 %v1112, %v1050
  %v1114 = vrot.slane %v1113, 4
  %v1115 = vadd.f32 %v1113, %v1114
  %v1116 = vrot.slane %v1115, 2
  %v1117 = vadd.f32 %v1115, %v1116
  %v1118 = vrot.slane %v1117, 1
  %v1119 = vadd.f32 %v1117, %v1118
  %v1120 = vmul.f32 %v1119, 0.001953125
  %v1121 = vld [vmem:[%s2] sm:$0x1]
  %v1122 = vadd.f32 %v1120, 1e-05
  %v1123 = vrsqrt.pop %v1122
  %v1124 = vmul.f32 %v1121, %v1123
  %v1125 = vld [vmem:[%s3] sm:$0x1]
  %v1126 = vmul.f32 %v729, %v1124
  %v1127 = vsub.f32 %v1125, %v1126
  %v1129 = vlaneseq
  %v1130 = vshrl.u32 %v1129, 7
  %v1131 = vsub.s32 0, %v1130
  %v1132 = vrot.slane %v1124, %v1131
  %v1134 = vmul.f32 %v406, %v1132
  %v1135 = vmul.f32 %v409, %v1132
  %v1136 = vmul.f32 %v414, %v1132
  %v1137 = vmul.f32 %v417, %v1132
  %v1138 = vmul.f32 %v422, %v1132
  %v1139 = vmul.f32 %v425, %v1132
  %v1140 = vmul.f32 %v430, %v1132
  %v1141 = vmul.f32 %v433, %v1132
  %v1142 = vmul.f32 %v438, %v1132
  %v1143 = vmul.f32 %v441, %v1132
  %v1144 = vmul.f32 %v446, %v1132
  %v1145 = vmul.f32 %v449, %v1132
  %v1146 = vmul.f32 %v454, %v1132
  %v1147 = vmul.f32 %v457, %v1132
  %v1148 = vmul.f32 %v462, %v1132
  %v1149 = vmul.f32 %v465, %v1132
  %v1150 = vmul.f32 %v470, %v1132
  %v1151 = vmul.f32 %v473, %v1132
  %v1152 = vmul.f32 %v478, %v1132
  %v1153 = vmul.f32 %v481, %v1132
  %v1154 = vmul.f32 %v486, %v1132
  %v1155 = vmul.f32 %v489, %v1132
  %v1156 = vmul.f32 %v494, %v1132
  %v1157 = vmul.f32 %v497, %v1132
  %v1158 = vmul.f32 %v502, %v1132
  %v1159 = vmul.f32 %v505, %v1132
  %v1160 = vmul.f32 %v510, %v1132
  %v1161 = vmul.f32 %v513, %v1132
  %v1162 = vmul.f32 %v518, %v1132
  %v1163 = vmul.f32 %v521, %v1132
  %v1164 = vmul.f32 %v526, %v1132
  %v1165 = vmul.f32 %v529, %v1132
  %v1166 = vmul.f32 %v534, %v1132
  %v1167 = vmul.f32 %v537, %v1132
  %v1168 = vmul.f32 %v542, %v1132
  %v1169 = vmul.f32 %v545, %v1132
  %v1170 = vmul.f32 %v550, %v1132
  %v1171 = vmul.f32 %v553, %v1132
  %v1172 = vmul.f32 %v558, %v1132
  %v1173 = vmul.f32 %v561, %v1132
  %v1174 = vmul.f32 %v566, %v1132
  %v1175 = vmul.f32 %v569, %v1132
  %v1176 = vmul.f32 %v574, %v1132
  %v1177 = vmul.f32 %v577, %v1132
  %v1178 = vmul.f32 %v582, %v1132
  %v1179 = vmul.f32 %v585, %v1132
  %v1180 = vmul.f32 %v590, %v1132
  %v1181 = vmul.f32 %v593, %v1132
  %v1182 = vmul.f32 %v598, %v1132
  %v1183 = vmul.f32 %v601, %v1132
  %v1184 = vmul.f32 %v606, %v1132
  %v1185 = vmul.f32 %v609, %v1132
  %v1186 = vmul.f32 %v614, %v1132
  %v1187 = vmul.f32 %v617, %v1132
  %v1188 = vmul.f32 %v622, %v1132
  %v1189 = vmul.f32 %v625, %v1132
  %v1190 = vmul.f32 %v630, %v1132
  %v1191 = vmul.f32 %v633, %v1132
  %v1192 = vmul.f32 %v638, %v1132
  %v1193 = vmul.f32 %v641, %v1132
  %v1194 = vmul.f32 %v646, %v1132
  %v1195 = vmul.f32 %v649, %v1132
  %v1196 = vmul.f32 %v654, %v1132
  %v1197 = vmul.f32 %v657, %v1132
  %v1199 = vlaneseq
  %v1200 = vshrl.u32 %v1199, 7
  %v1201 = vsub.s32 0, %v1200
  %v1202 = vrot.slane %v1127, %v1201
  %v1204 = vadd.f32 %v1134, %v1202
  %v1205 = vadd.f32 %v1135, %v1202
  %v1206 = vadd.f32 %v1136, %v1202
  %v1207 = vadd.f32 %v1137, %v1202
  %v1208 = vadd.f32 %v1138, %v1202
  %v1209 = vadd.f32 %v1139, %v1202
  %v1210 = vadd.f32 %v1140, %v1202
  %v1211 = vadd.f32 %v1141, %v1202
  %v1212 = vadd.f32 %v1142, %v1202
  %v1213 = vadd.f32 %v1143, %v1202
  %v1214 = vadd.f32 %v1144, %v1202
  %v1215 = vadd.f32 %v1145, %v1202
  %v1216 = vadd.f32 %v1146, %v1202
  %v1217 = vadd.f32 %v1147, %v1202
  %v1218 = vadd.f32 %v1148, %v1202
  %v1219 = vadd.f32 %v1149, %v1202
  %v1220 = vadd.f32 %v1150, %v1202
  %v1221 = vadd.f32 %v1151, %v1202
  %v1222 = vadd.f32 %v1152, %v1202
  %v1223 = vadd.f32 %v1153, %v1202
  %v1224 = vadd.f32 %v1154, %v1202
  %v1225 = vadd.f32 %v1155, %v1202
  %v1226 = vadd.f32 %v1156, %v1202
  %v1227 = vadd.f32 %v1157, %v1202
  %v1228 = vadd.f32 %v1158, %v1202
  %v1229 = vadd.f32 %v1159, %v1202
  %v1230 = vadd.f32 %v1160, %v1202
  %v1231 = vadd.f32 %v1161, %v1202
  %v1232 = vadd.f32 %v1162, %v1202
  %v1233 = vadd.f32 %v1163, %v1202
  %v1234 = vadd.f32 %v1164, %v1202
  %v1235 = vadd.f32 %v1165, %v1202
  %v1236 = vadd.f32 %v1166, %v1202
  %v1237 = vadd.f32 %v1167, %v1202
  %v1238 = vadd.f32 %v1168, %v1202
  %v1239 = vadd.f32 %v1169, %v1202
  %v1240 = vadd.f32 %v1170, %v1202
  %v1241 = vadd.f32 %v1171, %v1202
  %v1242 = vadd.f32 %v1172, %v1202
  %v1243 = vadd.f32 %v1173, %v1202
  %v1244 = vadd.f32 %v1174, %v1202
  %v1245 = vadd.f32 %v1175, %v1202
  %v1246 = vadd.f32 %v1176, %v1202
  %v1247 = vadd.f32 %v1177, %v1202
  %v1248 = vadd.f32 %v1178, %v1202
  %v1249 = vadd.f32 %v1179, %v1202
  %v1250 = vadd.f32 %v1180, %v1202
  %v1251 = vadd.f32 %v1181, %v1202
  %v1252 = vadd.f32 %v1182, %v1202
  %v1253 = vadd.f32 %v1183, %v1202
  %v1254 = vadd.f32 %v1184, %v1202
  %v1255 = vadd.f32 %v1185, %v1202
  %v1256 = vadd.f32 %v1186, %v1202
  %v1257 = vadd.f32 %v1187, %v1202
  %v1258 = vadd.f32 %v1188, %v1202
  %v1259 = vadd.f32 %v1189, %v1202
  %v1260 = vadd.f32 %v1190, %v1202
  %v1261 = vadd.f32 %v1191, %v1202
  %v1262 = vadd.f32 %v1192, %v1202
  %v1263 = vadd.f32 %v1193, %v1202
  %v1264 = vadd.f32 %v1194, %v1202
  %v1265 = vadd.f32 %v1195, %v1202
  %v1266 = vadd.f32 %v1196, %v1202
  %v1267 = vadd.f32 %v1197, %v1202
  %vm1268 = vcmp.gt.f32.partialorder %v1204, 0.0
  %vm1269 = vcmp.gt.f32.partialorder %v1205, 0.0
  %vm1270 = vcmp.gt.f32.partialorder %v1206, 0.0
  %vm1271 = vcmp.gt.f32.partialorder %v1207, 0.0
  %vm1272 = vcmp.gt.f32.partialorder %v1208, 0.0
  %vm1273 = vcmp.gt.f32.partialorder %v1209, 0.0
  %vm1274 = vcmp.gt.f32.partialorder %v1210, 0.0
  %vm1275 = vcmp.gt.f32.partialorder %v1211, 0.0
  %vm1276 = vcmp.gt.f32.partialorder %v1212, 0.0
  %vm1277 = vcmp.gt.f32.partialorder %v1213, 0.0
  %vm1278 = vcmp.gt.f32.partialorder %v1214, 0.0
  %vm1279 = vcmp.gt.f32.partialorder %v1215, 0.0
  %vm1280 = vcmp.gt.f32.partialorder %v1216, 0.0
  %vm1281 = vcmp.gt.f32.partialorder %v1217, 0.0
  %vm1282 = vcmp.gt.f32.partialorder %v1218, 0.0
  %vm1283 = vcmp.gt.f32.partialorder %v1219, 0.0
  %vm1284 = vcmp.gt.f32.partialorder %v1220, 0.0
  %vm1285 = vcmp.gt.f32.partialorder %v1221, 0.0
  %vm1286 = vcmp.gt.f32.partialorder %v1222, 0.0
  %vm1287 = vcmp.gt.f32.partialorder %v1223, 0.0
  %vm1288 = vcmp.gt.f32.partialorder %v1224, 0.0
  %vm1289 = vcmp.gt.f32.partialorder %v1225, 0.0
  %vm1290 = vcmp.gt.f32.partialorder %v1226, 0.0
  %vm1291 = vcmp.gt.f32.partialorder %v1227, 0.0
  %vm1292 = vcmp.gt.f32.partialorder %v1228, 0.0
  %vm1293 = vcmp.gt.f32.partialorder %v1229, 0.0
  %vm1294 = vcmp.gt.f32.partialorder %v1230, 0.0
  %vm1295 = vcmp.gt.f32.partialorder %v1231, 0.0
  %vm1296 = vcmp.gt.f32.partialorder %v1232, 0.0
  %vm1297 = vcmp.gt.f32.partialorder %v1233, 0.0
  %vm1298 = vcmp.gt.f32.partialorder %v1234, 0.0
  %vm1299 = vcmp.gt.f32.partialorder %v1235, 0.0
  %vm1300 = vcmp.gt.f32.partialorder %v1236, 0.0
  %vm1301 = vcmp.gt.f32.partialorder %v1237, 0.0
  %vm1302 = vcmp.gt.f32.partialorder %v1238, 0.0
  %vm1303 = vcmp.gt.f32.partialorder %v1239, 0.0
  %vm1304 = vcmp.gt.f32.partialorder %v1240, 0.0
  %vm1305 = vcmp.gt.f32.partialorder %v1241, 0.0
  %vm1306 = vcmp.gt.f32.partialorder %v1242, 0.0
  %vm1307 = vcmp.gt.f32.partialorder %v1243, 0.0
  %vm1308 = vcmp.gt.f32.partialorder %v1244, 0.0
  %vm1309 = vcmp.gt.f32.partialorder %v1245, 0.0
  %vm1310 = vcmp.gt.f32.partialorder %v1246, 0.0
  %vm1311 = vcmp.gt.f32.partialorder %v1247, 0.0
  %vm1312 = vcmp.gt.f32.partialorder %v1248, 0.0
  %vm1313 = vcmp.gt.f32.partialorder %v1249, 0.0
  %vm1314 = vcmp.gt.f32.partialorder %v1250, 0.0
  %vm1315 = vcmp.gt.f32.partialorder %v1251, 0.0
  %vm1316 = vcmp.gt.f32.partialorder %v1252, 0.0
  %vm1317 = vcmp.gt.f32.partialorder %v1253, 0.0
  %vm1318 = vcmp.gt.f32.partialorder %v1254, 0.0
  %vm1319 = vcmp.gt.f32.partialorder %v1255, 0.0
  %vm1320 = vcmp.gt.f32.partialorder %v1256, 0.0
  %vm1321 = vcmp.gt.f32.partialorder %v1257, 0.0
  %vm1322 = vcmp.gt.f32.partialorder %v1258, 0.0
  %vm1323 = vcmp.gt.f32.partialorder %v1259, 0.0
  %vm1324 = vcmp.gt.f32.partialorder %v1260, 0.0
  %vm1325 = vcmp.gt.f32.partialorder %v1261, 0.0
  %vm1326 = vcmp.gt.f32.partialorder %v1262, 0.0
  %vm1327 = vcmp.gt.f32.partialorder %v1263, 0.0
  %vm1328 = vcmp.gt.f32.partialorder %v1264, 0.0
  %vm1329 = vcmp.gt.f32.partialorder %v1265, 0.0
  %vm1330 = vcmp.gt.f32.partialorder %v1266, 0.0
  %vm1331 = vcmp.gt.f32.partialorder %v1267, 0.0
  %v1332 = vmul.f32 %v1204, 0.2
  %v1333 = vmul.f32 %v1205, 0.2
  %v1334 = vmul.f32 %v1206, 0.2
  %v1335 = vmul.f32 %v1207, 0.2
  %v1336 = vmul.f32 %v1208, 0.2
  %v1337 = vmul.f32 %v1209, 0.2
  %v1338 = vmul.f32 %v1210, 0.2
  %v1339 = vmul.f32 %v1211, 0.2
  %v1340 = vmul.f32 %v1212, 0.2
  %v1341 = vmul.f32 %v1213, 0.2
  %v1342 = vmul.f32 %v1214, 0.2
  %v1343 = vmul.f32 %v1215, 0.2
  %v1344 = vmul.f32 %v1216, 0.2
  %v1345 = vmul.f32 %v1217, 0.2
  %v1346 = vmul.f32 %v1218, 0.2
  %v1347 = vmul.f32 %v1219, 0.2
  %v1348 = vmul.f32 %v1220, 0.2
  %v1349 = vmul.f32 %v1221, 0.2
  %v1350 = vmul.f32 %v1222, 0.2
  %v1351 = vmul.f32 %v1223, 0.2
  %v1352 = vmul.f32 %v1224, 0.2
  %v1353 = vmul.f32 %v1225, 0.2
  %v1354 = vmul.f32 %v1226, 0.2
  %v1355 = vmul.f32 %v1227, 0.2
  %v1356 = vmul.f32 %v1228, 0.2
  %v1357 = vmul.f32 %v1229, 0.2
  %v1358 = vmul.f32 %v1230, 0.2
  %v1359 = vmul.f32 %v1231, 0.2
  %v1360 = vmul.f32 %v1232, 0.2
  %v1361 = vmul.f32 %v1233, 0.2
  %v1362 = vmul.f32 %v1234, 0.2
  %v1363 = vmul.f32 %v1235, 0.2
  %v1364 = vmul.f32 %v1236, 0.2
  %v1365 = vmul.f32 %v1237, 0.2
  %v1366 = vmul.f32 %v1238, 0.2
  %v1367 = vmul.f32 %v1239, 0.2
  %v1368 = vmul.f32 %v1240, 0.2
  %v1369 = vmul.f32 %v1241, 0.2
  %v1370 = vmul.f32 %v1242, 0.2
  %v1371 = vmul.f32 %v1243, 0.2
  %v1372 = vmul.f32 %v1244, 0.2
  %v1373 = vmul.f32 %v1245, 0.2
  %v1374 = vmul.f32 %v1246, 0.2
  %v1375 = vmul.f32 %v1247, 0.2
  %v1376 = vmul.f32 %v1248, 0.2
  %v1377 = vmul.f32 %v1249, 0.2
  %v1378 = vmul.f32 %v1250, 0.2
  %v1379 = vmul.f32 %v1251, 0.2
  %v1380 = vmul.f32 %v1252, 0.2
  %v1381 = vmul.f32 %v1253, 0.2
  %v1382 = vmul.f32 %v1254, 0.2
  %v1383 = vmul.f32 %v1255, 0.2
  %v1384 = vmul.f32 %v1256, 0.2
  %v1385 = vmul.f32 %v1257, 0.2
  %v1386 = vmul.f32 %v1258, 0.2
  %v1387 = vmul.f32 %v1259, 0.2
  %v1388 = vmul.f32 %v1260, 0.2
  %v1389 = vmul.f32 %v1261, 0.2
  %v1390 = vmul.f32 %v1262, 0.2
  %v1391 = vmul.f32 %v1263, 0.2
  %v1392 = vmul.f32 %v1264, 0.2
  %v1393 = vmul.f32 %v1265, 0.2
  %v1394 = vmul.f32 %v1266, 0.2
  %v1395 = vmul.f32 %v1267, 0.2
  %v1396 = vsel %vm1268, %v1204, %v1332
  %v1397 = vsel %vm1269, %v1205, %v1333
  %v1398 = vsel %vm1270, %v1206, %v1334
  %v1399 = vsel %vm1271, %v1207, %v1335
  %v1400 = vsel %vm1272, %v1208, %v1336
  %v1401 = vsel %vm1273, %v1209, %v1337
  %v1402 = vsel %vm1274, %v1210, %v1338
  %v1403 = vsel %vm1275, %v1211, %v1339
  %v1404 = vsel %vm1276, %v1212, %v1340
  %v1405 = vsel %vm1277, %v1213, %v1341
  %v1406 = vsel %vm1278, %v1214, %v1342
  %v1407 = vsel %vm1279, %v1215, %v1343
  %v1408 = vsel %vm1280, %v1216, %v1344
  %v1409 = vsel %vm1281, %v1217, %v1345
  %v1410 = vsel %vm1282, %v1218, %v1346
  %v1411 = vsel %vm1283, %v1219, %v1347
  %v1412 = vsel %vm1284, %v1220, %v1348
  %v1413 = vsel %vm1285, %v1221, %v1349
  %v1414 = vsel %vm1286, %v1222, %v1350
  %v1415 = vsel %vm1287, %v1223, %v1351
  %v1416 = vsel %vm1288, %v1224, %v1352
  %v1417 = vsel %vm1289, %v1225, %v1353
  %v1418 = vsel %vm1290, %v1226, %v1354
  %v1419 = vsel %vm1291, %v1227, %v1355
  %v1420 = vsel %vm1292, %v1228, %v1356
  %v1421 = vsel %vm1293, %v1229, %v1357
  %v1422 = vsel %vm1294, %v1230, %v1358
  %v1423 = vsel %vm1295, %v1231, %v1359
  %v1424 = vsel %vm1296, %v1232, %v1360
  %v1425 = vsel %vm1297, %v1233, %v1361
  %v1426 = vsel %vm1298, %v1234, %v1362
  %v1427 = vsel %vm1299, %v1235, %v1363
  %v1428 = vsel %vm1300, %v1236, %v1364
  %v1429 = vsel %vm1301, %v1237, %v1365
  %v1430 = vsel %vm1302, %v1238, %v1366
  %v1431 = vsel %vm1303, %v1239, %v1367
  %v1432 = vsel %vm1304, %v1240, %v1368
  %v1433 = vsel %vm1305, %v1241, %v1369
  %v1434 = vsel %vm1306, %v1242, %v1370
  %v1435 = vsel %vm1307, %v1243, %v1371
  %v1436 = vsel %vm1308, %v1244, %v1372
  %v1437 = vsel %vm1309, %v1245, %v1373
  %v1438 = vsel %vm1310, %v1246, %v1374
  %v1439 = vsel %vm1311, %v1247, %v1375
  %v1440 = vsel %vm1312, %v1248, %v1376
  %v1441 = vsel %vm1313, %v1249, %v1377
  %v1442 = vsel %vm1314, %v1250, %v1378
  %v1443 = vsel %vm1315, %v1251, %v1379
  %v1444 = vsel %vm1316, %v1252, %v1380
  %v1445 = vsel %vm1317, %v1253, %v1381
  %v1446 = vsel %vm1318, %v1254, %v1382
  %v1447 = vsel %vm1319, %v1255, %v1383
  %v1448 = vsel %vm1320, %v1256, %v1384
  %v1449 = vsel %vm1321, %v1257, %v1385
  %v1450 = vsel %vm1322, %v1258, %v1386
  %v1451 = vsel %vm1323, %v1259, %v1387
  %v1452 = vsel %vm1324, %v1260, %v1388
  %v1453 = vsel %vm1325, %v1261, %v1389
  %v1454 = vsel %vm1326, %v1262, %v1390
  %v1455 = vsel %vm1327, %v1263, %v1391
  %v1456 = vsel %vm1328, %v1264, %v1392
  %v1457 = vsel %vm1329, %v1265, %v1393
  %v1458 = vsel %vm1330, %v1266, %v1394
  %v1459 = vsel %vm1331, %v1267, %v1395
  %v1460 = vpack.c.bf16 %v1397, %v1396
  %v1461 = vpack.c.bf16 %v1399, %v1398
  %v1462 = vpack.c.bf16 %v1401, %v1400
  %v1463 = vpack.c.bf16 %v1403, %v1402
  %v1464 = vpack.c.bf16 %v1405, %v1404
  %v1465 = vpack.c.bf16 %v1407, %v1406
  %v1466 = vpack.c.bf16 %v1409, %v1408
  %v1467 = vpack.c.bf16 %v1411, %v1410
  %v1468 = vpack.c.bf16 %v1413, %v1412
  %v1469 = vpack.c.bf16 %v1415, %v1414
  %v1470 = vpack.c.bf16 %v1417, %v1416
  %v1471 = vpack.c.bf16 %v1419, %v1418
  %v1472 = vpack.c.bf16 %v1421, %v1420
  %v1473 = vpack.c.bf16 %v1423, %v1422
  %v1474 = vpack.c.bf16 %v1425, %v1424
  %v1475 = vpack.c.bf16 %v1427, %v1426
  %v1476 = vpack.c.bf16 %v1429, %v1428
  %v1477 = vpack.c.bf16 %v1431, %v1430
  %v1478 = vpack.c.bf16 %v1433, %v1432
  %v1479 = vpack.c.bf16 %v1435, %v1434
  %v1480 = vpack.c.bf16 %v1437, %v1436
  %v1481 = vpack.c.bf16 %v1439, %v1438
  %v1482 = vpack.c.bf16 %v1441, %v1440
  %v1483 = vpack.c.bf16 %v1443, %v1442
  %v1484 = vpack.c.bf16 %v1445, %v1444
  %v1485 = vpack.c.bf16 %v1447, %v1446
  %v1486 = vpack.c.bf16 %v1449, %v1448
  %v1487 = vpack.c.bf16 %v1451, %v1450
  %v1488 = vpack.c.bf16 %v1453, %v1452
  %v1489 = vpack.c.bf16 %v1455, %v1454
  %v1490 = vpack.c.bf16 %v1457, %v1456
  %v1491 = vpack.c.bf16 %v1459, %v1458
  %v1524 = vunpack.c.l.b16 %v1460
  %v1525 = vunpack.c.h.b16 %v1460
  %v1526 = vunpack.c.l.b16 %v1461
  %v1527 = vunpack.c.h.b16 %v1461
  %v1528 = vunpack.c.l.b16 %v1462
  %v1529 = vunpack.c.h.b16 %v1462
  %v1530 = vunpack.c.l.b16 %v1463
  %v1531 = vunpack.c.h.b16 %v1463
  %v1532 = vunpack.c.l.b16 %v1464
  %v1533 = vunpack.c.h.b16 %v1464
  %v1534 = vunpack.c.l.b16 %v1465
  %v1535 = vunpack.c.h.b16 %v1465
  %v1536 = vunpack.c.l.b16 %v1466
  %v1537 = vunpack.c.h.b16 %v1466
  %v1538 = vunpack.c.l.b16 %v1467
  %v1539 = vunpack.c.h.b16 %v1467
  %v1540 = vunpack.c.l.b16 %v1468
  %v1541 = vunpack.c.h.b16 %v1468
  %v1542 = vunpack.c.l.b16 %v1469
  %v1543 = vunpack.c.h.b16 %v1469
  %v1544 = vunpack.c.l.b16 %v1470
  %v1545 = vunpack.c.h.b16 %v1470
  %v1546 = vunpack.c.l.b16 %v1471
  %v1547 = vunpack.c.h.b16 %v1471
  %v1548 = vunpack.c.l.b16 %v1472
  %v1549 = vunpack.c.h.b16 %v1472
  %v1550 = vunpack.c.l.b16 %v1473
  %v1551 = vunpack.c.h.b16 %v1473
  %v1552 = vunpack.c.l.b16 %v1474
  %v1553 = vunpack.c.h.b16 %v1474
  %v1554 = vunpack.c.l.b16 %v1475
  %v1555 = vunpack.c.h.b16 %v1475
  %v1556 = vunpack.c.l.b16 %v1476
  %v1557 = vunpack.c.h.b16 %v1476
  %v1558 = vunpack.c.l.b16 %v1477
  %v1559 = vunpack.c.h.b16 %v1477
  %v1560 = vunpack.c.l.b16 %v1478
  %v1561 = vunpack.c.h.b16 %v1478
  %v1562 = vunpack.c.l.b16 %v1479
  %v1563 = vunpack.c.h.b16 %v1479
  %v1564 = vunpack.c.l.b16 %v1480
  %v1565 = vunpack.c.h.b16 %v1480
  %v1566 = vunpack.c.l.b16 %v1481
  %v1567 = vunpack.c.h.b16 %v1481
  %v1568 = vunpack.c.l.b16 %v1482
  %v1569 = vunpack.c.h.b16 %v1482
  %v1570 = vunpack.c.l.b16 %v1483
  %v1571 = vunpack.c.h.b16 %v1483
  %v1572 = vunpack.c.l.b16 %v1484
  %v1573 = vunpack.c.h.b16 %v1484
  %v1574 = vunpack.c.l.b16 %v1485
  %v1575 = vunpack.c.h.b16 %v1485
  %v1576 = vunpack.c.l.b16 %v1486
  %v1577 = vunpack.c.h.b16 %v1486
  %v1578 = vunpack.c.l.b16 %v1487
  %v1579 = vunpack.c.h.b16 %v1487
  %v1580 = vunpack.c.l.b16 %v1488
  %v1581 = vunpack.c.h.b16 %v1488
  %v1582 = vunpack.c.l.b16 %v1489
  %v1583 = vunpack.c.h.b16 %v1489
  %v1584 = vunpack.c.l.b16 %v1490
  %v1585 = vunpack.c.h.b16 %v1490
  %v1586 = vunpack.c.l.b16 %v1491
  %v1587 = vunpack.c.h.b16 %v1491
  %v1588 = vpack.c.b16 %v1524, %v1524
  %v1589 = vpack.c.b16 %v1525, %v1525
  %v1590 = vpack.c.b16 %v1526, %v1526
  %v1591 = vpack.c.b16 %v1527, %v1527
  %v1592 = vpack.c.b16 %v1528, %v1528
  %v1593 = vpack.c.b16 %v1529, %v1529
  %v1594 = vpack.c.b16 %v1530, %v1530
  %v1595 = vpack.c.b16 %v1531, %v1531
  %v1596 = vpack.c.b16 %v1532, %v1532
  %v1597 = vpack.c.b16 %v1533, %v1533
  %v1598 = vpack.c.b16 %v1534, %v1534
  %v1599 = vpack.c.b16 %v1535, %v1535
  %v1600 = vpack.c.b16 %v1536, %v1536
  %v1601 = vpack.c.b16 %v1537, %v1537
  %v1602 = vpack.c.b16 %v1538, %v1538
  %v1603 = vpack.c.b16 %v1539, %v1539
  %v1604 = vpack.c.b16 %v1540, %v1540
  %v1605 = vpack.c.b16 %v1541, %v1541
  %v1606 = vpack.c.b16 %v1542, %v1542
  %v1607 = vpack.c.b16 %v1543, %v1543
  %v1608 = vpack.c.b16 %v1544, %v1544
  %v1609 = vpack.c.b16 %v1545, %v1545
  %v1610 = vpack.c.b16 %v1546, %v1546
  %v1611 = vpack.c.b16 %v1547, %v1547
  %v1612 = vpack.c.b16 %v1548, %v1548
  %v1613 = vpack.c.b16 %v1549, %v1549
  %v1614 = vpack.c.b16 %v1550, %v1550
  %v1615 = vpack.c.b16 %v1551, %v1551
  %v1616 = vpack.c.b16 %v1552, %v1552
  %v1617 = vpack.c.b16 %v1553, %v1553
  %v1618 = vpack.c.b16 %v1554, %v1554
  %v1619 = vpack.c.b16 %v1555, %v1555
  %v1620 = vpack.c.b16 %v1556, %v1556
  %v1621 = vpack.c.b16 %v1557, %v1557
  %v1622 = vpack.c.b16 %v1558, %v1558
  %v1623 = vpack.c.b16 %v1559, %v1559
  %v1624 = vpack.c.b16 %v1560, %v1560
  %v1625 = vpack.c.b16 %v1561, %v1561
  %v1626 = vpack.c.b16 %v1562, %v1562
  %v1627 = vpack.c.b16 %v1563, %v1563
  %v1628 = vpack.c.b16 %v1564, %v1564
  %v1629 = vpack.c.b16 %v1565, %v1565
  %v1630 = vpack.c.b16 %v1566, %v1566
  %v1631 = vpack.c.b16 %v1567, %v1567
  %v1632 = vpack.c.b16 %v1568, %v1568
  %v1633 = vpack.c.b16 %v1569, %v1569
  %v1634 = vpack.c.b16 %v1570, %v1570
  %v1635 = vpack.c.b16 %v1571, %v1571
  %v1636 = vpack.c.b16 %v1572, %v1572
  %v1637 = vpack.c.b16 %v1573, %v1573
  %v1638 = vpack.c.b16 %v1574, %v1574
  %v1639 = vpack.c.b16 %v1575, %v1575
  %v1640 = vpack.c.b16 %v1576, %v1576
  %v1641 = vpack.c.b16 %v1577, %v1577
  %v1642 = vpack.c.b16 %v1578, %v1578
  %v1643 = vpack.c.b16 %v1579, %v1579
  %v1644 = vpack.c.b16 %v1580, %v1580
  %v1645 = vpack.c.b16 %v1581, %v1581
  %v1646 = vpack.c.b16 %v1582, %v1582
  %v1647 = vpack.c.b16 %v1583, %v1583
  %v1648 = vpack.c.b16 %v1584, %v1584
  %v1649 = vpack.c.b16 %v1585, %v1585
  %v1650 = vpack.c.b16 %v1586, %v1586
  %v1651 = vpack.c.b16 %v1587, %v1587
  %1716 = vst [vmem:[%s4] sm:$0xf] %v1588
  %1717 = vst [vmem:[%s4 + $0x4] sm:$0xf] %v1589
  %1718 = vst [vmem:[%s4 + $0x8] sm:$0xf] %v1590
  %1719 = vst [vmem:[%s4 + $0xc] sm:$0xf] %v1591
  %1720 = vst [vmem:[%s4 + $0x10] sm:$0xf] %v1592
  %1721 = vst [vmem:[%s4 + $0x14] sm:$0xf] %v1593
  %1722 = vst [vmem:[%s4 + $0x18] sm:$0xf] %v1594
  %1723 = vst [vmem:[%s4 + $0x1c] sm:$0xf] %v1595
  %1724 = vst [vmem:[%s4 + $0x20] sm:$0xf] %v1596
  %1725 = vst [vmem:[%s4 + $0x24] sm:$0xf] %v1597
  %1726 = vst [vmem:[%s4 + $0x28] sm:$0xf] %v1598
  %1727 = vst [vmem:[%s4 + $0x2c] sm:$0xf] %v1599
  %1728 = vst [vmem:[%s4 + $0x30] sm:$0xf] %v1600
  %1729 = vst [vmem:[%s4 + $0x34] sm:$0xf] %v1601
  %1730 = vst [vmem:[%s4 + $0x38] sm:$0xf] %v1602
  %1731 = vst [vmem:[%s4 + $0x3c] sm:$0xf] %v1603
  %1732 = vst [vmem:[%s4 + $0x40] sm:$0xf] %v1604
  %1733 = vst [vmem:[%s4 + $0x44] sm:$0xf] %v1605
  %1734 = vst [vmem:[%s4 + $0x48] sm:$0xf] %v1606
  %1735 = vst [vmem:[%s4 + $0x4c] sm:$0xf] %v1607
  %1736 = vst [vmem:[%s4 + $0x50] sm:$0xf] %v1608
  %1737 = vst [vmem:[%s4 + $0x54] sm:$0xf] %v1609
  %1738 = vst [vmem:[%s4 + $0x58] sm:$0xf] %v1610
  %1739 = vst [vmem:[%s4 + $0x5c] sm:$0xf] %v1611
  %1740 = vst [vmem:[%s4 + $0x60] sm:$0xf] %v1612
  %1741 = vst [vmem:[%s4 + $0x64] sm:$0xf] %v1613
  %1742 = vst [vmem:[%s4 + $0x68] sm:$0xf] %v1614
  %1743 = vst [vmem:[%s4 + $0x6c] sm:$0xf] %v1615
  %1744 = vst [vmem:[%s4 + $0x70] sm:$0xf] %v1616
  %1745 = vst [vmem:[%s4 + $0x74] sm:$0xf] %v1617
  %1746 = vst [vmem:[%s4 + $0x78] sm:$0xf] %v1618
  %1747 = vst [vmem:[%s4 + $0x7c] sm:$0xf] %v1619
  %1748 = vst [vmem:[%s4 + $0x80] sm:$0xf] %v1620
  %1749 = vst [vmem:[%s4 + $0x84] sm:$0xf] %v1621
  %1750 = vst [vmem:[%s4 + $0x88] sm:$0xf] %v1622
  %1751 = vst [vmem:[%s4 + $0x8c] sm:$0xf] %v1623
  %1752 = vst [vmem:[%s4 + $0x90] sm:$0xf] %v1624
  %1753 = vst [vmem:[%s4 + $0x94] sm:$0xf] %v1625
  %1754 = vst [vmem:[%s4 + $0x98] sm:$0xf] %v1626
  %1755 = vst [vmem:[%s4 + $0x9c] sm:$0xf] %v1627
  %1756 = vst [vmem:[%s4 + $0xa0] sm:$0xf] %v1628
  %1757 = vst [vmem:[%s4 + $0xa4] sm:$0xf] %v1629
  %1758 = vst [vmem:[%s4 + $0xa8] sm:$0xf] %v1630
  %1759 = vst [vmem:[%s4 + $0xac] sm:$0xf] %v1631
  %1760 = vst [vmem:[%s4 + $0xb0] sm:$0xf] %v1632
  %1761 = vst [vmem:[%s4 + $0xb4] sm:$0xf] %v1633
  %1762 = vst [vmem:[%s4 + $0xb8] sm:$0xf] %v1634
  %1763 = vst [vmem:[%s4 + $0xbc] sm:$0xf] %v1635
  %1764 = vst [vmem:[%s4 + $0xc0] sm:$0xf] %v1636
  %1765 = vst [vmem:[%s4 + $0xc4] sm:$0xf] %v1637
  %1766 = vst [vmem:[%s4 + $0xc8] sm:$0xf] %v1638
  %1767 = vst [vmem:[%s4 + $0xcc] sm:$0xf] %v1639
  %1768 = vst [vmem:[%s4 + $0xd0] sm:$0xf] %v1640
  %1769 = vst [vmem:[%s4 + $0xd4] sm:$0xf] %v1641
  %1770 = vst [vmem:[%s4 + $0xd8] sm:$0xf] %v1642
  %1771 = vst [vmem:[%s4 + $0xdc] sm:$0xf] %v1643
  %1772 = vst [vmem:[%s4 + $0xe0] sm:$0xf] %v1644
  %1773 = vst [vmem:[%s4 + $0xe4] sm:$0xf] %v1645
  %1774 = vst [vmem:[%s4 + $0xe8] sm:$0xf] %v1646
  %1775 = vst [vmem:[%s4 + $0xec] sm:$0xf] %v1647
  %1776 = vst [vmem:[%s4 + $0xf0] sm:$0xf] %v1648
  %1777 = vst [vmem:[%s4 + $0xf4] sm:$0xf] %v1649
  %1778 = vst [vmem:[%s4 + $0xf8] sm:$0xf] %v1650
  %1779 = vst [vmem:[%s4 + $0xfc] sm:$0xf] %v1651
  // Predicated region
  $region18: #{discriminator_forward.6} parent=0 // pred_check
    _
  $region19: #{discriminator_forward.6} parent=0 // pred_check_branch
    %1781 = sbr.rel (0) target = $region21
  $region20: #{discriminator_forward.6} parent=0 // pred_region
    _
  $region21: #{discriminator_forward.6} parent=0 // pred_fallthru
    _
  // Predicated region
  $region22: #{discriminator_forward.6} parent=0 // pred_check
    _
  $region23: #{discriminator_forward.6} parent=0 // pred_check_branch
    %1783 = sbr.rel (0) target = $region25
  $region24: #{discriminator_forward.6} parent=0 // pred_region
    _
  $region25: #{discriminator_forward.6} parent=0 // pred_fallthru
    _

// kernel: discriminator_forward.7
$region0: #{discriminator_forward.7}
  #allocation0 [shape = 'u32[]', space=smem, size = 0x4, offset = 0x4, fixed_abs, tag = 'smem constant byte address 0x4 - core index']
  #allocation1 [shape = 'u32[144,128]{1,0:T(1,128)}', space=vmem, size = 0x12000, scoped, tag = 'internal scratch']
  %s0 = inlined_call_operand.vmem [shape: bf16[128,128], index: 0, kind: input, shape index: {}]
  %s1 = inlined_call_operand.vmem [shape: bf16[128,128], index: 1, kind: input, shape index: {}]
  %s2 = inlined_call_operand.vmem [shape: f32[1,128], index: 2, kind: input, shape index: {}]
  %s3 = inlined_call_operand.vmem [shape: f32[1,128], index: 3, kind: input, shape index: {}]
  %s4 = inlined_call_operand.vmem [shape: bf16[128,128], index: 4, kind: output, shape index: {}]
  %s5 = sld [smem:[#allocation0]]
  $region26: #{discriminator_forward.7} parent=0
    _
  %s7 = ssub.s32 1, %s5
  %s8 = scalar_select 0, %s7, %s5
  // Predicated region
  $region2: #{discriminator_forward.7} parent=0 // pred_check
    _
  $region3: #{discriminator_forward.7} parent=0 // pred_check_branch
    %10 = sbr.rel (0) target = $region5
  $region4: #{discriminator_forward.7} parent=0 // pred_region
    _
  $region5: #{discriminator_forward.7} parent=0 // pred_fallthru
    _
  // Predicated region
  $region6: #{discriminator_forward.7} parent=0 // pred_check
    _
  $region7: #{discriminator_forward.7} parent=0 // pred_check_branch
    %12 = sbr.rel (0) target = $region9
  $region8: #{discriminator_forward.7} parent=0 // pred_region
    _
  $region9: #{discriminator_forward.7} parent=0 // pred_fallthru
    _
  // Predicated region
  $region10: #{discriminator_forward.7} parent=0 // pred_check
    _
  $region11: #{discriminator_forward.7} parent=0 // pred_check_branch
    %14 = sbr.rel (0) target = $region13
  $region12: #{discriminator_forward.7} parent=0 // pred_region
    _
  $region13: #{discriminator_forward.7} parent=0 // pred_fallthru
    _
  // Predicated region
  $region14: #{discriminator_forward.7} parent=0 // pred_check
    _
  $region15: #{discriminator_forward.7} parent=0 // pred_check_branch
    %16 = sbr.rel (0) target = $region17
  $region16: #{discriminator_forward.7} parent=0 // pred_region
    _
  $region17: #{discriminator_forward.7} parent=0 // pred_fallthru
    _
  %v18 = vld [vmem:[%s0] sm:$0xf]
  %v19 = vld [vmem:[%s0 + $0x4] sm:$0xf]
  %v20 = vld [vmem:[%s0 + $0x8] sm:$0xf]
  %v21 = vld [vmem:[%s0 + $0xc] sm:$0xf]
  %v22 = vld [vmem:[%s0 + $0x10] sm:$0xf]
  %v23 = vld [vmem:[%s0 + $0x14] sm:$0xf]
  %v24 = vld [vmem:[%s0 + $0x18] sm:$0xf]
  %v25 = vld [vmem:[%s0 + $0x1c] sm:$0xf]
  %v26 = vld [vmem:[%s0 + $0x20] sm:$0xf]
  %v27 = vld [vmem:[%s0 + $0x24] sm:$0xf]
  %v28 = vld [vmem:[%s0 + $0x28] sm:$0xf]
  %v29 = vld [vmem:[%s0 + $0x2c] sm:$0xf]
  %v30 = vld [vmem:[%s0 + $0x30] sm:$0xf]
  %v31 = vld [vmem:[%s0 + $0x34] sm:$0xf]
  %v32 = vld [vmem:[%s0 + $0x38] sm:$0xf]
  %v33 = vld [vmem:[%s0 + $0x3c] sm:$0xf]
  %v34 = vld [vmem:[%s1] sm:$0xf]
  %v35 = vld [vmem:[%s1 + $0x4] sm:$0xf]
  %v36 = vld [vmem:[%s1 + $0x8] sm:$0xf]
  %v37 = vld [vmem:[%s1 + $0xc] sm:$0xf]
  %v38 = vld [vmem:[%s1 + $0x10] sm:$0xf]
  %v39 = vld [vmem:[%s1 + $0x14] sm:$0xf]
  %v40 = vld [vmem:[%s1 + $0x18] sm:$0xf]
  %v41 = vld [vmem:[%s1 + $0x1c] sm:$0xf]
  %v42 = vld [vmem:[%s1 + $0x20] sm:$0xf]
  %v43 = vld [vmem:[%s1 + $0x24] sm:$0xf]
  %v44 = vld [vmem:[%s1 + $0x28] sm:$0xf]
  %v45 = vld [vmem:[%s1 + $0x2c] sm:$0xf]
  %v46 = vld [vmem:[%s1 + $0x30] sm:$0xf]
  %v47 = vld [vmem:[%s1 + $0x34] sm:$0xf]
  %v48 = vld [vmem:[%s1 + $0x38] sm:$0xf]
  %v49 = vld [vmem:[%s1 + $0x3c] sm:$0xf]
  %v66 = vunpack.c.l.b16 %v18
  %v67 = vunpack.c.l.b16 %v19
  %v68 = vunpack.c.l.b16 %v20
  %v69 = vunpack.c.l.b16 %v21
  %v70 = vunpack.c.l.b16 %v22
  %v71 = vunpack.c.l.b16 %v23
  %v72 = vunpack.c.l.b16 %v24
  %v73 = vunpack.c.l.b16 %v25
  %v74 = vunpack.c.l.b16 %v26
  %v75 = vunpack.c.l.b16 %v27
  %v76 = vunpack.c.l.b16 %v28
  %v77 = vunpack.c.l.b16 %v29
  %v78 = vunpack.c.l.b16 %v30
  %v79 = vunpack.c.l.b16 %v31
  %v80 = vunpack.c.l.b16 %v32
  %v81 = vunpack.c.l.b16 %v33
  %v82 = vpack.c.b16 %v67, %v66
  %v83 = vpack.c.b16 %v69, %v68
  %v84 = vpack.c.b16 %v71, %v70
  %v85 = vpack.c.b16 %v73, %v72
  %v86 = vpack.c.b16 %v75, %v74
  %v87 = vpack.c.b16 %v77, %v76
  %v88 = vpack.c.b16 %v79, %v78
  %v89 = vpack.c.b16 %v81, %v80
  %v114 = vunpack.c.l.b16 %v34
  %v115 = vunpack.c.l.b16 %v35
  %v116 = vunpack.c.l.b16 %v36
  %v117 = vunpack.c.l.b16 %v37
  %v118 = vunpack.c.l.b16 %v38
  %v119 = vunpack.c.l.b16 %v39
  %v120 = vunpack.c.l.b16 %v40
  %v121 = vunpack.c.l.b16 %v41
  %v122 = vunpack.c.l.b16 %v42
  %v123 = vunpack.c.l.b16 %v43
  %v124 = vunpack.c.l.b16 %v44
  %v125 = vunpack.c.l.b16 %v45
  %v126 = vunpack.c.l.b16 %v46
  %v127 = vunpack.c.l.b16 %v47
  %v128 = vunpack.c.l.b16 %v48
  %v129 = vunpack.c.l.b16 %v49
  %v130 = vpack.c.b16 %v115, %v114
  %v131 = vpack.c.b16 %v117, %v116
  %v132 = vpack.c.b16 %v119, %v118
  %v133 = vpack.c.b16 %v121, %v120
  %v134 = vpack.c.b16 %v123, %v122
  %v135 = vpack.c.b16 %v125, %v124
  %v136 = vpack.c.b16 %v127, %v126
  %v137 = vpack.c.b16 %v129, %v128
  %146 = vmatprep.subr.bf16.mxu0 0
  %147 = vmatpush1.bf16.msra.mxu0 %v130
  %148 = vmatprep.subr.bf16.mxu0 0
  %149 = vmatpush1.bf16.msra.mxu0 %v131
  %150 = vmatprep.subr.bf16.mxu0 0
  %151 = vmatpush1.bf16.msra.mxu0 %v132
  %152 = vmatprep.subr.bf16.mxu0 0
  %153 = vmatpush1.bf16.msra.mxu0 %v133
  %154 = vmatprep.subr.bf16.mxu0 0
  %155 = vmatpush1.bf16.msra.mxu0 %v134
  %156 = vmatprep.subr.bf16.mxu0 0
  %157 = vmatpush1.bf16.msra.mxu0 %v135
  %158 = vmatprep.subr.bf16.mxu0 0
  %159 = vmatpush1.bf16.msra.mxu0 %v136
  %160 = vmatprep.subr.bf16.mxu0 0
  %161 = vmatpush1.bf16.msra.mxu0 %v137
  %162 = vmatprep.subr.bf16.mxu0 0
  %163 = vmatpush1.bf16.msra.mxu0 0
  %164 = vmatprep.subr.bf16.mxu0 0
  %165 = vmatpush1.bf16.msra.mxu0 0
  %166 = vmatprep.subr.bf16.mxu0 0
  %167 = vmatpush1.bf16.msra.mxu0 0
  %168 = vmatprep.subr.bf16.mxu0 0
  %169 = vmatpush1.bf16.msra.mxu0 0
  %170 = vmatprep.subr.bf16.mxu0 0
  %171 = vmatpush1.bf16.msra.mxu0 0
  %172 = vmatprep.subr.bf16.mxu0 0
  %173 = vmatpush1.bf16.msra.mxu0 0
  %174 = vmatprep.subr.bf16.mxu0 0
  %175 = vmatpush1.bf16.msra.mxu0 0
  %176 = vmatprep.subr.bf16.mxu0 0
  %177 = vmatpush1.bf16.msra.mxu0 0
  %178 = vmatprep.mubr.bf16.mxu0 0
  %179 = vmatmul.mubr.bf16.gmra.mrb[0].mxu0 %v82
  %v180 = vpop.f32.mrb[0].mxu0
  %v181 = vadd.f32 0.0, %v180
  %v182 = vpop.f32.mrb[0].mxu0
  %v183 = vpop.f32.mrb[0].mxu0
  %v184 = vadd.f32 0.0, %v183
  %v185 = vpop.f32.mrb[0].mxu0
  %186 = vmatprep.mubr.bf16.mxu0 0
  %187 = vmatmul.mubr.bf16.gmra.mrb[0].mxu0 %v83
  %v188 = vpop.f32.mrb[0].mxu0
  %v189 = vadd.f32 0.0, %v188
  %v190 = vpop.f32.mrb[0].mxu0
  %v191 = vpop.f32.mrb[0].mxu0
  %v192 = vadd.f32 0.0, %v191
  %v193 = vpop.f32.mrb[0].mxu0
  %194 = vmatprep.mubr.bf16.mxu0 0
  %195 = vmatmul.mubr.bf16.gmra.mrb[0].mxu0 %v84
  %v196 = vpop.f32.mrb[0].mxu0
  %v197 = vadd.f32 0.0, %v196
  %v198 = vpop.f32.mrb[0].mxu0
  %v199 = vpop.f32.mrb[0].mxu0
  %v200 = vadd.f32 0.0, %v199
  %v201 = vpop.f32.mrb[0].mxu0
  %202 = vmatprep.mubr.bf16.mxu0 0
  %203 = vmatmul.mubr.bf16.gmra.mrb[0].mxu0 %v85
  %v204 = vpop.f32.mrb[0].mxu0
  %v205 = vadd.f32 0.0, %v204
  %v206 = vpop.f32.mrb[0].mxu0
  %v207 = vpop.f32.mrb[0].mxu0
  %v208 = vadd.f32 0.0, %v207
  %v209 = vpop.f32.mrb[0].mxu0
  %210 = vmatprep.mubr.bf16.mxu0 0
  %211 = vmatmul.mubr.bf16.gmra.mrb[0].mxu0 %v86
  %v212 = vpop.f32.mrb[0].mxu0
  %v213 = vadd.f32 0.0, %v212
  %v214 = vpop.f32.mrb[0].mxu0
  %v215 = vpop.f32.mrb[0].mxu0
  %v216 = vadd.f32 0.0, %v215
  %v217 = vpop.f32.mrb[0].mxu0
  %218 = vmatprep.mubr.bf16.mxu0 0
  %219 = vmatmul.mubr.bf16.gmra.mrb[0].mxu0 %v87
  %v220 = vpop.f32.mrb[0].mxu0
  %v221 = vadd.f32 0.0, %v220
  %v222 = vpop.f32.mrb[0].mxu0
  %v223 = vpop.f32.mrb[0].mxu0
  %v224 = vadd.f32 0.0, %v223
  %v225 = vpop.f32.mrb[0].mxu0
  %226 = vmatprep.mubr.bf16.mxu0 0
  %227 = vmatmul.mubr.bf16.gmra.mrb[0].mxu0 %v88
  %v228 = vpop.f32.mrb[0].mxu0
  %v229 = vadd.f32 0.0, %v228
  %v230 = vpop.f32.mrb[0].mxu0
  %v231 = vpop.f32.mrb[0].mxu0
  %v232 = vadd.f32 0.0, %v231
  %v233 = vpop.f32.mrb[0].mxu0
  %234 = vmatprep.mubr.bf16.mxu0 0
  %235 = vmatmul.mubr.bf16.gmra.mrb[0].mxu0 %v89
  %v236 = vpop.f32.mrb[0].mxu0
  %v237 = vadd.f32 0.0, %v236
  %v238 = vpop.f32.mrb[0].mxu0
  %v239 = vpop.f32.mrb[0].mxu0
  %v240 = vadd.f32 0.0, %v239
  %v241 = vpop.f32.mrb[0].mxu0
  %242 = vdwg.mxu0
  %v243 = vadd.f32 %v181, %v184
  %v244 = vadd.f32 %v243, %v189
  %v245 = vadd.f32 %v244, %v192
  %v246 = vadd.f32 %v245, %v197
  %v247 = vadd.f32 %v246, %v200
  %v248 = vadd.f32 %v247, %v205
  %v249 = vadd.f32 %v248, %v208
  %v250 = vadd.f32 %v249, %v213
  %v251 = vadd.f32 %v250, %v216
  %v252 = vadd.f32 %v251, %v221
  %v253 = vadd.f32 %v252, %v224
  %v254 = vadd.f32 %v253, %v229
  %v255 = vadd.f32 %v254, %v232
  %v256 = vadd.f32 %v255, %v237
  %v257 = vadd.f32 %v256, %v240
  %v258 = vrot.slane %v257, 4
  %v259 = vadd.f32 %v257, %v258
  %v260 = vrot.slane %v259, 2
  %v261 = vadd.f32 %v259, %v260
  %v262 = vrot.slane %v261, 1
  %v263 = vadd.f32 %v261, %v262
  %v264 = vmul.f32 %v263, 0.0078125
  %v265 = vlaneseq
  %v266 = vshrl.u32 %v265, 7
  %v267 = vadd.s32 %v266, 8
  %v268 = vadd.s32 %v266, 16
  %v269 = vadd.s32 %v266, 24
  %v270 = vadd.s32 %v266, 32
  %v271 = vadd.s32 %v266, 40
  %v272 = vadd.s32 %v266, 48
  %v273 = vadd.s32 %v266, 56
  %v274 = vadd.s32 %v266, 64
  %v275 = vadd.s32 %v266, 72
  %v276 = vadd.s32 %v266, 80
  %v277 = vadd.s32 %v266, 88
  %v278 = vadd.s32 %v266, 96
  %v279 = vadd.s32 %v266, 104
  %v280 = vadd.s32 %v266, 112
  %v281 = vadd.s32 %v266, 120
  %vm282 = vcmp.lt.s32.totalorder %v266, 128
  %vm283 = vcmp.lt.s32.totalorder %v267, 128
  %vm284 = vcmp.lt.s32.totalorder %v268, 128
  %vm285 = vcmp.lt.s32.totalorder %v269, 128
  %vm286 = vcmp.lt.s32.totalorder %v270, 128
  %vm287 = vcmp.lt.s32.totalorder %v271, 128
  %vm288 = vcmp.lt.s32.totalorder %v272, 128
  %vm289 = vcmp.lt.s32.totalorder %v273, 128
  %vm290 = vcmp.lt.s32.totalorder %v274, 128
  %vm291 = vcmp.lt.s32.totalorder %v275, 128
  %vm292 = vcmp.lt.s32.totalorder %v276, 128
  %vm293 = vcmp.lt.s32.totalorder %v277, 128
  %vm294 = vcmp.lt.s32.totalorder %v278, 128
  %vm295 = vcmp.lt.s32.totalorder %v279, 128
  %vm296 = vcmp.lt.s32.totalorder %v280, 128
  %vm297 = vcmp.lt.s32.totalorder %v281, 128
  %v298 = vsub.f32 %v181, %v264
  %v299 = vsub.f32 %v184, %v264
  %v300 = vsub.f32 %v189, %v264
  %v301 = vsub.f32 %v192, %v264
  %v302 = vsub.f32 %v197, %v264
  %v303 = vsub.f32 %v200, %v264
  %v304 = vsub.f32 %v205, %v264
  %v305 = vsub.f32 %v208, %v264
  %v306 = vsub.f32 %v213, %v264
  %v307 = vsub.f32 %v216, %v264
  %v308 = vsub.f32 %v221, %v264
  %v309 = vsub.f32 %v224, %v264
  %v310 = vsub.f32 %v229, %v264
  %v311 = vsub.f32 %v232, %v264
  %v312 = vsub.f32 %v237, %v264
  %v313 = vsub.f32 %v240, %v264
  %v314 = vsel %vm282, %v298, 0.0
  %v315 = vsel %vm283, %v299, 0.0
  %v316 = vsel %vm284, %v300, 0.0
  %v317 = vsel %vm285, %v301, 0.0
  %v318 = vsel %vm286, %v302, 0.0
  %v319 = vsel %vm287, %v303, 0.0
  %v320 = vsel %vm288, %v304, 0.0
  %v321 = vsel %vm289, %v305, 0.0
  %v322 = vsel %vm290, %v306, 0.0
  %v323 = vsel %vm291, %v307, 0.0
  %v324 = vsel %vm292, %v308, 0.0
  %v325 = vsel %vm293, %v309, 0.0
  %v326 = vsel %vm294, %v310, 0.0
  %v327 = vsel %vm295, %v311, 0.0
  %v328 = vsel %vm296, %v312, 0.0
  %v329 = vsel %vm297, %v313, 0.0
  %v330 = vmul.f32 %v314, %v314
  %v331 = vmul.f32 %v315, %v315
  %v332 = vmul.f32 %v316, %v316
  %v333 = vmul.f32 %v317, %v317
  %v334 = vmul.f32 %v318, %v318
  %v335 = vmul.f32 %v319, %v319
  %v336 = vmul.f32 %v320, %v320
  %v337 = vmul.f32 %v321, %v321
  %v338 = vmul.f32 %v322, %v322
  %v339 = vmul.f32 %v323, %v323
  %v340 = vmul.f32 %v324, %v324
  %v341 = vmul.f32 %v325, %v325
  %v342 = vmul.f32 %v326, %v326
  %v343 = vmul.f32 %v327, %v327
  %v344 = vmul.f32 %v328, %v328
  %v345 = vmul.f32 %v329, %v329
  %v346 = vadd.f32 %v330, %v331
  %v347 = vadd.f32 %v346, %v332
  %v348 = vadd.f32 %v347, %v333
  %v349 = vadd.f32 %v348, %v334
  %v350 = vadd.f32 %v349, %v335
  %v351 = vadd.f32 %v350, %v336
  %v352 = vadd.f32 %v351, %v337
  %v353 = vadd.f32 %v352, %v338
  %v354 = vadd.f32 %v353, %v339
  %v355 = vadd.f32 %v354, %v340
  %v356 = vadd.f32 %v355, %v341
  %v357 = vadd.f32 %v356, %v342
  %v358 = vadd.f32 %v357, %v343
  %v359 = vadd.f32 %v358, %v344
  %v360 = vadd.f32 %v359, %v345
  %v361 = vrot.slane %v360, 4
  %v362 = vadd.f32 %v360, %v361
  %v363 = vrot.slane %v362, 2
  %v364 = vadd.f32 %v362, %v363
  %v365 = vrot.slane %v364, 1
  %v366 = vadd.f32 %v364, %v365
  %v367 = vmul.f32 %v366, 0.0078125
  %v368 = vld [vmem:[%s2] sm:$0x1]
  %v369 = vadd.f32 %v367, 1e-05
  %v370 = vrsqrt.pop %v369
  %v371 = vmul.f32 %v368, %v370
  %v372 = vld [vmem:[%s3] sm:$0x1]
  %v373 = vmul.f32 %v264, %v371
  %v374 = vsub.f32 %v372, %v373
  %v376 = vlaneseq
  %v377 = vshrl.u32 %v376, 7
  %v378 = vsub.s32 0, %v377
  %v379 = vrot.slane %v371, %v378
  %v381 = vmul.f32 %v181, %v379
  %v382 = vmul.f32 %v184, %v379
  %v383 = vmul.f32 %v189, %v379
  %v384 = vmul.f32 %v192, %v379
  %v385 = vmul.f32 %v197, %v379
  %v386 = vmul.f32 %v200, %v379
  %v387 = vmul.f32 %v205, %v379
  %v388 = vmul.f32 %v208, %v379
  %v389 = vmul.f32 %v213, %v379
  %v390 = vmul.f32 %v216, %v379
  %v391 = vmul.f32 %v221, %v379
  %v392 = vmul.f32 %v224, %v379
  %v393 = vmul.f32 %v229, %v379
  %v394 = vmul.f32 %v232, %v379
  %v395 = vmul.f32 %v237, %v379
  %v396 = vmul.f32 %v240, %v379
  %v398 = vlaneseq
  %v399 = vshrl.u32 %v398, 7
  %v400 = vsub.s32 0, %v399
  %v401 = vrot.slane %v374, %v400
  %v403 = vadd.f32 %v381, %v401
  %v404 = vadd.f32 %v382, %v401
  %v405 = vadd.f32 %v383, %v401
  %v406 = vadd.f32 %v384, %v401
  %v407 = vadd.f32 %v385, %v401
  %v408 = vadd.f32 %v386, %v401
  %v409 = vadd.f32 %v387, %v401
  %v410 = vadd.f32 %v388, %v401
  %v411 = vadd.f32 %v389, %v401
  %v412 = vadd.f32 %v390, %v401
  %v413 = vadd.f32 %v391, %v401
  %v414 = vadd.f32 %v392, %v401
  %v415 = vadd.f32 %v393, %v401
  %v416 = vadd.f32 %v394, %v401
  %v417 = vadd.f32 %v395, %v401
  %v418 = vadd.f32 %v396, %v401
  %vm419 = vcmp.gt.f32.partialorder %v403, 0.0
  %vm420 = vcmp.gt.f32.partialorder %v404, 0.0
  %vm421 = vcmp.gt.f32.partialorder %v405, 0.0
  %vm422 = vcmp.gt.f32.partialorder %v406, 0.0
  %vm423 = vcmp.gt.f32.partialorder %v407, 0.0
  %vm424 = vcmp.gt.f32.partialorder %v408, 0.0
  %vm425 = vcmp.gt.f32.partialorder %v409, 0.0
  %vm426 = vcmp.gt.f32.partialorder %v410, 0.0
  %vm427 = vcmp.gt.f32.partialorder %v411, 0.0
  %vm428 = vcmp.gt.f32.partialorder %v412, 0.0
  %vm429 = vcmp.gt.f32.partialorder %v413, 0.0
  %vm430 = vcmp.gt.f32.partialorder %v414, 0.0
  %vm431 = vcmp.gt.f32.partialorder %v415, 0.0
  %vm432 = vcmp.gt.f32.partialorder %v416, 0.0
  %vm433 = vcmp.gt.f32.partialorder %v417, 0.0
  %vm434 = vcmp.gt.f32.partialorder %v418, 0.0
  %v435 = vmul.f32 %v403, 0.2
  %v436 = vmul.f32 %v404, 0.2
  %v437 = vmul.f32 %v405, 0.2
  %v438 = vmul.f32 %v406, 0.2
  %v439 = vmul.f32 %v407, 0.2
  %v440 = vmul.f32 %v408, 0.2
  %v441 = vmul.f32 %v409, 0.2
  %v442 = vmul.f32 %v410, 0.2
  %v443 = vmul.f32 %v411, 0.2
  %v444 = vmul.f32 %v412, 0.2
  %v445 = vmul.f32 %v413, 0.2
  %v446 = vmul.f32 %v414, 0.2
  %v447 = vmul.f32 %v415, 0.2
  %v448 = vmul.f32 %v416, 0.2
  %v449 = vmul.f32 %v417, 0.2
  %v450 = vmul.f32 %v418, 0.2
  %v451 = vsel %vm419, %v403, %v435
  %v452 = vsel %vm420, %v404, %v436
  %v453 = vsel %vm421, %v405, %v437
  %v454 = vsel %vm422, %v406, %v438
  %v455 = vsel %vm423, %v407, %v439
  %v456 = vsel %vm424, %v408, %v440
  %v457 = vsel %vm425, %v409, %v441
  %v458 = vsel %vm426, %v410, %v442
  %v459 = vsel %vm427, %v411, %v443
  %v460 = vsel %vm428, %v412, %v444
  %v461 = vsel %vm429, %v413, %v445
  %v462 = vsel %vm430, %v414, %v446
  %v463 = vsel %vm431, %v415, %v447
  %v464 = vsel %vm432, %v416, %v448
  %v465 = vsel %vm433, %v417, %v449
  %v466 = vsel %vm434, %v418, %v450
  %v467 = vpack.c.bf16 %v452, %v451
  %v468 = vpack.c.bf16 %v454, %v453
  %v469 = vpack.c.bf16 %v456, %v455
  %v470 = vpack.c.bf16 %v458, %v457
  %v471 = vpack.c.bf16 %v460, %v459
  %v472 = vpack.c.bf16 %v462, %v461
  %v473 = vpack.c.bf16 %v464, %v463
  %v474 = vpack.c.bf16 %v466, %v465
  %v483 = vunpack.c.l.b16 %v467
  %v484 = vunpack.c.h.b16 %v467
  %v485 = vunpack.c.l.b16 %v468
  %v486 = vunpack.c.h.b16 %v468
  %v487 = vunpack.c.l.b16 %v469
  %v488 = vunpack.c.h.b16 %v469
  %v489 = vunpack.c.l.b16 %v470
  %v490 = vunpack.c.h.b16 %v470
  %v491 = vunpack.c.l.b16 %v471
  %v492 = vunpack.c.h.b16 %v471
  %v493 = vunpack.c.l.b16 %v472
  %v494 = vunpack.c.h.b16 %v472
  %v495 = vunpack.c.l.b16 %v473
  %v496 = vunpack.c.h.b16 %v473
  %v497 = vunpack.c.l.b16 %v474
  %v498 = vunpack.c.h.b16 %v474
  %v499 = vpack.c.b16 %v483, %v483
  %v500 = vpack.c.b16 %v484, %v484
  %v501 = vpack.c.b16 %v485, %v485
  %v502 = vpack.c.b16 %v486, %v486
  %v503 = vpack.c.b16 %v487, %v487
  %v504 = vpack.c.b16 %v488, %v488
  %v505 = vpack.c.b16 %v489, %v489
  %v506 = vpack.c.b16 %v490, %v490
  %v507 = vpack.c.b16 %v491, %v491
  %v508 = vpack.c.b16 %v492, %v492
  %v509 = vpack.c.b16 %v493, %v493
  %v510 = vpack.c.b16 %v494, %v494
  %v511 = vpack.c.b16 %v495, %v495
  %v512 = vpack.c.b16 %v496, %v496
  %v513 = vpack.c.b16 %v497, %v497
  %v514 = vpack.c.b16 %v498, %v498
  %531 = vst [vmem:[%s4] sm:$0xf] %v499
  %532 = vst [vmem:[%s4 + $0x4] sm:$0xf] %v500
  %533 = vst [vmem:[%s4 + $0x8] sm:$0xf] %v501
  %534 = vst [vmem:[%s4 + $0xc] sm:$0xf] %v502
  %535 = vst [vmem:[%s4 + $0x10] sm:$0xf] %v503
  %536 = vst [vmem:[%s4 + $0x14] sm:$0xf] %v504
  %537 = vst [vmem:[%s4 + $0x18] sm:$0xf] %v505
  %538 = vst [vmem:[%s4 + $0x1c] sm:$0xf] %v506
  %539 = vst [vmem:[%s4 + $0x20] sm:$0xf] %v507
  %540 = vst [vmem:[%s4 + $0x24] sm:$0xf] %v508
  %541 = vst [vmem:[%s4 + $0x28] sm:$0xf] %v509
  %542 = vst [vmem:[%s4 + $0x2c] sm:$0xf] %v510
  %543 = vst [vmem:[%s4 + $0x30] sm:$0xf] %v511
  %544 = vst [vmem:[%s4 + $0x34] sm:$0xf] %v512
  %545 = vst [vmem:[%s4 + $0x38] sm:$0xf] %v513
  %546 = vst [vmem:[%s4 + $0x3c] sm:$0xf] %v514
  // Predicated region
  $region18: #{discriminator_forward.7} parent=0 // pred_check
    _
  $region19: #{discriminator_forward.7} parent=0 // pred_check_branch
    %548 = sbr.rel (0) target = $region21
  $region20: #{discriminator_forward.7} parent=0 // pred_region
    _
  $region21: #{discriminator_forward.7} parent=0 // pred_fallthru
    _
  // Predicated region
  $region22: #{discriminator_forward.7} parent=0 // pred_check
    _
  $region23: #{discriminator_forward.7} parent=0 // pred_check_branch
    %550 = sbr.rel (0) target = $region25
  $region24: #{discriminator_forward.7} parent=0 // pred_region
    _
  $region25: #{discriminator_forward.7} parent=0 // pred_fallthru
    _

// kernel: discriminator_forward.8
$region0: #{discriminator_forward.8}
  #allocation0 [shape = 'u32[]', space=smem, size = 0x4, offset = 0x4, fixed_abs, tag = 'smem constant byte address 0x4 - core index']
  #allocation1 [shape = 'u32[144,128]{1,0:T(1,128)}', space=vmem, size = 0x12000, scoped, tag = 'internal scratch']
  %s0 = inlined_call_operand.vmem [shape: bf16[32,256], index: 0, kind: input, shape index: {}]
  %s1 = inlined_call_operand.vmem [shape: bf16[256,128], index: 1, kind: input, shape index: {}]
  %s2 = inlined_call_operand.vmem [shape: f32[1,128], index: 2, kind: input, shape index: {}]
  %s3 = inlined_call_operand.vmem [shape: f32[1,128], index: 3, kind: input, shape index: {}]
  %s4 = inlined_call_operand.vmem [shape: bf16[32,128], index: 4, kind: output, shape index: {}]
  %s5 = sld [smem:[#allocation0]]
  $region26: #{discriminator_forward.8} parent=0
    _
  %s7 = ssub.s32 1, %s5
  %s8 = scalar_select 0, %s7, %s5
  // Predicated region
  $region2: #{discriminator_forward.8} parent=0 // pred_check
    _
  $region3: #{discriminator_forward.8} parent=0 // pred_check_branch
    %10 = sbr.rel (0) target = $region5
  $region4: #{discriminator_forward.8} parent=0 // pred_region
    _
  $region5: #{discriminator_forward.8} parent=0 // pred_fallthru
    _
  // Predicated region
  $region6: #{discriminator_forward.8} parent=0 // pred_check
    _
  $region7: #{discriminator_forward.8} parent=0 // pred_check_branch
    %12 = sbr.rel (0) target = $region9
  $region8: #{discriminator_forward.8} parent=0 // pred_region
    _
  $region9: #{discriminator_forward.8} parent=0 // pred_fallthru
    _
  // Predicated region
  $region10: #{discriminator_forward.8} parent=0 // pred_check
    _
  $region11: #{discriminator_forward.8} parent=0 // pred_check_branch
    %14 = sbr.rel (0) target = $region13
  $region12: #{discriminator_forward.8} parent=0 // pred_region
    _
  $region13: #{discriminator_forward.8} parent=0 // pred_fallthru
    _
  // Predicated region
  $region14: #{discriminator_forward.8} parent=0 // pred_check
    _
  $region15: #{discriminator_forward.8} parent=0 // pred_check_branch
    %16 = sbr.rel (0) target = $region17
  $region16: #{discriminator_forward.8} parent=0 // pred_region
    _
  $region17: #{discriminator_forward.8} parent=0 // pred_fallthru
    _
  %v18 = vld [vmem:[%s0] sm:$0xff]
  %v19 = vld [vmem:[%s0 + $0x8] sm:$0xff]
  %v20 = vld [vmem:[%s0 + $0x10] sm:$0xff]
  %v21 = vld [vmem:[%s0 + $0x18] sm:$0xff]
  %v22 = vld [vmem:[%s1] sm:$0xf]
  %v23 = vld [vmem:[%s1 + $0x4] sm:$0xf]
  %v24 = vld [vmem:[%s1 + $0x8] sm:$0xf]
  %v25 = vld [vmem:[%s1 + $0xc] sm:$0xf]
  %v26 = vld [vmem:[%s1 + $0x10] sm:$0xf]
  %v27 = vld [vmem:[%s1 + $0x14] sm:$0xf]
  %v28 = vld [vmem:[%s1 + $0x18] sm:$0xf]
  %v29 = vld [vmem:[%s1 + $0x1c] sm:$0xf]
  %v30 = vld [vmem:[%s1 + $0x20] sm:$0xf]
  %v31 = vld [vmem:[%s1 + $0x24] sm:$0xf]
  %v32 = vld [vmem:[%s1 + $0x28] sm:$0xf]
  %v33 = vld [vmem:[%s1 + $0x2c] sm:$0xf]
  %v34 = vld [vmem:[%s1 + $0x30] sm:$0xf]
  %v35 = vld [vmem:[%s1 + $0x34] sm:$0xf]
  %v36 = vld [vmem:[%s1 + $0x38] sm:$0xf]
  %v37 = vld [vmem:[%s1 + $0x3c] sm:$0xf]
  %v38 = vld [vmem:[%s1 + $0x40] sm:$0xf]
  %v39 = vld [vmem:[%s1 + $0x44] sm:$0xf]
  %v40 = vld [vmem:[%s1 + $0x48] sm:$0xf]
  %v41 = vld [vmem:[%s1 + $0x4c] sm:$0xf]
  %v42 = vld [vmem:[%s1 + $0x50] sm:$0xf]
  %v43 = vld [vmem:[%s1 + $0x54] sm:$0xf]
  %v44 = vld [vmem:[%s1 + $0x58] sm:$0xf]
  %v45 = vld [vmem:[%s1 + $0x5c] sm:$0xf]
  %v46 = vld [vmem:[%s1 + $0x60] sm:$0xf]
  %v47 = vld [vmem:[%s1 + $0x64] sm:$0xf]
  %v48 = vld [vmem:[%s1 + $0x68] sm:$0xf]
  %v49 = vld [vmem:[%s1 + $0x6c] sm:$0xf]
  %v50 = vld [vmem:[%s1 + $0x70] sm:$0xf]
  %v51 = vld [vmem:[%s1 + $0x74] sm:$0xf]
  %v52 = vld [vmem:[%s1 + $0x78] sm:$0xf]
  %v53 = vld [vmem:[%s1 + $0x7c] sm:$0xf]
  %v58 = vunpack.c.l.b16 %v18
  %v59 = vunpack.c.h.b16 %v18
  %v60 = vunpack.c.l.b16 %v19
  %v61 = vunpack.c.h.b16 %v19
  %v62 = vunpack.c.l.b16 %v20
  %v63 = vunpack.c.h.b16 %v20
  %v64 = vunpack.c.l.b16 %v21
  %v65 = vunpack.c.h.b16 %v21
  %v66 = vpack.c.b16 %v60, %v58
  %v67 = vpack.c.b16 %v61, %v59
  %v68 = vpack.c.b16 %v64, %v62
  %v69 = vpack.c.b16 %v65, %v63
  %v106 = vunpack.c.l.b16 %v22
  %v107 = vunpack.c.l.b16 %v23
  %v108 = vunpack.c.l.b16 %v24
  %v109 = vunpack.c.l.b16 %v25
  %v110 = vunpack.c.l.b16 %v26
  %v111 = vunpack.c.l.b16 %v27
  %v112 = vunpack.c.l.b16 %v28
  %v113 = vunpack.c.l.b16 %v29
  %v114 = vunpack.c.l.b16 %v30
  %v115 = vunpack.c.l.b16 %v31
  %v116 = vunpack.c.l.b16 %v32
  %v117 = vunpack.c.l.b16 %v33
  %v118 = vunpack.c.l.b16 %v34
  %v119 = vunpack.c.l.b16 %v35
  %v120 = vunpack.c.l.b16 %v36
  %v121 = vunpack.c.l.b16 %v37
  %v122 = vunpack.c.l.b16 %v38
  %v123 = vunpack.c.l.b16 %v39
  %v124 = vunpack.c.l.b16 %v40
  %v125 = vunpack.c.l.b16 %v41
  %v126 = vunpack.c.l.b16 %v42
  %v127 = vunpack.c.l.b16 %v43
  %v128 = vunpack.c.l.b16 %v44
  %v129 = vunpack.c.l.b16 %v45
  %v130 = vunpack.c.l.b16 %v46
  %v131 = vunpack.c.l.b16 %v47
  %v132 = vunpack.c.l.b16 %v48
  %v133 = vunpack.c.l.b16 %v49
  %v134 = vunpack.c.l.b16 %v50
  %v135 = vunpack.c.l.b16 %v51
  %v136 = vunpack.c.l.b16 %v52
  %v137 = vunpack.c.l.b16 %v53
  %v138 = vpack.c.b16 %v107, %v106
  %v139 = vpack.c.b16 %v109, %v108
  %v140 = vpack.c.b16 %v111, %v110
  %v141 = vpack.c.b16 %v113, %v112
  %v142 = vpack.c.b16 %v115, %v114
  %v143 = vpack.c.b16 %v117, %v116
  %v144 = vpack.c.b16 %v119, %v118
  %v145 = vpack.c.b16 %v121, %v120
  %v146 = vpack.c.b16 %v123, %v122
  %v147 = vpack.c.b16 %v125, %v124
  %v148 = vpack.c.b16 %v127, %v126
  %v149 = vpack.c.b16 %v129, %v128
  %v150 = vpack.c.b16 %v131, %v130
  %v151 = vpack.c.b16 %v133, %v132
  %v152 = vpack.c.b16 %v135, %v134
  %v153 = vpack.c.b16 %v137, %v136
  %170 = vmatprep.subr.bf16.mxu0 0
  %171 = vmatpush1.bf16.msra.mxu0 %v138
  %172 = vmatprep.subr.bf16.mxu0 0
  %173 = vmatpush1.bf16.msra.mxu0 %v139
  %174 = vmatprep.subr.bf16.mxu0 0
  %175 = vmatpush1.bf16.msra.mxu0 %v140
  %176 = vmatprep.subr.bf16.mxu0 0
  %177 = vmatpush1.bf16.msra.mxu0 %v141
  %178 = vmatprep.subr.bf16.mxu0 0
  %179 = vmatpush1.bf16.msra.mxu0 %v142
  %180 = vmatprep.subr.bf16.mxu0 0
  %181 = vmatpush1.bf16.msra.mxu0 %v143
  %182 = vmatprep.subr.bf16.mxu0 0
  %183 = vmatpush1.bf16.msra.mxu0 %v144
  %184 = vmatprep.subr.bf16.mxu0 0
  %185 = vmatpush1.bf16.msra.mxu0 %v145
  %186 = vmatprep.subr.bf16.mxu0 0
  %187 = vmatpush1.bf16.msra.mxu0 %v146
  %188 = vmatprep.subr.bf16.mxu0 0
  %189 = vmatpush1.bf16.msra.mxu0 %v147
  %190 = vmatprep.subr.bf16.mxu0 0
  %191 = vmatpush1.bf16.msra.mxu0 %v148
  %192 = vmatprep.subr.bf16.mxu0 0
  %193 = vmatpush1.bf16.msra.mxu0 %v149
  %194 = vmatprep.subr.bf16.mxu0 0
  %195 = vmatpush1.bf16.msra.mxu0 %v150
  %196 = vmatprep.subr.bf16.mxu0 0
  %197 = vmatpush1.bf16.msra.mxu0 %v151
  %198 = vmatprep.subr.bf16.mxu0 0
  %199 = vmatpush1.bf16.msra.mxu0 %v152
  %200 = vmatprep.subr.bf16.mxu0 0
  %201 = vmatpush1.bf16.msra.mxu0 %v153
  %202 = vmatprep.mubr.bf16.mxu0 %v67
  %203 = vmatmul.mubr.bf16.gmra.mrb[0].mxu0 %v66
  %v204 = vpop.f32.mrb[0].mxu0
  %v205 = vadd.f32 0.0, %v204
  %v206 = vpop.f32.mrb[0].mxu0
  %v207 = vpop.f32.mrb[0].mxu0
  %v208 = vadd.f32 0.0, %v207
  %v209 = vpop.f32.mrb[0].mxu0
  %210 = vmatprep.mubr.bf16.mxu0 %v69
  %211 = vmatmul.mubr.bf16.gmra.mrb[0].mxu0 %v68
  %v212 = vpop.f32.mrb[0].mxu0
  %v213 = vadd.f32 0.0, %v212
  %v214 = vpop.f32.mrb[0].mxu0
  %v215 = vpop.f32.mrb[0].mxu0
  %v216 = vadd.f32 0.0, %v215
  %v217 = vpop.f32.mrb[0].mxu0
  %218 = vdwg.mxu0
  %v219 = vadd.f32 %v205, %v208
  %v220 = vadd.f32 %v219, %v213
  %v221 = vadd.f32 %v220, %v216
  %v222 = vrot.slane %v221, 4
  %v223 = vadd.f32 %v221, %v222
  %v224 = vrot.slane %v223, 2
  %v225 = vadd.f32 %v223, %v224
  %v226 = vrot.slane %v225, 1
  %v227 = vadd.f32 %v225, %v226
  %v228 = vmul.f32 %v227, 0.03125
  %v229 = vlaneseq
  %v230 = vshrl.u32 %v229, 7
  %v231 = vadd.s32 %v230, 8
  %v232 = vadd.s32 %v230, 16
  %v233 = vadd.s32 %v230, 24
  %vm234 = vcmp.lt.s32.totalorder %v230, 32
  %vm235 = vcmp.lt.s32.totalorder %v231, 32
  %vm236 = vcmp.lt.s32.totalorder %v232, 32
  %vm237 = vcmp.lt.s32.totalorder %v233, 32
  %v238 = vsub.f32 %v205, %v228
  %v239 = vsub.f32 %v208, %v228
  %v240 = vsub.f32 %v213, %v228
  %v241 = vsub.f32 %v216, %v228
  %v242 = vsel %vm234, %v238, 0.0
  %v243 = vsel %vm235, %v239, 0.0
  %v244 = vsel %vm236, %v240, 0.0
  %v245 = vsel %vm237, %v241, 0.0
  %v246 = vmul.f32 %v242, %v242
  %v247 = vmul.f32 %v243, %v243
  %v248 = vmul.f32 %v244, %v244
  %v249 = vmul.f32 %v245, %v245
  %v250 = vadd.f32 %v246, %v247
  %v251 = vadd.f32 %v250, %v248
  %v252 = vadd.f32 %v251, %v249
  %v253 = vrot.slane %v252, 4
  %v254 = vadd.f32 %v252, %v253
  %v255 = vrot.slane %v254, 2
  %v256 = vadd.f32 %v254, %v255
  %v257 = vrot.slane %v256, 1
  %v258 = vadd.f32 %v256, %v257
  %v259 = vmul.f32 %v258, 0.03125
  %v260 = vld [vmem:[%s2] sm:$0x1]
  %v261 = vadd.f32 %v259, 1e-05
  %v262 = vrsqrt.pop %v261
  %v263 = vmul.f32 %v260, %v262
  %v264 = vld [vmem:[%s3] sm:$0x1]
  %v265 = vmul.f32 %v228, %v263
  %v266 = vsub.f32 %v264, %v265
  %v268 = vlaneseq
  %v269 = vshrl.u32 %v268, 7
  %v270 = vsub.s32 0, %v269
  %v271 = vrot.slane %v263, %v270
  %v273 = vmul.f32 %v205, %v271
  %v274 = vmul.f32 %v208, %v271
  %v275 = vmul.f32 %v213, %v271
  %v276 = vmul.f32 %v216, %v271
  %v278 = vlaneseq
  %v279 = vshrl.u32 %v278, 7
  %v280 = vsub.s32 0, %v279
  %v281 = vrot.slane %v266, %v280
  %v283 = vadd.f32 %v273, %v281
  %v284 = vadd.f32 %v274, %v281
  %v285 = vadd.f32 %v275, %v281
  %v286 = vadd.f32 %v276, %v281
  %vm287 = vcmp.gt.f32.partialorder %v283, 0.0
  %vm288 = vcmp.gt.f32.partialorder %v284, 0.0
  %vm289 = vcmp.gt.f32.partialorder %v285, 0.0
  %vm290 = vcmp.gt.f32.partialorder %v286, 0.0
  %v291 = vmul.f32 %v283, 0.2
  %v292 = vmul.f32 %v284, 0.2
  %v293 = vmul.f32 %v285, 0.2
  %v294 = vmul.f32 %v286, 0.2
  %v295 = vsel %vm287, %v283, %v291
  %v296 = vsel %vm288, %v284, %v292
  %v297 = vsel %vm289, %v285, %v293
  %v298 = vsel %vm290, %v286, %v294
  %v299 = vpack.c.bf16 %v296, %v295
  %v300 = vpack.c.bf16 %v298, %v297
  %v303 = vunpack.c.l.b16 %v299
  %v304 = vunpack.c.h.b16 %v299
  %v305 = vunpack.c.l.b16 %v300
  %v306 = vunpack.c.h.b16 %v300
  %v307 = vpack.c.b16 %v303, %v303
  %v308 = vpack.c.b16 %v304, %v304
  %v309 = vpack.c.b16 %v305, %v305
  %v310 = vpack.c.b16 %v306, %v306
  %315 = vst [vmem:[%s4] sm:$0xf] %v307
  %316 = vst [vmem:[%s4 + $0x4] sm:$0xf] %v308
  %317 = vst [vmem:[%s4 + $0x8] sm:$0xf] %v309
  %318 = vst [vmem:[%s4 + $0xc] sm:$0xf] %v310
  // Predicated region
  $region18: #{discriminator_forward.8} parent=0 // pred_check
    _
  $region19: #{discriminator_forward.8} parent=0 // pred_check_branch
    %320 = sbr.rel (0) target = $region21
  $region20: #{discriminator_forward.8} parent=0 // pred_region
    _
  $region21: #{discriminator_forward.8} parent=0 // pred_fallthru
    _
  // Predicated region
  $region22: #{discriminator_forward.8} parent=0 // pred_check
    _
  $region23: #{discriminator_forward.8} parent=0 // pred_check_branch
    %322 = sbr.rel (0) target = $region25
  $region24: #{discriminator_forward.8} parent=0 // pred_region
    _
  $region25: #{discriminator_forward.8} parent=0 // pred_fallthru
    _

// kernel: discriminator_forward.9
$region0: #{discriminator_forward.9}
  #allocation0 [shape = 'u32[]', space=smem, size = 0x4, offset = 0x4, fixed_abs, tag = 'smem constant byte address 0x4 - core index']
  #allocation1 [shape = 'u32[144,128]{1,0:T(1,128)}', space=vmem, size = 0x12000, scoped, tag = 'internal scratch']
  %s0 = inlined_call_operand.vmem [shape: bf16[8,512], index: 0, kind: input, shape index: {}]
  %s1 = inlined_call_operand.vmem [shape: bf16[512,128], index: 1, kind: input, shape index: {}]
  %s2 = inlined_call_operand.vmem [shape: f32[1,128], index: 2, kind: input, shape index: {}]
  %s3 = inlined_call_operand.vmem [shape: f32[8,128], index: 3, kind: output, shape index: {}]
  %s4 = sld [smem:[#allocation0]]
  $region22: #{discriminator_forward.9} parent=0
    _
  %s6 = ssub.s32 1, %s4
  %s7 = scalar_select 0, %s6, %s4
  // Predicated region
  $region2: #{discriminator_forward.9} parent=0 // pred_check
    _
  $region3: #{discriminator_forward.9} parent=0 // pred_check_branch
    %9 = sbr.rel (0) target = $region5
  $region4: #{discriminator_forward.9} parent=0 // pred_region
    _
  $region5: #{discriminator_forward.9} parent=0 // pred_fallthru
    _
  // Predicated region
  $region6: #{discriminator_forward.9} parent=0 // pred_check
    _
  $region7: #{discriminator_forward.9} parent=0 // pred_check_branch
    %11 = sbr.rel (0) target = $region9
  $region8: #{discriminator_forward.9} parent=0 // pred_region
    _
  $region9: #{discriminator_forward.9} parent=0 // pred_fallthru
    _
  // Predicated region
  $region10: #{discriminator_forward.9} parent=0 // pred_check
    _
  $region11: #{discriminator_forward.9} parent=0 // pred_check_branch
    %13 = sbr.rel (0) target = $region13
  $region12: #{discriminator_forward.9} parent=0 // pred_region
    _
  $region13: #{discriminator_forward.9} parent=0 // pred_fallthru
    _
  %v15 = vld [vmem:[%s0] sm:$0xff]
  %v16 = vld [vmem:[%s0 + $0x8] sm:$0xff]
  %v17 = vld [vmem:[%s1] sm:$0xf]
  %v18 = vld [vmem:[%s1 + $0x4] sm:$0xf]
  %v19 = vld [vmem:[%s1 + $0x8] sm:$0xf]
  %v20 = vld [vmem:[%s1 + $0xc] sm:$0xf]
  %v21 = vld [vmem:[%s1 + $0x10] sm:$0xf]
  %v22 = vld [vmem:[%s1 + $0x14] sm:$0xf]
  %v23 = vld [vmem:[%s1 + $0x18] sm:$0xf]
  %v24 = vld [vmem:[%s1 + $0x1c] sm:$0xf]
  %v25 = vld [vmem:[%s1 + $0x20] sm:$0xf]
  %v26 = vld [vmem:[%s1 + $0x24] sm:$0xf]
  %v27 = vld [vmem:[%s1 + $0x28] sm:$0xf]
  %v28 = vld [vmem:[%s1 + $0x2c] sm:$0xf]
  %v29 = vld [vmem:[%s1 + $0x30] sm:$0xf]
  %v30 = vld [vmem:[%s1 + $0x34] sm:$0xf]
  %v31 = vld [vmem:[%s1 + $0x38] sm:$0xf]
  %v32 = vld [vmem:[%s1 + $0x3c] sm:$0xf]
  %v33 = vld [vmem:[%s1 + $0x40] sm:$0xf]
  %v34 = vld [vmem:[%s1 + $0x44] sm:$0xf]
  %v35 = vld [vmem:[%s1 + $0x48] sm:$0xf]
  %v36 = vld [vmem:[%s1 + $0x4c] sm:$0xf]
  %v37 = vld [vmem:[%s1 + $0x50] sm:$0xf]
  %v38 = vld [vmem:[%s1 + $0x54] sm:$0xf]
  %v39 = vld [vmem:[%s1 + $0x58] sm:$0xf]
  %v40 = vld [vmem:[%s1 + $0x5c] sm:$0xf]
  %v41 = vld [vmem:[%s1 + $0x60] sm:$0xf]
  %v42 = vld [vmem:[%s1 + $0x64] sm:$0xf]
  %v43 = vld [vmem:[%s1 + $0x68] sm:$0xf]
  %v44 = vld [vmem:[%s1 + $0x6c] sm:$0xf]
  %v45 = vld [vmem:[%s1 + $0x70] sm:$0xf]
  %v46 = vld [vmem:[%s1 + $0x74] sm:$0xf]
  %v47 = vld [vmem:[%s1 + $0x78] sm:$0xf]
  %v48 = vld [vmem:[%s1 + $0x7c] sm:$0xf]
  %v49 = vld [vmem:[%s1 + $0x80] sm:$0xf]
  %v50 = vld [vmem:[%s1 + $0x84] sm:$0xf]
  %v51 = vld [vmem:[%s1 + $0x88] sm:$0xf]
  %v52 = vld [vmem:[%s1 + $0x8c] sm:$0xf]
  %v53 = vld [vmem:[%s1 + $0x90] sm:$0xf]
  %v54 = vld [vmem:[%s1 + $0x94] sm:$0xf]
  %v55 = vld [vmem:[%s1 + $0x98] sm:$0xf]
  %v56 = vld [vmem:[%s1 + $0x9c] sm:$0xf]
  %v57 = vld [vmem:[%s1 + $0xa0] sm:$0xf]
  %v58 = vld [vmem:[%s1 + $0xa4] sm:$0xf]
  %v59 = vld [vmem:[%s1 + $0xa8] sm:$0xf]
  %v60 = vld [vmem:[%s1 + $0xac] sm:$0xf]
  %v61 = vld [vmem:[%s1 + $0xb0] sm:$0xf]
  %v62 = vld [vmem:[%s1 + $0xb4] sm:$0xf]
  %v63 = vld [vmem:[%s1 + $0xb8] sm:$0xf]
  %v64 = vld [vmem:[%s1 + $0xbc] sm:$0xf]
  %v65 = vld [vmem:[%s1 + $0xc0] sm:$0xf]
  %v66 = vld [vmem:[%s1 + $0xc4] sm:$0xf]
  %v67 = vld [vmem:[%s1 + $0xc8] sm:$0xf]
  %v68 = vld [vmem:[%s1 + $0xcc] sm:$0xf]
  %v69 = vld [vmem:[%s1 + $0xd0] sm:$0xf]
  %v70 = vld [vmem:[%s1 + $0xd4] sm:$0xf]
  %v71 = vld [vmem:[%s1 + $0xd8] sm:$0xf]
  %v72 = vld [vmem:[%s1 + $0xdc] sm:$0xf]
  %v73 = vld [vmem:[%s1 + $0xe0] sm:$0xf]
  %v74 = vld [vmem:[%s1 + $0xe4] sm:$0xf]
  %v75 = vld [vmem:[%s1 + $0xe8] sm:$0xf]
  %v76 = vld [vmem:[%s1 + $0xec] sm:$0xf]
  %v77 = vld [vmem:[%s1 + $0xf0] sm:$0xf]
  %v78 = vld [vmem:[%s1 + $0xf4] sm:$0xf]
  %v79 = vld [vmem:[%s1 + $0xf8] sm:$0xf]
  %v80 = vld [vmem:[%s1 + $0xfc] sm:$0xf]
  %v81 = vld [vmem:[%s2] sm:$0x1]
  %v83 = vlaneseq
  %v84 = vshrl.u32 %v83, 7
  %v85 = vsub.s32 0, %v84
  %v86 = vrot.slane %v81, %v85
  %v90 = vunpack.c.l.b16 %v15
  %v91 = vunpack.c.h.b16 %v15
  %v92 = vunpack.c.l.b16 %v16
  %v93 = vunpack.c.h.b16 %v16
  %v94 = vpack.c.b16 %v90, %v90
  %v95 = vpack.c.b16 %v91, %v91
  %v96 = vpack.c.b16 %v92, %v92
  %v97 = vpack.c.b16 %v93, %v93
  %v166 = vunpack.c.l.b16 %v17
  %v167 = vunpack.c.l.b16 %v18
  %v168 = vunpack.c.l.b16 %v19
  %v169 = vunpack.c.l.b16 %v20
  %v170 = vunpack.c.l.b16 %v21
  %v171 = vunpack.c.l.b16 %v22
  %v172 = vunpack.c.l.b16 %v23
  %v173 = vunpack.c.l.b16 %v24
  %v174 = vunpack.c.l.b16 %v25
  %v175 = vunpack.c.l.b16 %v26
  %v176 = vunpack.c.l.b16 %v27
  %v177 = vunpack.c.l.b16 %v28
  %v178 = vunpack.c.l.b16 %v29
  %v179 = vunpack.c.l.b16 %v30
  %v180 = vunpack.c.l.b16 %v31
  %v181 = vunpack.c.l.b16 %v32
  %v182 = vunpack.c.l.b16 %v33
  %v183 = vunpack.c.l.b16 %v34
  %v184 = vunpack.c.l.b16 %v35
  %v185 = vunpack.c.l.b16 %v36
  %v186 = vunpack.c.l.b16 %v37
  %v187 = vunpack.c.l.b16 %v38
  %v188 = vunpack.c.l.b16 %v39
  %v189 = vunpack.c.l.b16 %v40
  %v190 = vunpack.c.l.b16 %v41
  %v191 = vunpack.c.l.b16 %v42
  %v192 = vunpack.c.l.b16 %v43
  %v193 = vunpack.c.l.b16 %v44
  %v194 = vunpack.c.l.b16 %v45
  %v195 = vunpack.c.l.b16 %v46
  %v196 = vunpack.c.l.b16 %v47
  %v197 = vunpack.c.l.b16 %v48
  %v198 = vunpack.c.l.b16 %v49
  %v199 = vunpack.c.l.b16 %v50
  %v200 = vunpack.c.l.b16 %v51
  %v201 = vunpack.c.l.b16 %v52
  %v202 = vunpack.c.l.b16 %v53
  %v203 = vunpack.c.l.b16 %v54
  %v204 = vunpack.c.l.b16 %v55
  %v205 = vunpack.c.l.b16 %v56
  %v206 = vunpack.c.l.b16 %v57
  %v207 = vunpack.c.l.b16 %v58
  %v208 = vunpack.c.l.b16 %v59
  %v209 = vunpack.c.l.b16 %v60
  %v210 = vunpack.c.l.b16 %v61
  %v211 = vunpack.c.l.b16 %v62
  %v212 = vunpack.c.l.b16 %v63
  %v213 = vunpack.c.l.b16 %v64
  %v214 = vunpack.c.l.b16 %v65
  %v215 = vunpack.c.l.b16 %v66
  %v216 = vunpack.c.l.b16 %v67
  %v217 = vunpack.c.l.b16 %v68
  %v218 = vunpack.c.l.b16 %v69
  %v219 = vunpack.c.l.b16 %v70
  %v220 = vunpack.c.l.b16 %v71
  %v221 = vunpack.c.l.b16 %v72
  %v222 = vunpack.c.l.b16 %v73
  %v223 = vunpack.c.l.b16 %v74
  %v224 = vunpack.c.l.b16 %v75
  %v225 = vunpack.c.l.b16 %v76
  %v226 = vunpack.c.l.b16 %v77
  %v227 = vunpack.c.l.b16 %v78
  %v228 = vunpack.c.l.b16 %v79
  %v229 = vunpack.c.l.b16 %v80
  %v230 = vpack.c.b16 %v167, %v166
  %v231 = vpack.c.b16 %v169, %v168
  %v232 = vpack.c.b16 %v171, %v170
  %v233 = vpack.c.b16 %v173, %v172
  %v234 = vpack.c.b16 %v175, %v174
  %v235 = vpack.c.b16 %v177, %v176
  %v236 = vpack.c.b16 %v179, %v178
  %v237 = vpack.c.b16 %v181, %v180
  %v238 = vpack.c.b16 %v183, %v182
  %v239 = vpack.c.b16 %v185, %v184
  %v240 = vpack.c.b16 %v187, %v186
  %v241 = vpack.c.b16 %v189, %v188
  %v242 = vpack.c.b16 %v191, %v190
  %v243 = vpack.c.b16 %v193, %v192
  %v244 = vpack.c.b16 %v195, %v194
  %v245 = vpack.c.b16 %v197, %v196
  %v246 = vpack.c.b16 %v199, %v198
  %v247 = vpack.c.b16 %v201, %v200
  %v248 = vpack.c.b16 %v203, %v202
  %v249 = vpack.c.b16 %v205, %v204
  %v250 = vpack.c.b16 %v207, %v206
  %v251 = vpack.c.b16 %v209, %v208
  %v252 = vpack.c.b16 %v211, %v210
  %v253 = vpack.c.b16 %v213, %v212
  %v254 = vpack.c.b16 %v215, %v214
  %v255 = vpack.c.b16 %v217, %v216
  %v256 = vpack.c.b16 %v219, %v218
  %v257 = vpack.c.b16 %v221, %v220
  %v258 = vpack.c.b16 %v223, %v222
  %v259 = vpack.c.b16 %v225, %v224
  %v260 = vpack.c.b16 %v227, %v226
  %v261 = vpack.c.b16 %v229, %v228
  %294 = vmatprep.subr.bf16.mxu0 0
  %295 = vmatpush1.bf16.msra.mxu0 %v230
  %296 = vmatprep.subr.bf16.mxu0 0
  %297 = vmatpush1.bf16.msra.mxu0 %v231
  %298 = vmatprep.subr.bf16.mxu0 0
  %299 = vmatpush1.bf16.msra.mxu0 %v232
  %300 = vmatprep.subr.bf16.mxu0 0
  %301 = vmatpush1.bf16.msra.mxu0 %v233
  %302 = vmatprep.subr.bf16.mxu0 0
  %303 = vmatpush1.bf16.msra.mxu0 %v234
  %304 = vmatprep.subr.bf16.mxu0 0
  %305 = vmatpush1.bf16.msra.mxu0 %v235
  %306 = vmatprep.subr.bf16.mxu0 0
  %307 = vmatpush1.bf16.msra.mxu0 %v236
  %308 = vmatprep.subr.bf16.mxu0 0
  %309 = vmatpush1.bf16.msra.mxu0 %v237
  %310 = vmatprep.subr.bf16.mxu0 0
  %311 = vmatpush1.bf16.msra.mxu0 %v238
  %312 = vmatprep.subr.bf16.mxu0 0
  %313 = vmatpush1.bf16.msra.mxu0 %v239
  %314 = vmatprep.subr.bf16.mxu0 0
  %315 = vmatpush1.bf16.msra.mxu0 %v240
  %316 = vmatprep.subr.bf16.mxu0 0
  %317 = vmatpush1.bf16.msra.mxu0 %v241
  %318 = vmatprep.subr.bf16.mxu0 0
  %319 = vmatpush1.bf16.msra.mxu0 %v242
  %320 = vmatprep.subr.bf16.mxu0 0
  %321 = vmatpush1.bf16.msra.mxu0 %v243
  %322 = vmatprep.subr.bf16.mxu0 0
  %323 = vmatpush1.bf16.msra.mxu0 %v244
  %324 = vmatprep.subr.bf16.mxu0 0
  %325 = vmatpush1.bf16.msra.mxu0 %v245
  %326 = vmatprep.mubr.bf16.mxu0 %v95
  %327 = vmatmul.mubr.bf16.gmra.mrb[0].mxu0 %v94
  %v328 = vpop.f32.mrb[0].mxu0
  %v329 = vadd.f32 %v86, %v328
  %v330 = vpop.f32.mrb[0].mxu0
  %v331 = vpop.f32.mrb[0].mxu0
  %v332 = vpop.f32.mrb[0].mxu0
  %333 = vdwg.mxu0
  %334 = vmatprep.subr.bf16.mxu0 0
  %335 = vmatpush1.bf16.msra.mxu0 %v246
  %336 = vmatprep.subr.bf16.mxu0 0
  %337 = vmatpush1.bf16.msra.mxu0 %v247
  %338 = vmatprep.subr.bf16.mxu0 0
  %339 = vmatpush1.bf16.msra.mxu0 %v248
  %340 = vmatprep.subr.bf16.mxu0 0
  %341 = vmatpush1.bf16.msra.mxu0 %v249
  %342 = vmatprep.subr.bf16.mxu0 0
  %343 = vmatpush1.bf16.msra.mxu0 %v250
  %344 = vmatprep.subr.bf16.mxu0 0
  %345 = vmatpush1.bf16.msra.mxu0 %v251
  %346 = vmatprep.subr.bf16.mxu0 0
  %347 = vmatpush1.bf16.msra.mxu0 %v252
  %348 = vmatprep.subr.bf16.mxu0 0
  %349 = vmatpush1.bf16.msra.mxu0 %v253
  %350 = vmatprep.subr.bf16.mxu0 0
  %351 = vmatpush1.bf16.msra.mxu0 %v254
  %352 = vmatprep.subr.bf16.mxu0 0
  %353 = vmatpush1.bf16.msra.mxu0 %v255
  %354 = vmatprep.subr.bf16.mxu0 0
  %355 = vmatpush1.bf16.msra.mxu0 %v256
  %356 = vmatprep.subr.bf16.mxu0 0
  %357 = vmatpush1.bf16.msra.mxu0 %v257
  %358 = vmatprep.subr.bf16.mxu0 0
  %359 = vmatpush1.bf16.msra.mxu0 %v258
  %360 = vmatprep.subr.bf16.mxu0 0
  %361 = vmatpush1.bf16.msra.mxu0 %v259
  %362 = vmatprep.subr.bf16.mxu0 0
  %363 = vmatpush1.bf16.msra.mxu0 %v260
  %364 = vmatprep.subr.bf16.mxu0 0
  %365 = vmatpush1.bf16.msra.mxu0 %v261
  %366 = vmatprep.mubr.bf16.mxu0 %v97
  %367 = vmatmul.mubr.bf16.gmra.mrb[0].mxu0 %v96
  %v368 = vpop.f32.mrb[0].mxu0
  %v369 = vadd.f32 %v329, %v368
  %v370 = vpop.f32.mrb[0].mxu0
  %v371 = vpop.f32.mrb[0].mxu0
  %v372 = vpop.f32.mrb[0].mxu0
  %373 = vdwg.mxu0
  %v374 = vxor.u32 %v369, 2147483648
  %v375 = vmul.f32 %v374, 1.442695
  %v376 = vpow.pop %v375
  %v377 = vadd.f32 %v376, 1.0
  %v378 = vrcp.pop %v377
  %v379 = vmul.f32 1.0, %v378
  %380 = vst [vmem:[%s3] sm:$0xff] %v379
  // Predicated region
  $region14: #{discriminator_forward.9} parent=0 // pred_check
    _
  $region15: #{discriminator_forward.9} parent=0 // pred_check_branch
    %382 = sbr.rel (0) target = $region17
  $region16: #{discriminator_forward.9} parent=0 // pred_region
    _
  $region17: #{discriminator_forward.9} parent=0 // pred_fallthru
    _
  // Predicated region
  $region18: #{discriminator_forward.9} parent=0 // pred_check
    _
  $region19: #{discriminator_forward.9} parent=0 // pred_check_branch
    %384 = sbr.rel (0) target = $region21
  $region20: #{discriminator_forward.9} parent=0 // pred_region
    _
  $region21: #{discriminator_forward.9} parent=0 // pred_fallthru
    _

</llo_original>
